<compile_context>
chip_gen: v7x
topology: tpu7x:2x2x1
jax: 0.10.0
libtpu: 0.0.40
codegen_flags: <defaults>
</compile_context>

<pallas_src>
import functools
import math

import jax
import jax.numpy as jnp
from jax import lax
from jax.experimental import pallas as pl
from jax.experimental.pallas import tpu as pltpu


def _round_up(a: int, b: int) -> int:
    return (a + b - 1) // b * b


# ---------------------------------------------------------------------------
# Parameter / filter construction (plain JAX glue, mirrors the torch code).
# ---------------------------------------------------------------------------
def linear_scale_bank(channels: int, fs: float) -> jnp.ndarray:
    """LinearScale.bank: filter start/stop frequencies, shape (channels, 2)."""
    freqs = jnp.linspace(0.5, fs * 0.5, channels + 2, dtype=jnp.float32)
    return jnp.stack([freqs[:-2], freqs[2:]], axis=1)


def make_sinc_filters(f: jnp.ndarray, kernel_size: int) -> jnp.ndarray:
    """Replicates SincConv2D._create_filters. f: (F, 2) normalized band edges."""
    N = kernel_size // 2
    n = jnp.linspace(1.0, float(N), N, dtype=jnp.float32)
    x = 2.0 * math.pi * n                                        # self._x
    L = 2 * N + 1
    window = 0.54 - 0.46 * jnp.cos(2.0 * math.pi * n[::-1] / L)  # hamming_window

    f_mins = jnp.abs(f[:, 0])
    f_maxs = jnp.abs(f[:, 0]) + jnp.abs(f[:, 1] - f[:, 0])
    kern = (jnp.sin(f_maxs[:, None] * x[None, :])
            - jnp.sin(f_mins[:, None] * x[None, :])) / (0.5 * x)
    kern = kern * window
    kern_left = kern[:, ::-1]
    kern_center = (2.0 * f_maxs - 2.0 * f_mins)[:, None]
    return jnp.concatenate([kern_left, kern_center, kern], axis=1)  # (F, K)


# ---------------------------------------------------------------------------
# One-time probe: determine pltpu.roll's shift convention.
#   +1 : matches jnp.roll (positive shift moves elements toward higher index)
#   -1 : opposite convention
#    0 : undetermined -> kernel uses the slice-from-ref fallback path.
# ---------------------------------------------------------------------------
_ROLL_SIGN = None


def _roll_sign() -> int:
    global _ROLL_SIGN
    if _ROLL_SIGN is not None:
        return _ROLL_SIGN

    def probe(x_ref, o_ref):
        o_ref[...] = pltpu.roll(x_ref[...], 1, axis=1)

    try:
        with jax.ensure_compile_time_eval():
            x = lax.broadcasted_iota(jnp.float32, (8, 128), 1)
            y = pl.pallas_call(
                probe,
                out_shape=jax.ShapeDtypeStruct((8, 128), jnp.float32))(x)
            v = int(jax.device_get(y)[0, 1])
        if v == 0:
            sign = 1
        elif v == 2:
            sign = -1
        else:
            sign = 0
    except Exception:
        sign = 0
    _ROLL_SIGN = sign
    return sign


# ---------------------------------------------------------------------------
# Pallas kernel: grouped 1-D sinc conv along the lane (W) axis.
# One grid step = (channel block ci, row block mi); it produces the Cg*r
# output channels of the Cg input channels in the block.
# ---------------------------------------------------------------------------
def _sinc_conv_kernel(filt_ref, x_ref, o_ref, *scratch, K: int, r: int, Cg: int,
                      dilation: int, padding: int, W: int, Wp_pad: int,
                      W_out_p: int, n_row_chunks: int, roll_sign: int):
    # filt_ref: (F*K,) f32 SMEM         flat filter taps
    # x_ref:    (Cg, M_t, W) VMEM       input rows of Cg channels
    # o_ref:    (Cg*r, M_t, W_out_p)    output rows (lane-dense last dim)
    # scratch:  optional (Cg, M_t, Wp_pad) f32 VMEM staging buffer
    xpad_ref = scratch[0] if scratch else None
    ci = pl.program_id(0)
    use_roll = roll_sign != 0
    roll_shift = (Wp_pad - dilation) if roll_sign > 0 else dilation
    R_SUB = 8  # output channels accumulated per pass (bounds live vregs)

    # Zero only the explicit-padding lane strips.  Columns beyond W+2*padding
    # are never read for valid output columns, so they may stay uninitialized.
    if xpad_ref is not None and padding > 0:
        zshape = (xpad_ref.shape[0], xpad_ref.shape[1], padding)
        xpad_ref[:, :, 0:padding] = jnp.zeros(zshape, jnp.float32)
        xpad_ref[:, :, W + padding:W + 2 * padding] = jnp.zeros(zshape, jnp.float32)

    for g in range(Cg):                                # static channel loop
        base = (ci * Cg + g) * (r * K)                 # flat tap offset for this channel

        def process_chunk(rc, g=g, base=base):
            if isinstance(rc, int):
                row0 = rc * 8
            else:
                row0 = pl.multiple_of(rc * 8, 8)
            rows = pl.ds(row0, 8)

            if xpad_ref is None:
                src = x_ref                             # f32, padding==0, W == Wp_pad
            else:
                # Stage this 8-row chunk into the padded f32 buffer: casts the
                # dtype exactly once and realizes the left/right zero padding.
                xpad_ref[g, rows, padding:padding + W] = (
                    x_ref[g, rows, :].astype(jnp.float32))
                src = xpad_ref

            for j0 in range(0, r, R_SUB):               # bound live accumulators
                js = list(range(j0, min(j0 + R_SUB, r)))
                accs = [None] * len(js)
                if use_roll:
                    # Hold one (8, Wp_pad) slab; advance by `dilation` lanes per
                    # tap with an XLU roll (no per-tap unaligned reloads).
                    slab = src[g, rows, :]
                    for k in range(K):                  # static, unrolled taps
                        for idx, j in enumerate(js):
                            coef = filt_ref[base + j * K + k]   # SMEM scalar
                            term = slab * coef
                            accs[idx] = term if accs[idx] is None else accs[idx] + term
                        if k + 1 < K:
                            slab = pltpu.roll(slab, roll_shift, axis=1)
                    outs = [a[:, :W_out_p] for a in accs]      # lane-aligned slice
                else:
                    # Fallback: per-tap lane-offset window slices from the ref
                    # (keeps loads on vld; live set stays accs + one window).
                    for k in range(K):
                        s = k * dilation
                        w = src[g, rows, s:s + W_out_p]
                        for idx, j in enumerate(js):
                            coef = filt_ref[base + j * K + k]
                            term = w * coef
                            accs[idx] = term if accs[idx] is None else accs[idx] + term
                    outs = accs

                for idx, j in enumerate(js):
                    o_ref[g * r + j, rows, :] = outs[idx].astype(o_ref.dtype)

        if n_row_chunks == 1:
            process_chunk(0)
        else:
            pl.loop(0, n_row_chunks)(process_chunk)


def sinc_conv2d(x, f, kernel_size: int, stride: int = 1, padding: int = 0,
                dilation: int = 1):
    """Forward pass of SincConv2D. x: (B, C_in, H, W) -> (B, F, H_out, W_out)."""
    assert kernel_size % 2 == 1, "SincConv: Kernel size must be odd."
    assert stride == 1  # TODO(synk): strided output slicing not implemented in-kernel.
    B, C_in, H, W = x.shape
    F_out = f.shape[0]
    assert F_out % C_in == 0, "out_channels must be divisible by in_channels (groups)"
    r = F_out // C_in
    K = kernel_size

    filt_flat = make_sinc_filters(f, K).reshape(-1)          # (F*K,) f32 -> tiny SMEM

    W_out = W + 2 * padding - dilation * (K - 1)
    assert W_out >= 1
    W_out_p = _round_up(W_out, 128)                          # lane-dense stores

    roll_sign = _roll_sign()
    if roll_sign != 0:
        Wp_pad = _round_up(W + 2 * padding, 128)
    else:   # slice-fallback windows read up to (K-1)*dil + W_out_p lanes
        Wp_pad = _round_up(dilation * (K - 1) + W_out_p, 128)

    # Sublane fold: (B, C_in, H, W) -> (C_in, B*H, W) so rows fill 8-sublane
    # f32 tiles even when H < 8 (halves effective HBM traffic / VALU waste).
    M = B * H
    xt = jnp.transpose(x, (1, 0, 2, 3)).reshape(C_in, M, W)

    # Row blocking: multiple of 8 sublanes; tile M only when it is very large.
    M_p = _round_up(M, 8)
    m_blocks = max(1, -(-M_p // 1024))
    M_t = _round_up(-(-M_p // m_blocks), 8)
    M_p = M_t * m_blocks
    if M_p != M:
        xt = jnp.pad(xt, ((0, 0), (0, M_p - M), (0, 0)))     # only when B*H % 8 != 0

    # Channel blocking: fatten each grid step with several input channels while
    # keeping >= 2 grid blocks when C_in allows it (v7x megacore) and staying
    # within a conservative VMEM budget.
    itemsize = jnp.dtype(x.dtype).itemsize

    def step_bytes(cg):
        return (2 * cg * M_t * W * itemsize                  # double-buffered input block
                + 2 * cg * r * M_t * W_out_p * itemsize      # double-buffered output block
                + cg * M_t * Wp_pad * 4)                     # f32 staging scratch

    budget = 20 * 1024 * 1024
    divisors = [d for d in range(C_in, 0, -1) if C_in % d == 0]
    preferred = [d for d in divisors if C_in // d >= 2] or divisors
    Cg = next((d for d in preferred if step_bytes(d) <= budget), 1)

    direct = (roll_sign != 0 and padding == 0 and W == Wp_pad
              and x.dtype == jnp.float32)
    scratch_shapes = [] if direct else [pltpu.VMEM((Cg, M_t, Wp_pad), jnp.float32)]

    vmem_limit = int(min(max(2 * step_bytes(Cg), 8 * 1024 * 1024),
                         48 * 1024 * 1024))

    out_k = pl.pallas_call(
        functools.partial(
            _sinc_conv_kernel, K=K, r=r, Cg=Cg, dilation=dilation,
            padding=padding, W=W, Wp_pad=Wp_pad, W_out_p=W_out_p,
            n_row_chunks=M_t // 8, roll_sign=roll_sign),
        out_shape=jax.ShapeDtypeStruct((F_out, M_p, W_out_p), x.dtype),
        grid=(C_in // Cg, M_p // M_t),
        in_specs=[
            pl.BlockSpec(memory_space=pltpu.MemorySpace.SMEM),       # filter taps
            pl.BlockSpec((Cg, M_t, W), lambda ci, mi: (ci, mi, 0)),  # input rows
        ],
        out_specs=pl.BlockSpec((Cg * r, M_t, W_out_p),
                               lambda ci, mi: (ci, mi, 0)),
        scratch_shapes=scratch_shapes,
        compiler_params=pltpu.CompilerParams(
            dimension_semantics=("parallel", "parallel"),
            vmem_limit_bytes=vmem_limit),
    )(filt_flat, xt)

    # Drop row / lane padding and restore NCHW.  Cheap at these sizes; for
    # production-long W keep the channel-major layout or fuse into the consumer.
    y = out_k[:, :M, :W_out].reshape(F_out, B, H, W_out).transpose(1, 0, 2, 3)
    if padding:
        # conv2d also zero-pads H; with a height-1 kernel those rows are exactly 0.
        y = jnp.pad(y, ((0, 0), (0, 0), (padding, padding), (0, 0)))
    return y


# ---------------------------------------------------------------------------
# Pure-JAX reference for correctness checking.
# ---------------------------------------------------------------------------
def sinc_conv2d_reference(x, f, kernel_size: int, dilation: int = 1, padding: int = 0):
    filt = make_sinc_filters(f, kernel_size)
    B, C_in, H, W = x.shape
    F_out = filt.shape[0]
    r = F_out // C_in
    if padding:
        x = jnp.pad(x, ((0, 0), (0, 0), (padding, padding), (padding, padding)))
    W_out = x.shape[-1] - dilation * (kernel_size - 1)
    xg = jnp.repeat(x, r, axis=1)
    out = jnp.zeros((B, F_out, x.shape[2], W_out), jnp.float32)
    for k in range(kernel_size):
        s = k * dilation
        out = out + xg[..., s:s + W_out].astype(jnp.float32) * \
            filt[:, k][None, :, None, None]
    return out.astype(x.dtype)


if __name__ == "__main__":
    key = jax.random.PRNGKey(0)
    fs = 16000.0

    # Case 1: NCHW input, conv along W; B*H = 8 fills the folded sublane axis
    # exactly and W_out = 128 is already lane-dense.
    B, C_in, H, W = 2, 4, 4, 160
    out_channels, kernel_size = 8, 33

    x = jax.random.normal(key, (B, C_in, H, W), dtype=jnp.float32)
    # Deterministic parameter init: exactly what SincConv2D.init_filters does.
    f_param = linear_scale_bank(out_channels, fs) / fs       # (F, 2)

    y = jax.block_until_ready(sinc_conv2d(x, f_param, kernel_size))
    assert y.shape == (B, out_channels, H, W - (kernel_size - 1)), y.shape
    y_ref = sinc_conv2d_reference(x, f_param, kernel_size)
    err1 = float(jnp.max(jnp.abs(y - y_ref)))
    if not err1 < 1e-4:
        raise AssertionError(f"Pallas kernel mismatch (case 1), max |err| = {err1}")

    # Case 2: exercises in-kernel zero padding, dilation, and the lane-padded
    # (W_out % 128 != 0) output path that gets sliced in the wrapper.
    key2 = jax.random.fold_in(key, 1)
    W2, pad2, dil2 = 150, 2, 2
    x2 = jax.random.normal(key2, (B, C_in, H, W2), dtype=jnp.float32)
    y2 = jax.block_until_ready(
        sinc_conv2d(x2, f_param, kernel_size, padding=pad2, dilation=dil2))
    y2_ref = sinc_conv2d_reference(x2, f_param, kernel_size,
                                   dilation=dil2, padding=pad2)
    assert y2.shape == y2_ref.shape, (y2.shape, y2_ref.shape)
    err2 = float(jnp.max(jnp.abs(y2 - y2_ref)))
    if not err2 < 1e-4:
        raise AssertionError(f"Pallas kernel mismatch (case 2), max |err| = {err2}")

    print("KERNEL_OK")
</pallas_src>

<mosaic_0001>
module attributes {stable_mosaic.version = 11 : i64} {
  func.func @probe(%arg0: memref<8x128xf32, #tpu.memory_space<vmem>>, %arg1: memref<8x128xf32, #tpu.memory_space<vmem>>) attributes {dimension_semantics = [], scalar_prefetch = 0 : i64, scratch_operands = 0 : i64, tpu.core_type = #tpu.core_type<tc>} {
    %c0 = arith.constant 0 : index
    %c0_0 = arith.constant 0 : index
    %0 = vector.load %arg0[%c0, %c0_0] : memref<8x128xf32, #tpu.memory_space<vmem>>, vector<8x128xf32>
    %c1_i32 = arith.constant 1 : i32
    %1 = tpu.dynamic_rotate %0 by %c1_i32 dim 1 : vector<8x128xf32>, i32 -> vector<8x128xf32>
    %c0_1 = arith.constant 0 : index
    %c0_2 = arith.constant 0 : index
    %2 = vector.load %arg1[%c0_1, %c0_2] : memref<8x128xf32, #tpu.memory_space<vmem>>, vector<8x128xf32>
    tpu.vector_store %arg1[%c0_1, %c0_2], %1 {strides = array<i32>} : memref<8x128xf32, #tpu.memory_space<vmem>>, vector<8x128xf32>,
    return
  }
}

module attributes {stable_mosaic.version = 11 : i64} {
  func.func @_sinc_conv_kernel(%arg0: i32, %arg1: i32, %arg2: memref<264xf32, #tpu.memory_space<smem>>, %arg3: memref<2x8x160xf32, #tpu.memory_space<vmem>>, %arg4: memref<4x8x128xf32, #tpu.memory_space<vmem>>, %arg5: memref<2x8x256xf32, #tpu.memory_space<vmem>>) attributes {dimension_semantics = [#tpu.dimension_semantics<parallel>, #tpu.dimension_semantics<parallel>], iteration_bounds = array<i64: 2, 1>, scalar_prefetch = 0 : i64, scratch_operands = 1 : i64, tpu.core_type = #tpu.core_type<tc>, window_params = [{transform_indices = @transform_0, window_bounds = array<i64: 264>}, {transform_indices = @transform_1, window_bounds = array<i64: 2, 8, 160>}, {transform_indices = @transform_2, window_bounds = array<i64: 4, 8, 128>}]} {
    %c2_i32 = arith.constant 2 : i32
    %0 = arith.muli %arg0, %c2_i32 : i32
    %c0_i32 = arith.constant 0 : i32
    %1 = arith.addi %0, %c0_i32 : i32
    %c66_i32 = arith.constant 66 : i32
    %2 = arith.muli %1, %c66_i32 : i32
    %c0 = arith.constant 0 : index
    %c0_0 = arith.constant 0 : index
    %c0_1 = arith.constant 0 : index
    %3 = vector.load %arg3[%c0, %c0_0, %c0_1] : memref<2x8x160xf32, #tpu.memory_space<vmem>>, vector<1x8x160xf32>
    %4 = vector.shape_cast %3 : vector<1x8x160xf32> to vector<8x160xf32>
    %c0_2 = arith.constant 0 : index
    %c0_3 = arith.constant 0 : index
    %c0_4 = arith.constant 0 : index
    %5 = vector.load %arg5[%c0_2, %c0_3, %c0_4] : memref<2x8x256xf32, #tpu.memory_space<vmem>>, vector<1x8x160xf32>
    %6 = vector.shape_cast %5 : vector<1x8x160xf32> to vector<8x160xf32>
    %7 = vector.shape_cast %4 : vector<8x160xf32> to vector<1x8x160xf32>
    tpu.vector_store %arg5[%c0_2, %c0_3, %c0_4], %7 {strides = array<i32>} : memref<2x8x256xf32, #tpu.memory_space<vmem>>, vector<1x8x160xf32>,
    %c0_5 = arith.constant 0 : index
    %c0_6 = arith.constant 0 : index
    %c0_7 = arith.constant 0 : index
    %8 = vector.load %arg5[%c0_5, %c0_6, %c0_7] : memref<2x8x256xf32, #tpu.memory_space<vmem>>, vector<1x8x128xf32>
    %9 = vector.shape_cast %8 : vector<1x8x128xf32> to vector<8x128xf32>
    %c0_i32_8 = arith.constant 0 : i32
    %10 = arith.addi %2, %c0_i32_8 : i32
    %c0_i32_9 = arith.constant 0 : i32
    %11 = arith.addi %10, %c0_i32_9 : i32
    %12 = arith.index_cast %11 : i32 to index
    %13 = memref.load %arg2[%12] : memref<264xf32, #tpu.memory_space<smem>>
    %14 = vector.broadcast %13 : f32 to vector<8x128xf32>
    %15 = arith.mulf %9, %14 : vector<8x128xf32>
    %c33_i32 = arith.constant 33 : i32
    %16 = arith.addi %2, %c33_i32 : i32
    %c0_i32_10 = arith.constant 0 : i32
    %17 = arith.addi %16, %c0_i32_10 : i32
    %18 = arith.index_cast %17 : i32 to index
    %19 = memref.load %arg2[%18] : memref<264xf32, #tpu.memory_space<smem>>
    %20 = vector.broadcast %19 : f32 to vector<8x128xf32>
    %21 = arith.mulf %9, %20 : vector<8x128xf32>
    %c0_11 = arith.constant 0 : index
    %c0_12 = arith.constant 0 : index
    %c1 = arith.constant 1 : index
    %22 = vector.load %arg5[%c0_11, %c0_12, %c1] : memref<2x8x256xf32, #tpu.memory_space<vmem>>, vector<1x8x128xf32>
    %23 = vector.shape_cast %22 : vector<1x8x128xf32> to vector<8x128xf32>
    %c0_i32_13 = arith.constant 0 : i32
    %24 = arith.addi %2, %c0_i32_13 : i32
    %c1_i32 = arith.constant 1 : i32
    %25 = arith.addi %24, %c1_i32 : i32
    %26 = arith.index_cast %25 : i32 to index
    %27 = memref.load %arg2[%26] : memref<264xf32, #tpu.memory_space<smem>>
    %28 = vector.broadcast %27 : f32 to vector<8x128xf32>
    %29 = arith.mulf %23, %28 : vector<8x128xf32>
    %30 = arith.addf %15, %29 : vector<8x128xf32>
    %c33_i32_14 = arith.constant 33 : i32
    %31 = arith.addi %2, %c33_i32_14 : i32
    %c1_i32_15 = arith.constant 1 : i32
    %32 = arith.addi %31, %c1_i32_15 : i32
    %33 = arith.index_cast %32 : i32 to index
    %34 = memref.load %arg2[%33] : memref<264xf32, #tpu.memory_space<smem>>
    %35 = vector.broadcast %34 : f32 to vector<8x128xf32>
    %36 = arith.mulf %23, %35 : vector<8x128xf32>
    %37 = arith.addf %21, %36 : vector<8x128xf32>
    %c0_16 = arith.constant 0 : index
    %c0_17 = arith.constant 0 : index
    %c2 = arith.constant 2 : index
    %38 = vector.load %arg5[%c0_16, %c0_17, %c2] : memref<2x8x256xf32, #tpu.memory_space<vmem>>, vector<1x8x128xf32>
    %39 = vector.shape_cast %38 : vector<1x8x128xf32> to vector<8x128xf32>
    %c0_i32_18 = arith.constant 0 : i32
    %40 = arith.addi %2, %c0_i32_18 : i32
    %c2_i32_19 = arith.constant 2 : i32
    %41 = arith.addi %40, %c2_i32_19 : i32
    %42 = arith.index_cast %41 : i32 to index
    %43 = memref.load %arg2[%42] : memref<264xf32, #tpu.memory_space<smem>>
    %44 = vector.broadcast %43 : f32 to vector<8x128xf32>
    %45 = arith.mulf %39, %44 : vector<8x128xf32>
    %46 = arith.addf %30, %45 : vector<8x128xf32>
    %c33_i32_20 = arith.constant 33 : i32
    %47 = arith.addi %2, %c33_i32_20 : i32
    %c2_i32_21 = arith.constant 2 : i32
    %48 = arith.addi %47, %c2_i32_21 : i32
    %49 = arith.index_cast %48 : i32 to index
    %50 = memref.load %arg2[%49] : memref<264xf32, #tpu.memory_space<smem>>
    %51 = vector.broadcast %50 : f32 to vector<8x128xf32>
    %52 = arith.mulf %39, %51 : vector<8x128xf32>
    %53 = arith.addf %37, %52 : vector<8x128xf32>
    %c0_22 = arith.constant 0 : index
    %c0_23 = arith.constant 0 : index
    %c3 = arith.constant 3 : index
    %54 = vector.load %arg5[%c0_22, %c0_23, %c3] : memref<2x8x256xf32, #tpu.memory_space<vmem>>, vector<1x8x128xf32>
    %55 = vector.shape_cast %54 : vector<1x8x128xf32> to vector<8x128xf32>
    %c0_i32_24 = arith.constant 0 : i32
    %56 = arith.addi %2, %c0_i32_24 : i32
    %c3_i32 = arith.constant 3 : i32
    %57 = arith.addi %56, %c3_i32 : i32
    %58 = arith.index_cast %57 : i32 to index
    %59 = memref.load %arg2[%58] : memref<264xf32, #tpu.memory_space<smem>>
    %60 = vector.broadcast %59 : f32 to vector<8x128xf32>
    %61 = arith.mulf %55, %60 : vector<8x128xf32>
    %62 = arith.addf %46, %61 : vector<8x128xf32>
    %c33_i32_25 = arith.constant 33 : i32
    %63 = arith.addi %2, %c33_i32_25 : i32
    %c3_i32_26 = arith.constant 3 : i32
    %64 = arith.addi %63, %c3_i32_26 : i32
    %65 = arith.index_cast %64 : i32 to index
    %66 = memref.load %arg2[%65] : memref<264xf32, #tpu.memory_space<smem>>
    %67 = vector.broadcast %66 : f32 to vector<8x128xf32>
    %68 = arith.mulf %55, %67 : vector<8x128xf32>
    %69 = arith.addf %53, %68 : vector<8x128xf32>
    %c0_27 = arith.constant 0 : index
    %c0_28 = arith.constant 0 : index
    %c4 = arith.constant 4 : index
    %70 = vector.load %arg5[%c0_27, %c0_28, %c4] : memref<2x8x256xf32, #tpu.memory_space<vmem>>, vector<1x8x128xf32>
    %71 = vector.shape_cast %70 : vector<1x8x128xf32> to vector<8x128xf32>
    %c0_i32_29 = arith.constant 0 : i32
    %72 = arith.addi %2, %c0_i32_29 : i32
    %c4_i32 = arith.constant 4 : i32
    %73 = arith.addi %72, %c4_i32 : i32
    %74 = arith.index_cast %73 : i32 to index
    %75 = memref.load %arg2[%74] : memref<264xf32, #tpu.memory_space<smem>>
    %76 = vector.broadcast %75 : f32 to vector<8x128xf32>
    %77 = arith.mulf %71, %76 : vector<8x128xf32>
    %78 = arith.addf %62, %77 : vector<8x128xf32>
    %c33_i32_30 = arith.constant 33 : i32
    %79 = arith.addi %2, %c33_i32_30 : i32
    %c4_i32_31 = arith.constant 4 : i32
    %80 = arith.addi %79, %c4_i32_31 : i32
    %81 = arith.index_cast %80 : i32 to index
    %82 = memref.load %arg2[%81] : memref<264xf32, #tpu.memory_space<smem>>
    %83 = vector.broadcast %82 : f32 to vector<8x128xf32>
    %84 = arith.mulf %71, %83 : vector<8x128xf32>
    %85 = arith.addf %69, %84 : vector<8x128xf32>
    %c0_32 = arith.constant 0 : index
    %c0_33 = arith.constant 0 : index
    %c5 = arith.constant 5 : index
    %86 = vector.load %arg5[%c0_32, %c0_33, %c5] : memref<2x8x256xf32, #tpu.memory_space<vmem>>, vector<1x8x128xf32>
    %87 = vector.shape_cast %86 : vector<1x8x128xf32> to vector<8x128xf32>
    %c0_i32_34 = arith.constant 0 : i32
    %88 = arith.addi %2, %c0_i32_34 : i32
    %c5_i32 = arith.constant 5 : i32
    %89 = arith.addi %88, %c5_i32 : i32
    %90 = arith.index_cast %89 : i32 to index
    %91 = memref.load %arg2[%90] : memref<264xf32, #tpu.memory_space<smem>>
    %92 = vector.broadcast %91 : f32 to vector<8x128xf32>
    %93 = arith.mulf %87, %92 : vector<8x128xf32>
    %94 = arith.addf %78, %93 : vector<8x128xf32>
    %c33_i32_35 = arith.constant 33 : i32
    %95 = arith.addi %2, %c33_i32_35 : i32
    %c5_i32_36 = arith.constant 5 : i32
    %96 = arith.addi %95, %c5_i32_36 : i32
    %97 = arith.index_cast %96 : i32 to index
    %98 = memref.load %arg2[%97] : memref<264xf32, #tpu.memory_space<smem>>
    %99 = vector.broadcast %98 : f32 to vector<8x128xf32>
    %100 = arith.mulf %87, %99 : vector<8x128xf32>
    %101 = arith.addf %85, %100 : vector<8x128xf32>
    %c0_37 = arith.constant 0 : index
    %c0_38 = arith.constant 0 : index
    %c6 = arith.constant 6 : index
    %102 = vector.load %arg5[%c0_37, %c0_38, %c6] : memref<2x8x256xf32, #tpu.memory_space<vmem>>, vector<1x8x128xf32>
    %103 = vector.shape_cast %102 : vector<1x8x128xf32> to vector<8x128xf32>
    %c0_i32_39 = arith.constant 0 : i32
    %104 = arith.addi %2, %c0_i32_39 : i32
    %c6_i32 = arith.constant 6 : i32
    %105 = arith.addi %104, %c6_i32 : i32
    %106 = arith.index_cast %105 : i32 to index
    %107 = memref.load %arg2[%106] : memref<264xf32, #tpu.memory_space<smem>>
    %108 = vector.broadcast %107 : f32 to vector<8x128xf32>
    %109 = arith.mulf %103, %108 : vector<8x128xf32>
    %110 = arith.addf %94, %109 : vector<8x128xf32>
    %c33_i32_40 = arith.constant 33 : i32
    %111 = arith.addi %2, %c33_i32_40 : i32
    %c6_i32_41 = arith.constant 6 : i32
    %112 = arith.addi %111, %c6_i32_41 : i32
    %113 = arith.index_cast %112 : i32 to index
    %114 = memref.load %arg2[%113] : memref<264xf32, #tpu.memory_space<smem>>
    %115 = vector.broadcast %114 : f32 to vector<8x128xf32>
    %116 = arith.mulf %103, %115 : vector<8x128xf32>
    %117 = arith.addf %101, %116 : vector<8x128xf32>
    %c0_42 = arith.constant 0 : index
    %c0_43 = arith.constant 0 : index
    %c7 = arith.constant 7 : index
    %118 = vector.load %arg5[%c0_42, %c0_43, %c7] : memref<2x8x256xf32, #tpu.memory_space<vmem>>, vector<1x8x128xf32>
    %119 = vector.shape_cast %118 : vector<1x8x128xf32> to vector<8x128xf32>
    %c0_i32_44 = arith.constant 0 : i32
    %120 = arith.addi %2, %c0_i32_44 : i32
    %c7_i32 = arith.constant 7 : i32
    %121 = arith.addi %120, %c7_i32 : i32
    %122 = arith.index_cast %121 : i32 to index
    %123 = memref.load %arg2[%122] : memref<264xf32, #tpu.memory_space<smem>>
    %124 = vector.broadcast %123 : f32 to vector<8x128xf32>
    %125 = arith.mulf %119, %124 : vector<8x128xf32>
    %126 = arith.addf %110, %125 : vector<8x128xf32>
    %c33_i32_45 = arith.constant 33 : i32
    %127 = arith.addi %2, %c33_i32_45 : i32
    %c7_i32_46 = arith.constant 7 : i32
    %128 = arith.addi %127, %c7_i32_46 : i32
    %129 = arith.index_cast %128 : i32 to index
    %130 = memref.load %arg2[%129] : memref<264xf32, #tpu.memory_space<smem>>
    %131 = vector.broadcast %130 : f32 to vector<8x128xf32>
    %132 = arith.mulf %119, %131 : vector<8x128xf32>
    %133 = arith.addf %117, %132 : vector<8x128xf32>
    %c0_47 = arith.constant 0 : index
    %c0_48 = arith.constant 0 : index
    %c8 = arith.constant 8 : index
    %134 = vector.load %arg5[%c0_47, %c0_48, %c8] : memref<2x8x256xf32, #tpu.memory_space<vmem>>, vector<1x8x128xf32>
    %135 = vector.shape_cast %134 : vector<1x8x128xf32> to vector<8x128xf32>
    %c0_i32_49 = arith.constant 0 : i32
    %136 = arith.addi %2, %c0_i32_49 : i32
    %c8_i32 = arith.constant 8 : i32
    %137 = arith.addi %136, %c8_i32 : i32
    %138 = arith.index_cast %137 : i32 to index
    %139 = memref.load %arg2[%138] : memref<264xf32, #tpu.memory_space<smem>>
    %140 = vector.broadcast %139 : f32 to vector<8x128xf32>
    %141 = arith.mulf %135, %140 : vector<8x128xf32>
    %142 = arith.addf %126, %141 : vector<8x128xf32>
    %c33_i32_50 = arith.constant 33 : i32
    %143 = arith.addi %2, %c33_i32_50 : i32
    %c8_i32_51 = arith.constant 8 : i32
    %144 = arith.addi %143, %c8_i32_51 : i32
    %145 = arith.index_cast %144 : i32 to index
    %146 = memref.load %arg2[%145] : memref<264xf32, #tpu.memory_space<smem>>
    %147 = vector.broadcast %146 : f32 to vector<8x128xf32>
    %148 = arith.mulf %135, %147 : vector<8x128xf32>
    %149 = arith.addf %133, %148 : vector<8x128xf32>
    %c0_52 = arith.constant 0 : index
    %c0_53 = arith.constant 0 : index
    %c9 = arith.constant 9 : index
    %150 = vector.load %arg5[%c0_52, %c0_53, %c9] : memref<2x8x256xf32, #tpu.memory_space<vmem>>, vector<1x8x128xf32>
    %151 = vector.shape_cast %150 : vector<1x8x128xf32> to vector<8x128xf32>
    %c0_i32_54 = arith.constant 0 : i32
    %152 = arith.addi %2, %c0_i32_54 : i32
    %c9_i32 = arith.constant 9 : i32
    %153 = arith.addi %152, %c9_i32 : i32
    %154 = arith.index_cast %153 : i32 to index
    %155 = memref.load %arg2[%154] : memref<264xf32, #tpu.memory_space<smem>>
    %156 = vector.broadcast %155 : f32 to vector<8x128xf32>
    %157 = arith.mulf %151, %156 : vector<8x128xf32>
    %158 = arith.addf %142, %157 : vector<8x128xf32>
    %c33_i32_55 = arith.constant 33 : i32
    %159 = arith.addi %2, %c33_i32_55 : i32
    %c9_i32_56 = arith.constant 9 : i32
    %160 = arith.addi %159, %c9_i32_56 : i32
    %161 = arith.index_cast %160 : i32 to index
    %162 = memref.load %arg2[%161] : memref<264xf32, #tpu.memory_space<smem>>
    %163 = vector.broadcast %162 : f32 to vector<8x128xf32>
    %164 = arith.mulf %151, %163 : vector<8x128xf32>
    %165 = arith.addf %149, %164 : vector<8x128xf32>
    %c0_57 = arith.constant 0 : index
    %c0_58 = arith.constant 0 : index
    %c10 = arith.constant 10 : index
    %166 = vector.load %arg5[%c0_57, %c0_58, %c10] : memref<2x8x256xf32, #tpu.memory_space<vmem>>, vector<1x8x128xf32>
    %167 = vector.shape_cast %166 : vector<1x8x128xf32> to vector<8x128xf32>
    %c0_i32_59 = arith.constant 0 : i32
    %168 = arith.addi %2, %c0_i32_59 : i32
    %c10_i32 = arith.constant 10 : i32
    %169 = arith.addi %168, %c10_i32 : i32
    %170 = arith.index_cast %169 : i32 to index
    %171 = memref.load %arg2[%170] : memref<264xf32, #tpu.memory_space<smem>>
    %172 = vector.broadcast %171 : f32 to vector<8x128xf32>
    %173 = arith.mulf %167, %172 : vector<8x128xf32>
    %174 = arith.addf %158, %173 : vector<8x128xf32>
    %c33_i32_60 = arith.constant 33 : i32
    %175 = arith.addi %2, %c33_i32_60 : i32
    %c10_i32_61 = arith.constant 10 : i32
    %176 = arith.addi %175, %c10_i32_61 : i32
    %177 = arith.index_cast %176 : i32 to index
    %178 = memref.load %arg2[%177] : memref<264xf32, #tpu.memory_space<smem>>
    %179 = vector.broadcast %178 : f32 to vector<8x128xf32>
    %180 = arith.mulf %167, %179 : vector<8x128xf32>
    %181 = arith.addf %165, %180 : vector<8x128xf32>
    %c0_62 = arith.constant 0 : index
    %c0_63 = arith.constant 0 : index
    %c11 = arith.constant 11 : index
    %182 = vector.load %arg5[%c0_62, %c0_63, %c11] : memref<2x8x256xf32, #tpu.memory_space<vmem>>, vector<1x8x128xf32>
    %183 = vector.shape_cast %182 : vector<1x8x128xf32> to vector<8x128xf32>
    %c0_i32_64 = arith.constant 0 : i32
    %184 = arith.addi %2, %c0_i32_64 : i32
    %c11_i32 = arith.constant 11 : i32
    %185 = arith.addi %184, %c11_i32 : i32
    %186 = arith.index_cast %185 : i32 to index
    %187 = memref.load %arg2[%186] : memref<264xf32, #tpu.memory_space<smem>>
    %188 = vector.broadcast %187 : f32 to vector<8x128xf32>
    %189 = arith.mulf %183, %188 : vector<8x128xf32>
    %190 = arith.addf %174, %189 : vector<8x128xf32>
    %c33_i32_65 = arith.constant 33 : i32
    %191 = arith.addi %2, %c33_i32_65 : i32
    %c11_i32_66 = arith.constant 11 : i32
    %192 = arith.addi %191, %c11_i32_66 : i32
    %193 = arith.index_cast %192 : i32 to index
    %194 = memref.load %arg2[%193] : memref<264xf32, #tpu.memory_space<smem>>
    %195 = vector.broadcast %194 : f32 to vector<8x128xf32>
    %196 = arith.mulf %183, %195 : vector<8x128xf32>
    %197 = arith.addf %181, %196 : vector<8x128xf32>
    %c0_67 = arith.constant 0 : index
    %c0_68 = arith.constant 0 : index
    %c12 = arith.constant 12 : index
    %198 = vector.load %arg5[%c0_67, %c0_68, %c12] : memref<2x8x256xf32, #tpu.memory_space<vmem>>, vector<1x8x128xf32>
    %199 = vector.shape_cast %198 : vector<1x8x128xf32> to vector<8x128xf32>
    %c0_i32_69 = arith.constant 0 : i32
    %200 = arith.addi %2, %c0_i32_69 : i32
    %c12_i32 = arith.constant 12 : i32
    %201 = arith.addi %200, %c12_i32 : i32
    %202 = arith.index_cast %201 : i32 to index
    %203 = memref.load %arg2[%202] : memref<264xf32, #tpu.memory_space<smem>>
    %204 = vector.broadcast %203 : f32 to vector<8x128xf32>
    %205 = arith.mulf %199, %204 : vector<8x128xf32>
    %206 = arith.addf %190, %205 : vector<8x128xf32>
    %c33_i32_70 = arith.constant 33 : i32
    %207 = arith.addi %2, %c33_i32_70 : i32
    %c12_i32_71 = arith.constant 12 : i32
    %208 = arith.addi %207, %c12_i32_71 : i32
    %209 = arith.index_cast %208 : i32 to index
    %210 = memref.load %arg2[%209] : memref<264xf32, #tpu.memory_space<smem>>
    %211 = vector.broadcast %210 : f32 to vector<8x128xf32>
    %212 = arith.mulf %199, %211 : vector<8x128xf32>
    %213 = arith.addf %197, %212 : vector<8x128xf32>
    %c0_72 = arith.constant 0 : index
    %c0_73 = arith.constant 0 : index
    %c13 = arith.constant 13 : index
    %214 = vector.load %arg5[%c0_72, %c0_73, %c13] : memref<2x8x256xf32, #tpu.memory_space<vmem>>, vector<1x8x128xf32>
    %215 = vector.shape_cast %214 : vector<1x8x128xf32> to vector<8x128xf32>
    %c0_i32_74 = arith.constant 0 : i32
    %216 = arith.addi %2, %c0_i32_74 : i32
    %c13_i32 = arith.constant 13 : i32
    %217 = arith.addi %216, %c13_i32 : i32
    %218 = arith.index_cast %217 : i32 to index
    %219 = memref.load %arg2[%218] : memref<264xf32, #tpu.memory_space<smem>>
    %220 = vector.broadcast %219 : f32 to vector<8x128xf32>
    %221 = arith.mulf %215, %220 : vector<8x128xf32>
    %222 = arith.addf %206, %221 : vector<8x128xf32>
    %c33_i32_75 = arith.constant 33 : i32
    %223 = arith.addi %2, %c33_i32_75 : i32
    %c13_i32_76 = arith.constant 13 : i32
    %224 = arith.addi %223, %c13_i32_76 : i32
    %225 = arith.index_cast %224 : i32 to index
    %226 = memref.load %arg2[%225] : memref<264xf32, #tpu.memory_space<smem>>
    %227 = vector.broadcast %226 : f32 to vector<8x128xf32>
    %228 = arith.mulf %215, %227 : vector<8x128xf32>
    %229 = arith.addf %213, %228 : vector<8x128xf32>
    %c0_77 = arith.constant 0 : index
    %c0_78 = arith.constant 0 : index
    %c14 = arith.constant 14 : index
    %230 = vector.load %arg5[%c0_77, %c0_78, %c14] : memref<2x8x256xf32, #tpu.memory_space<vmem>>, vector<1x8x128xf32>
    %231 = vector.shape_cast %230 : vector<1x8x128xf32> to vector<8x128xf32>
    %c0_i32_79 = arith.constant 0 : i32
    %232 = arith.addi %2, %c0_i32_79 : i32
    %c14_i32 = arith.constant 14 : i32
    %233 = arith.addi %232, %c14_i32 : i32
    %234 = arith.index_cast %233 : i32 to index
    %235 = memref.load %arg2[%234] : memref<264xf32, #tpu.memory_space<smem>>
    %236 = vector.broadcast %235 : f32 to vector<8x128xf32>
    %237 = arith.mulf %231, %236 : vector<8x128xf32>
    %238 = arith.addf %222, %237 : vector<8x128xf32>
    %c33_i32_80 = arith.constant 33 : i32
    %239 = arith.addi %2, %c33_i32_80 : i32
    %c14_i32_81 = arith.constant 14 : i32
    %240 = arith.addi %239, %c14_i32_81 : i32
    %241 = arith.index_cast %240 : i32 to index
    %242 = memref.load %arg2[%241] : memref<264xf32, #tpu.memory_space<smem>>
    %243 = vector.broadcast %242 : f32 to vector<8x128xf32>
    %244 = arith.mulf %231, %243 : vector<8x128xf32>
    %245 = arith.addf %229, %244 : vector<8x128xf32>
    %c0_82 = arith.constant 0 : index
    %c0_83 = arith.constant 0 : index
    %c15 = arith.constant 15 : index
    %246 = vector.load %arg5[%c0_82, %c0_83, %c15] : memref<2x8x256xf32, #tpu.memory_space<vmem>>, vector<1x8x128xf32>
    %247 = vector.shape_cast %246 : vector<1x8x128xf32> to vector<8x128xf32>
    %c0_i32_84 = arith.constant 0 : i32
    %248 = arith.addi %2, %c0_i32_84 : i32
    %c15_i32 = arith.constant 15 : i32
    %249 = arith.addi %248, %c15_i32 : i32
    %250 = arith.index_cast %249 : i32 to index
    %251 = memref.load %arg2[%250] : memref<264xf32, #tpu.memory_space<smem>>
    %252 = vector.broadcast %251 : f32 to vector<8x128xf32>
    %253 = arith.mulf %247, %252 : vector<8x128xf32>
    %254 = arith.addf %238, %253 : vector<8x128xf32>
    %c33_i32_85 = arith.constant 33 : i32
    %255 = arith.addi %2, %c33_i32_85 : i32
    %c15_i32_86 = arith.constant 15 : i32
    %256 = arith.addi %255, %c15_i32_86 : i32
    %257 = arith.index_cast %256 : i32 to index
    %258 = memref.load %arg2[%257] : memref<264xf32, #tpu.memory_space<smem>>
    %259 = vector.broadcast %258 : f32 to vector<8x128xf32>
    %260 = arith.mulf %247, %259 : vector<8x128xf32>
    %261 = arith.addf %245, %260 : vector<8x128xf32>
    %c0_87 = arith.constant 0 : index
    %c0_88 = arith.constant 0 : index
    %c16 = arith.constant 16 : index
    %262 = vector.load %arg5[%c0_87, %c0_88, %c16] : memref<2x8x256xf32, #tpu.memory_space<vmem>>, vector<1x8x128xf32>
    %263 = vector.shape_cast %262 : vector<1x8x128xf32> to vector<8x128xf32>
    %c0_i32_89 = arith.constant 0 : i32
    %264 = arith.addi %2, %c0_i32_89 : i32
    %c16_i32 = arith.constant 16 : i32
    %265 = arith.addi %264, %c16_i32 : i32
    %266 = arith.index_cast %265 : i32 to index
    %267 = memref.load %arg2[%266] : memref<264xf32, #tpu.memory_space<smem>>
    %268 = vector.broadcast %267 : f32 to vector<8x128xf32>
    %269 = arith.mulf %263, %268 : vector<8x128xf32>
    %270 = arith.addf %254, %269 : vector<8x128xf32>
    %c33_i32_90 = arith.constant 33 : i32
    %271 = arith.addi %2, %c33_i32_90 : i32
    %c16_i32_91 = arith.constant 16 : i32
    %272 = arith.addi %271, %c16_i32_91 : i32
    %273 = arith.index_cast %272 : i32 to index
    %274 = memref.load %arg2[%273] : memref<264xf32, #tpu.memory_space<smem>>
    %275 = vector.broadcast %274 : f32 to vector<8x128xf32>
    %276 = arith.mulf %263, %275 : vector<8x128xf32>
    %277 = arith.addf %261, %276 : vector<8x128xf32>
    %c0_92 = arith.constant 0 : index
    %c0_93 = arith.constant 0 : index
    %c17 = arith.constant 17 : index
    %278 = vector.load %arg5[%c0_92, %c0_93, %c17] : memref<2x8x256xf32, #tpu.memory_space<vmem>>, vector<1x8x128xf32>
    %279 = vector.shape_cast %278 : vector<1x8x128xf32> to vector<8x128xf32>
    %c0_i32_94 = arith.constant 0 : i32
    %280 = arith.addi %2, %c0_i32_94 : i32
    %c17_i32 = arith.constant 17 : i32
    %281 = arith.addi %280, %c17_i32 : i32
    %282 = arith.index_cast %281 : i32 to index
    %283 = memref.load %arg2[%282] : memref<264xf32, #tpu.memory_space<smem>>
    %284 = vector.broadcast %283 : f32 to vector<8x128xf32>
    %285 = arith.mulf %279, %284 : vector<8x128xf32>
    %286 = arith.addf %270, %285 : vector<8x128xf32>
    %c33_i32_95 = arith.constant 33 : i32
    %287 = arith.addi %2, %c33_i32_95 : i32
    %c17_i32_96 = arith.constant 17 : i32
    %288 = arith.addi %287, %c17_i32_96 : i32
    %289 = arith.index_cast %288 : i32 to index
    %290 = memref.load %arg2[%289] : memref<264xf32, #tpu.memory_space<smem>>
    %291 = vector.broadcast %290 : f32 to vector<8x128xf32>
    %292 = arith.mulf %279, %291 : vector<8x128xf32>
    %293 = arith.addf %277, %292 : vector<8x128xf32>
    %c0_97 = arith.constant 0 : index
    %c0_98 = arith.constant 0 : index
    %c18 = arith.constant 18 : index
    %294 = vector.load %arg5[%c0_97, %c0_98, %c18] : memref<2x8x256xf32, #tpu.memory_space<vmem>>, vector<1x8x128xf32>
    %295 = vector.shape_cast %294 : vector<1x8x128xf32> to vector<8x128xf32>
    %c0_i32_99 = arith.constant 0 : i32
    %296 = arith.addi %2, %c0_i32_99 : i32
    %c18_i32 = arith.constant 18 : i32
    %297 = arith.addi %296, %c18_i32 : i32
    %298 = arith.index_cast %297 : i32 to index
    %299 = memref.load %arg2[%298] : memref<264xf32, #tpu.memory_space<smem>>
    %300 = vector.broadcast %299 : f32 to vector<8x128xf32>
    %301 = arith.mulf %295, %300 : vector<8x128xf32>
    %302 = arith.addf %286, %301 : vector<8x128xf32>
    %c33_i32_100 = arith.constant 33 : i32
    %303 = arith.addi %2, %c33_i32_100 : i32
    %c18_i32_101 = arith.constant 18 : i32
    %304 = arith.addi %303, %c18_i32_101 : i32
    %305 = arith.index_cast %304 : i32 to index
    %306 = memref.load %arg2[%305] : memref<264xf32, #tpu.memory_space<smem>>
    %307 = vector.broadcast %306 : f32 to vector<8x128xf32>
    %308 = arith.mulf %295, %307 : vector<8x128xf32>
    %309 = arith.addf %293, %308 : vector<8x128xf32>
    %c0_102 = arith.constant 0 : index
    %c0_103 = arith.constant 0 : index
    %c19 = arith.constant 19 : index
    %310 = vector.load %arg5[%c0_102, %c0_103, %c19] : memref<2x8x256xf32, #tpu.memory_space<vmem>>, vector<1x8x128xf32>
    %311 = vector.shape_cast %310 : vector<1x8x128xf32> to vector<8x128xf32>
    %c0_i32_104 = arith.constant 0 : i32
    %312 = arith.addi %2, %c0_i32_104 : i32
    %c19_i32 = arith.constant 19 : i32
    %313 = arith.addi %312, %c19_i32 : i32
    %314 = arith.index_cast %313 : i32 to index
    %315 = memref.load %arg2[%314] : memref<264xf32, #tpu.memory_space<smem>>
    %316 = vector.broadcast %315 : f32 to vector<8x128xf32>
    %317 = arith.mulf %311, %316 : vector<8x128xf32>
    %318 = arith.addf %302, %317 : vector<8x128xf32>
    %c33_i32_105 = arith.constant 33 : i32
    %319 = arith.addi %2, %c33_i32_105 : i32
    %c19_i32_106 = arith.constant 19 : i32
    %320 = arith.addi %319, %c19_i32_106 : i32
    %321 = arith.index_cast %320 : i32 to index
    %322 = memref.load %arg2[%321] : memref<264xf32, #tpu.memory_space<smem>>
    %323 = vector.broadcast %322 : f32 to vector<8x128xf32>
    %324 = arith.mulf %311, %323 : vector<8x128xf32>
    %325 = arith.addf %309, %324 : vector<8x128xf32>
    %c0_107 = arith.constant 0 : index
    %c0_108 = arith.constant 0 : index
    %c20 = arith.constant 20 : index
    %326 = vector.load %arg5[%c0_107, %c0_108, %c20] : memref<2x8x256xf32, #tpu.memory_space<vmem>>, vector<1x8x128xf32>
    %327 = vector.shape_cast %326 : vector<1x8x128xf32> to vector<8x128xf32>
    %c0_i32_109 = arith.constant 0 : i32
    %328 = arith.addi %2, %c0_i32_109 : i32
    %c20_i32 = arith.constant 20 : i32
    %329 = arith.addi %328, %c20_i32 : i32
    %330 = arith.index_cast %329 : i32 to index
    %331 = memref.load %arg2[%330] : memref<264xf32, #tpu.memory_space<smem>>
    %332 = vector.broadcast %331 : f32 to vector<8x128xf32>
    %333 = arith.mulf %327, %332 : vector<8x128xf32>
    %334 = arith.addf %318, %333 : vector<8x128xf32>
    %c33_i32_110 = arith.constant 33 : i32
    %335 = arith.addi %2, %c33_i32_110 : i32
    %c20_i32_111 = arith.constant 20 : i32
    %336 = arith.addi %335, %c20_i32_111 : i32
    %337 = arith.index_cast %336 : i32 to index
    %338 = memref.load %arg2[%337] : memref<264xf32, #tpu.memory_space<smem>>
    %339 = vector.broadcast %338 : f32 to vector<8x128xf32>
    %340 = arith.mulf %327, %339 : vector<8x128xf32>
    %341 = arith.addf %325, %340 : vector<8x128xf32>
    %c0_112 = arith.constant 0 : index
    %c0_113 = arith.constant 0 : index
    %c21 = arith.constant 21 : index
    %342 = vector.load %arg5[%c0_112, %c0_113, %c21] : memref<2x8x256xf32, #tpu.memory_space<vmem>>, vector<1x8x128xf32>
    %343 = vector.shape_cast %342 : vector<1x8x128xf32> to vector<8x128xf32>
    %c0_i32_114 = arith.constant 0 : i32
    %344 = arith.addi %2, %c0_i32_114 : i32
    %c21_i32 = arith.constant 21 : i32
    %345 = arith.addi %344, %c21_i32 : i32
    %346 = arith.index_cast %345 : i32 to index
    %347 = memref.load %arg2[%346] : memref<264xf32, #tpu.memory_space<smem>>
    %348 = vector.broadcast %347 : f32 to vector<8x128xf32>
    %349 = arith.mulf %343, %348 : vector<8x128xf32>
    %350 = arith.addf %334, %349 : vector<8x128xf32>
    %c33_i32_115 = arith.constant 33 : i32
    %351 = arith.addi %2, %c33_i32_115 : i32
    %c21_i32_116 = arith.constant 21 : i32
    %352 = arith.addi %351, %c21_i32_116 : i32
    %353 = arith.index_cast %352 : i32 to index
    %354 = memref.load %arg2[%353] : memref<264xf32, #tpu.memory_space<smem>>
    %355 = vector.broadcast %354 : f32 to vector<8x128xf32>
    %356 = arith.mulf %343, %355 : vector<8x128xf32>
    %357 = arith.addf %341, %356 : vector<8x128xf32>
    %c0_117 = arith.constant 0 : index
    %c0_118 = arith.constant 0 : index
    %c22 = arith.constant 22 : index
    %358 = vector.load %arg5[%c0_117, %c0_118, %c22] : memref<2x8x256xf32, #tpu.memory_space<vmem>>, vector<1x8x128xf32>
    %359 = vector.shape_cast %358 : vector<1x8x128xf32> to vector<8x128xf32>
    %c0_i32_119 = arith.constant 0 : i32
    %360 = arith.addi %2, %c0_i32_119 : i32
    %c22_i32 = arith.constant 22 : i32
    %361 = arith.addi %360, %c22_i32 : i32
    %362 = arith.index_cast %361 : i32 to index
    %363 = memref.load %arg2[%362] : memref<264xf32, #tpu.memory_space<smem>>
    %364 = vector.broadcast %363 : f32 to vector<8x128xf32>
    %365 = arith.mulf %359, %364 : vector<8x128xf32>
    %366 = arith.addf %350, %365 : vector<8x128xf32>
    %c33_i32_120 = arith.constant 33 : i32
    %367 = arith.addi %2, %c33_i32_120 : i32
    %c22_i32_121 = arith.constant 22 : i32
    %368 = arith.addi %367, %c22_i32_121 : i32
    %369 = arith.index_cast %368 : i32 to index
    %370 = memref.load %arg2[%369] : memref<264xf32, #tpu.memory_space<smem>>
    %371 = vector.broadcast %370 : f32 to vector<8x128xf32>
    %372 = arith.mulf %359, %371 : vector<8x128xf32>
    %373 = arith.addf %357, %372 : vector<8x128xf32>
    %c0_122 = arith.constant 0 : index
    %c0_123 = arith.constant 0 : index
    %c23 = arith.constant 23 : index
    %374 = vector.load %arg5[%c0_122, %c0_123, %c23] : memref<2x8x256xf32, #tpu.memory_space<vmem>>, vector<1x8x128xf32>
    %375 = vector.shape_cast %374 : vector<1x8x128xf32> to vector<8x128xf32>
    %c0_i32_124 = arith.constant 0 : i32
    %376 = arith.addi %2, %c0_i32_124 : i32
    %c23_i32 = arith.constant 23 : i32
    %377 = arith.addi %376, %c23_i32 : i32
    %378 = arith.index_cast %377 : i32 to index
    %379 = memref.load %arg2[%378] : memref<264xf32, #tpu.memory_space<smem>>
    %380 = vector.broadcast %379 : f32 to vector<8x128xf32>
    %381 = arith.mulf %375, %380 : vector<8x128xf32>
    %382 = arith.addf %366, %381 : vector<8x128xf32>
    %c33_i32_125 = arith.constant 33 : i32
    %383 = arith.addi %2, %c33_i32_125 : i32
    %c23_i32_126 = arith.constant 23 : i32
    %384 = arith.addi %383, %c23_i32_126 : i32
    %385 = arith.index_cast %384 : i32 to index
    %386 = memref.load %arg2[%385] : memref<264xf32, #tpu.memory_space<smem>>
    %387 = vector.broadcast %386 : f32 to vector<8x128xf32>
    %388 = arith.mulf %375, %387 : vector<8x128xf32>
    %389 = arith.addf %373, %388 : vector<8x128xf32>
    %c0_127 = arith.constant 0 : index
    %c0_128 = arith.constant 0 : index
    %c24 = arith.constant 24 : index
    %390 = vector.load %arg5[%c0_127, %c0_128, %c24] : memref<2x8x256xf32, #tpu.memory_space<vmem>>, vector<1x8x128xf32>
    %391 = vector.shape_cast %390 : vector<1x8x128xf32> to vector<8x128xf32>
    %c0_i32_129 = arith.constant 0 : i32
    %392 = arith.addi %2, %c0_i32_129 : i32
    %c24_i32 = arith.constant 24 : i32
    %393 = arith.addi %392, %c24_i32 : i32
    %394 = arith.index_cast %393 : i32 to index
    %395 = memref.load %arg2[%394] : memref<264xf32, #tpu.memory_space<smem>>
    %396 = vector.broadcast %395 : f32 to vector<8x128xf32>
    %397 = arith.mulf %391, %396 : vector<8x128xf32>
    %398 = arith.addf %382, %397 : vector<8x128xf32>
    %c33_i32_130 = arith.constant 33 : i32
    %399 = arith.addi %2, %c33_i32_130 : i32
    %c24_i32_131 = arith.constant 24 : i32
    %400 = arith.addi %399, %c24_i32_131 : i32
    %401 = arith.index_cast %400 : i32 to index
    %402 = memref.load %arg2[%401] : memref<264xf32, #tpu.memory_space<smem>>
    %403 = vector.broadcast %402 : f32 to vector<8x128xf32>
    %404 = arith.mulf %391, %403 : vector<8x128xf32>
    %405 = arith.addf %389, %404 : vector<8x128xf32>
    %c0_132 = arith.constant 0 : index
    %c0_133 = arith.constant 0 : index
    %c25 = arith.constant 25 : index
    %406 = vector.load %arg5[%c0_132, %c0_133, %c25] : memref<2x8x256xf32, #tpu.memory_space<vmem>>, vector<1x8x128xf32>
    %407 = vector.shape_cast %406 : vector<1x8x128xf32> to vector<8x128xf32>
    %c0_i32_134 = arith.constant 0 : i32
    %408 = arith.addi %2, %c0_i32_134 : i32
    %c25_i32 = arith.constant 25 : i32
    %409 = arith.addi %408, %c25_i32 : i32
    %410 = arith.index_cast %409 : i32 to index
    %411 = memref.load %arg2[%410] : memref<264xf32, #tpu.memory_space<smem>>
    %412 = vector.broadcast %411 : f32 to vector<8x128xf32>
    %413 = arith.mulf %407, %412 : vector<8x128xf32>
    %414 = arith.addf %398, %413 : vector<8x128xf32>
    %c33_i32_135 = arith.constant 33 : i32
    %415 = arith.addi %2, %c33_i32_135 : i32
    %c25_i32_136 = arith.constant 25 : i32
    %416 = arith.addi %415, %c25_i32_136 : i32
    %417 = arith.index_cast %416 : i32 to index
    %418 = memref.load %arg2[%417] : memref<264xf32, #tpu.memory_space<smem>>
    %419 = vector.broadcast %418 : f32 to vector<8x128xf32>
    %420 = arith.mulf %407, %419 : vector<8x128xf32>
    %421 = arith.addf %405, %420 : vector<8x128xf32>
    %c0_137 = arith.constant 0 : index
    %c0_138 = arith.constant 0 : index
    %c26 = arith.constant 26 : index
    %422 = vector.load %arg5[%c0_137, %c0_138, %c26] : memref<2x8x256xf32, #tpu.memory_space<vmem>>, vector<1x8x128xf32>
    %423 = vector.shape_cast %422 : vector<1x8x128xf32> to vector<8x128xf32>
    %c0_i32_139 = arith.constant 0 : i32
    %424 = arith.addi %2, %c0_i32_139 : i32
    %c26_i32 = arith.constant 26 : i32
    %425 = arith.addi %424, %c26_i32 : i32
    %426 = arith.index_cast %425 : i32 to index
    %427 = memref.load %arg2[%426] : memref<264xf32, #tpu.memory_space<smem>>
    %428 = vector.broadcast %427 : f32 to vector<8x128xf32>
    %429 = arith.mulf %423, %428 : vector<8x128xf32>
    %430 = arith.addf %414, %429 : vector<8x128xf32>
    %c33_i32_140 = arith.constant 33 : i32
    %431 = arith.addi %2, %c33_i32_140 : i32
    %c26_i32_141 = arith.constant 26 : i32
    %432 = arith.addi %431, %c26_i32_141 : i32
    %433 = arith.index_cast %432 : i32 to index
    %434 = memref.load %arg2[%433] : memref<264xf32, #tpu.memory_space<smem>>
    %435 = vector.broadcast %434 : f32 to vector<8x128xf32>
    %436 = arith.mulf %423, %435 : vector<8x128xf32>
    %437 = arith.addf %421, %436 : vector<8x128xf32>
    %c0_142 = arith.constant 0 : index
    %c0_143 = arith.constant 0 : index
    %c27 = arith.constant 27 : index
    %438 = vector.load %arg5[%c0_142, %c0_143, %c27] : memref<2x8x256xf32, #tpu.memory_space<vmem>>, vector<1x8x128xf32>
    %439 = vector.shape_cast %438 : vector<1x8x128xf32> to vector<8x128xf32>
    %c0_i32_144 = arith.constant 0 : i32
    %440 = arith.addi %2, %c0_i32_144 : i32
    %c27_i32 = arith.constant 27 : i32
    %441 = arith.addi %440, %c27_i32 : i32
    %442 = arith.index_cast %441 : i32 to index
    %443 = memref.load %arg2[%442] : memref<264xf32, #tpu.memory_space<smem>>
    %444 = vector.broadcast %443 : f32 to vector<8x128xf32>
    %445 = arith.mulf %439, %444 : vector<8x128xf32>
    %446 = arith.addf %430, %445 : vector<8x128xf32>
    %c33_i32_145 = arith.constant 33 : i32
    %447 = arith.addi %2, %c33_i32_145 : i32
    %c27_i32_146 = arith.constant 27 : i32
    %448 = arith.addi %447, %c27_i32_146 : i32
    %449 = arith.index_cast %448 : i32 to index
    %450 = memref.load %arg2[%449] : memref<264xf32, #tpu.memory_space<smem>>
    %451 = vector.broadcast %450 : f32 to vector<8x128xf32>
    %452 = arith.mulf %439, %451 : vector<8x128xf32>
    %453 = arith.addf %437, %452 : vector<8x128xf32>
    %c0_147 = arith.constant 0 : index
    %c0_148 = arith.constant 0 : index
    %c28 = arith.constant 28 : index
    %454 = vector.load %arg5[%c0_147, %c0_148, %c28] : memref<2x8x256xf32, #tpu.memory_space<vmem>>, vector<1x8x128xf32>
    %455 = vector.shape_cast %454 : vector<1x8x128xf32> to vector<8x128xf32>
    %c0_i32_149 = arith.constant 0 : i32
    %456 = arith.addi %2, %c0_i32_149 : i32
    %c28_i32 = arith.constant 28 : i32
    %457 = arith.addi %456, %c28_i32 : i32
    %458 = arith.index_cast %457 : i32 to index
    %459 = memref.load %arg2[%458] : memref<264xf32, #tpu.memory_space<smem>>
    %460 = vector.broadcast %459 : f32 to vector<8x128xf32>
    %461 = arith.mulf %455, %460 : vector<8x128xf32>
    %462 = arith.addf %446, %461 : vector<8x128xf32>
    %c33_i32_150 = arith.constant 33 : i32
    %463 = arith.addi %2, %c33_i32_150 : i32
    %c28_i32_151 = arith.constant 28 : i32
    %464 = arith.addi %463, %c28_i32_151 : i32
    %465 = arith.index_cast %464 : i32 to index
    %466 = memref.load %arg2[%465] : memref<264xf32, #tpu.memory_space<smem>>
    %467 = vector.broadcast %466 : f32 to vector<8x128xf32>
    %468 = arith.mulf %455, %467 : vector<8x128xf32>
    %469 = arith.addf %453, %468 : vector<8x128xf32>
    %c0_152 = arith.constant 0 : index
    %c0_153 = arith.constant 0 : index
    %c29 = arith.constant 29 : index
    %470 = vector.load %arg5[%c0_152, %c0_153, %c29] : memref<2x8x256xf32, #tpu.memory_space<vmem>>, vector<1x8x128xf32>
    %471 = vector.shape_cast %470 : vector<1x8x128xf32> to vector<8x128xf32>
    %c0_i32_154 = arith.constant 0 : i32
    %472 = arith.addi %2, %c0_i32_154 : i32
    %c29_i32 = arith.constant 29 : i32
    %473 = arith.addi %472, %c29_i32 : i32
    %474 = arith.index_cast %473 : i32 to index
    %475 = memref.load %arg2[%474] : memref<264xf32, #tpu.memory_space<smem>>
    %476 = vector.broadcast %475 : f32 to vector<8x128xf32>
    %477 = arith.mulf %471, %476 : vector<8x128xf32>
    %478 = arith.addf %462, %477 : vector<8x128xf32>
    %c33_i32_155 = arith.constant 33 : i32
    %479 = arith.addi %2, %c33_i32_155 : i32
    %c29_i32_156 = arith.constant 29 : i32
    %480 = arith.addi %479, %c29_i32_156 : i32
    %481 = arith.index_cast %480 : i32 to index
    %482 = memref.load %arg2[%481] : memref<264xf32, #tpu.memory_space<smem>>
    %483 = vector.broadcast %482 : f32 to vector<8x128xf32>
    %484 = arith.mulf %471, %483 : vector<8x128xf32>
    %485 = arith.addf %469, %484 : vector<8x128xf32>
    %c0_157 = arith.constant 0 : index
    %c0_158 = arith.constant 0 : index
    %c30 = arith.constant 30 : index
    %486 = vector.load %arg5[%c0_157, %c0_158, %c30] : memref<2x8x256xf32, #tpu.memory_space<vmem>>, vector<1x8x128xf32>
    %487 = vector.shape_cast %486 : vector<1x8x128xf32> to vector<8x128xf32>
    %c0_i32_159 = arith.constant 0 : i32
    %488 = arith.addi %2, %c0_i32_159 : i32
    %c30_i32 = arith.constant 30 : i32
    %489 = arith.addi %488, %c30_i32 : i32
    %490 = arith.index_cast %489 : i32 to index
    %491 = memref.load %arg2[%490] : memref<264xf32, #tpu.memory_space<smem>>
    %492 = vector.broadcast %491 : f32 to vector<8x128xf32>
    %493 = arith.mulf %487, %492 : vector<8x128xf32>
    %494 = arith.addf %478, %493 : vector<8x128xf32>
    %c33_i32_160 = arith.constant 33 : i32
    %495 = arith.addi %2, %c33_i32_160 : i32
    %c30_i32_161 = arith.constant 30 : i32
    %496 = arith.addi %495, %c30_i32_161 : i32
    %497 = arith.index_cast %496 : i32 to index
    %498 = memref.load %arg2[%497] : memref<264xf32, #tpu.memory_space<smem>>
    %499 = vector.broadcast %498 : f32 to vector<8x128xf32>
    %500 = arith.mulf %487, %499 : vector<8x128xf32>
    %501 = arith.addf %485, %500 : vector<8x128xf32>
    %c0_162 = arith.constant 0 : index
    %c0_163 = arith.constant 0 : index
    %c31 = arith.constant 31 : index
    %502 = vector.load %arg5[%c0_162, %c0_163, %c31] : memref<2x8x256xf32, #tpu.memory_space<vmem>>, vector<1x8x128xf32>
    %503 = vector.shape_cast %502 : vector<1x8x128xf32> to vector<8x128xf32>
    %c0_i32_164 = arith.constant 0 : i32
    %504 = arith.addi %2, %c0_i32_164 : i32
    %c31_i32 = arith.constant 31 : i32
    %505 = arith.addi %504, %c31_i32 : i32
    %506 = arith.index_cast %505 : i32 to index
    %507 = memref.load %arg2[%506] : memref<264xf32, #tpu.memory_space<smem>>
    %508 = vector.broadcast %507 : f32 to vector<8x128xf32>
    %509 = arith.mulf %503, %508 : vector<8x128xf32>
    %510 = arith.addf %494, %509 : vector<8x128xf32>
    %c33_i32_165 = arith.constant 33 : i32
    %511 = arith.addi %2, %c33_i32_165 : i32
    %c31_i32_166 = arith.constant 31 : i32
    %512 = arith.addi %511, %c31_i32_166 : i32
    %513 = arith.index_cast %512 : i32 to index
    %514 = memref.load %arg2[%513] : memref<264xf32, #tpu.memory_space<smem>>
    %515 = vector.broadcast %514 : f32 to vector<8x128xf32>
    %516 = arith.mulf %503, %515 : vector<8x128xf32>
    %517 = arith.addf %501, %516 : vector<8x128xf32>
    %c0_167 = arith.constant 0 : index
    %c0_168 = arith.constant 0 : index
    %c32 = arith.constant 32 : index
    %518 = vector.load %arg5[%c0_167, %c0_168, %c32] : memref<2x8x256xf32, #tpu.memory_space<vmem>>, vector<1x8x128xf32>
    %519 = vector.shape_cast %518 : vector<1x8x128xf32> to vector<8x128xf32>
    %c0_i32_169 = arith.constant 0 : i32
    %520 = arith.addi %2, %c0_i32_169 : i32
    %c32_i32 = arith.constant 32 : i32
    %521 = arith.addi %520, %c32_i32 : i32
    %522 = arith.index_cast %521 : i32 to index
    %523 = memref.load %arg2[%522] : memref<264xf32, #tpu.memory_space<smem>>
    %524 = vector.broadcast %523 : f32 to vector<8x128xf32>
    %525 = arith.mulf %519, %524 : vector<8x128xf32>
    %526 = arith.addf %510, %525 : vector<8x128xf32>
    %c33_i32_170 = arith.constant 33 : i32
    %527 = arith.addi %2, %c33_i32_170 : i32
    %c32_i32_171 = arith.constant 32 : i32
    %528 = arith.addi %527, %c32_i32_171 : i32
    %529 = arith.index_cast %528 : i32 to index
    %530 = memref.load %arg2[%529] : memref<264xf32, #tpu.memory_space<smem>>
    %531 = vector.broadcast %530 : f32 to vector<8x128xf32>
    %532 = arith.mulf %519, %531 : vector<8x128xf32>
    %533 = arith.addf %517, %532 : vector<8x128xf32>
    %c0_172 = arith.constant 0 : index
    %c0_173 = arith.constant 0 : index
    %c0_174 = arith.constant 0 : index
    %534 = vector.load %arg4[%c0_172, %c0_173, %c0_174] : memref<4x8x128xf32, #tpu.memory_space<vmem>>, vector<1x8x128xf32>
    %535 = vector.shape_cast %534 : vector<1x8x128xf32> to vector<8x128xf32>
    %536 = vector.shape_cast %526 : vector<8x128xf32> to vector<1x8x128xf32>
    tpu.vector_store %arg4[%c0_172, %c0_173, %c0_174], %536 {strides = array<i32>} : memref<4x8x128xf32, #tpu.memory_space<vmem>>, vector<1x8x128xf32>,
    %c1_175 = arith.constant 1 : index
    %c0_176 = arith.constant 0 : index
    %c0_177 = arith.constant 0 : index
    %537 = vector.load %arg4[%c1_175, %c0_176, %c0_177] : memref<4x8x128xf32, #tpu.memory_space<vmem>>, vector<1x8x128xf32>
    %538 = vector.shape_cast %537 : vector<1x8x128xf32> to vector<8x128xf32>
    %539 = vector.shape_cast %533 : vector<8x128xf32> to vector<1x8x128xf32>
    tpu.vector_store %arg4[%c1_175, %c0_176, %c0_177], %539 {strides = array<i32>} : memref<4x8x128xf32, #tpu.memory_space<vmem>>, vector<1x8x128xf32>,
    %c2_i32_178 = arith.constant 2 : i32
    %540 = arith.muli %arg0, %c2_i32_178 : i32
    %c1_i32_179 = arith.constant 1 : i32
    %541 = arith.addi %540, %c1_i32_179 : i32
    %c66_i32_180 = arith.constant 66 : i32
    %542 = arith.muli %541, %c66_i32_180 : i32
    %c1_181 = arith.constant 1 : index
    %c0_182 = arith.constant 0 : index
    %c0_183 = arith.constant 0 : index
    %543 = vector.load %arg3[%c1_181, %c0_182, %c0_183] : memref<2x8x160xf32, #tpu.memory_space<vmem>>, vector<1x8x160xf32>
    %544 = vector.shape_cast %543 : vector<1x8x160xf32> to vector<8x160xf32>
    %c1_184 = arith.constant 1 : index
    %c0_185 = arith.constant 0 : index
    %c0_186 = arith.constant 0 : index
    %545 = vector.load %arg5[%c1_184, %c0_185, %c0_186] : memref<2x8x256xf32, #tpu.memory_space<vmem>>, vector<1x8x160xf32>
    %546 = vector.shape_cast %545 : vector<1x8x160xf32> to vector<8x160xf32>
    %547 = vector.shape_cast %544 : vector<8x160xf32> to vector<1x8x160xf32>
    tpu.vector_store %arg5[%c1_184, %c0_185, %c0_186], %547 {strides = array<i32>} : memref<2x8x256xf32, #tpu.memory_space<vmem>>, vector<1x8x160xf32>,
    %c1_187 = arith.constant 1 : index
    %c0_188 = arith.constant 0 : index
    %c0_189 = arith.constant 0 : index
    %548 = vector.load %arg5[%c1_187, %c0_188, %c0_189] : memref<2x8x256xf32, #tpu.memory_space<vmem>>, vector<1x8x128xf32>
    %549 = vector.shape_cast %548 : vector<1x8x128xf32> to vector<8x128xf32>
    %c0_i32_190 = arith.constant 0 : i32
    %550 = arith.addi %542, %c0_i32_190 : i32
    %c0_i32_191 = arith.constant 0 : i32
    %551 = arith.addi %550, %c0_i32_191 : i32
    %552 = arith.index_cast %551 : i32 to index
    %553 = memref.load %arg2[%552] : memref<264xf32, #tpu.memory_space<smem>>
    %554 = vector.broadcast %553 : f32 to vector<8x128xf32>
    %555 = arith.mulf %549, %554 : vector<8x128xf32>
    %c33_i32_192 = arith.constant 33 : i32
    %556 = arith.addi %542, %c33_i32_192 : i32
    %c0_i32_193 = arith.constant 0 : i32
    %557 = arith.addi %556, %c0_i32_193 : i32
    %558 = arith.index_cast %557 : i32 to index
    %559 = memref.load %arg2[%558] : memref<264xf32, #tpu.memory_space<smem>>
    %560 = vector.broadcast %559 : f32 to vector<8x128xf32>
    %561 = arith.mulf %549, %560 : vector<8x128xf32>
    %c1_194 = arith.constant 1 : index
    %c0_195 = arith.constant 0 : index
    %c1_196 = arith.constant 1 : index
    %562 = vector.load %arg5[%c1_194, %c0_195, %c1_196] : memref<2x8x256xf32, #tpu.memory_space<vmem>>, vector<1x8x128xf32>
    %563 = vector.shape_cast %562 : vector<1x8x128xf32> to vector<8x128xf32>
    %c0_i32_197 = arith.constant 0 : i32
    %564 = arith.addi %542, %c0_i32_197 : i32
    %c1_i32_198 = arith.constant 1 : i32
    %565 = arith.addi %564, %c1_i32_198 : i32
    %566 = arith.index_cast %565 : i32 to index
    %567 = memref.load %arg2[%566] : memref<264xf32, #tpu.memory_space<smem>>
    %568 = vector.broadcast %567 : f32 to vector<8x128xf32>
    %569 = arith.mulf %563, %568 : vector<8x128xf32>
    %570 = arith.addf %555, %569 : vector<8x128xf32>
    %c33_i32_199 = arith.constant 33 : i32
    %571 = arith.addi %542, %c33_i32_199 : i32
    %c1_i32_200 = arith.constant 1 : i32
    %572 = arith.addi %571, %c1_i32_200 : i32
    %573 = arith.index_cast %572 : i32 to index
    %574 = memref.load %arg2[%573] : memref<264xf32, #tpu.memory_space<smem>>
    %575 = vector.broadcast %574 : f32 to vector<8x128xf32>
    %576 = arith.mulf %563, %575 : vector<8x128xf32>
    %577 = arith.addf %561, %576 : vector<8x128xf32>
    %c1_201 = arith.constant 1 : index
    %c0_202 = arith.constant 0 : index
    %c2_203 = arith.constant 2 : index
    %578 = vector.load %arg5[%c1_201, %c0_202, %c2_203] : memref<2x8x256xf32, #tpu.memory_space<vmem>>, vector<1x8x128xf32>
    %579 = vector.shape_cast %578 : vector<1x8x128xf32> to vector<8x128xf32>
    %c0_i32_204 = arith.constant 0 : i32
    %580 = arith.addi %542, %c0_i32_204 : i32
    %c2_i32_205 = arith.constant 2 : i32
    %581 = arith.addi %580, %c2_i32_205 : i32
    %582 = arith.index_cast %581 : i32 to index
    %583 = memref.load %arg2[%582] : memref<264xf32, #tpu.memory_space<smem>>
    %584 = vector.broadcast %583 : f32 to vector<8x128xf32>
    %585 = arith.mulf %579, %584 : vector<8x128xf32>
    %586 = arith.addf %570, %585 : vector<8x128xf32>
    %c33_i32_206 = arith.constant 33 : i32
    %587 = arith.addi %542, %c33_i32_206 : i32
    %c2_i32_207 = arith.constant 2 : i32
    %588 = arith.addi %587, %c2_i32_207 : i32
    %589 = arith.index_cast %588 : i32 to index
    %590 = memref.load %arg2[%589] : memref<264xf32, #tpu.memory_space<smem>>
    %591 = vector.broadcast %590 : f32 to vector<8x128xf32>
    %592 = arith.mulf %579, %591 : vector<8x128xf32>
    %593 = arith.addf %577, %592 : vector<8x128xf32>
    %c1_208 = arith.constant 1 : index
    %c0_209 = arith.constant 0 : index
    %c3_210 = arith.constant 3 : index
    %594 = vector.load %arg5[%c1_208, %c0_209, %c3_210] : memref<2x8x256xf32, #tpu.memory_space<vmem>>, vector<1x8x128xf32>
    %595 = vector.shape_cast %594 : vector<1x8x128xf32> to vector<8x128xf32>
    %c0_i32_211 = arith.constant 0 : i32
    %596 = arith.addi %542, %c0_i32_211 : i32
    %c3_i32_212 = arith.constant 3 : i32
    %597 = arith.addi %596, %c3_i32_212 : i32
    %598 = arith.index_cast %597 : i32 to index
    %599 = memref.load %arg2[%598] : memref<264xf32, #tpu.memory_space<smem>>
    %600 = vector.broadcast %599 : f32 to vector<8x128xf32>
    %601 = arith.mulf %595, %600 : vector<8x128xf32>
    %602 = arith.addf %586, %601 : vector<8x128xf32>
    %c33_i32_213 = arith.constant 33 : i32
    %603 = arith.addi %542, %c33_i32_213 : i32
    %c3_i32_214 = arith.constant 3 : i32
    %604 = arith.addi %603, %c3_i32_214 : i32
    %605 = arith.index_cast %604 : i32 to index
    %606 = memref.load %arg2[%605] : memref<264xf32, #tpu.memory_space<smem>>
    %607 = vector.broadcast %606 : f32 to vector<8x128xf32>
    %608 = arith.mulf %595, %607 : vector<8x128xf32>
    %609 = arith.addf %593, %608 : vector<8x128xf32>
    %c1_215 = arith.constant 1 : index
    %c0_216 = arith.constant 0 : index
    %c4_217 = arith.constant 4 : index
    %610 = vector.load %arg5[%c1_215, %c0_216, %c4_217] : memref<2x8x256xf32, #tpu.memory_space<vmem>>, vector<1x8x128xf32>
    %611 = vector.shape_cast %610 : vector<1x8x128xf32> to vector<8x128xf32>
    %c0_i32_218 = arith.constant 0 : i32
    %612 = arith.addi %542, %c0_i32_218 : i32
    %c4_i32_219 = arith.constant 4 : i32
    %613 = arith.addi %612, %c4_i32_219 : i32
    %614 = arith.index_cast %613 : i32 to index
    %615 = memref.load %arg2[%614] : memref<264xf32, #tpu.memory_space<smem>>
    %616 = vector.broadcast %615 : f32 to vector<8x128xf32>
    %617 = arith.mulf %611, %616 : vector<8x128xf32>
    %618 = arith.addf %602, %617 : vector<8x128xf32>
    %c33_i32_220 = arith.constant 33 : i32
    %619 = arith.addi %542, %c33_i32_220 : i32
    %c4_i32_221 = arith.constant 4 : i32
    %620 = arith.addi %619, %c4_i32_221 : i32
    %621 = arith.index_cast %620 : i32 to index
    %622 = memref.load %arg2[%621] : memref<264xf32, #tpu.memory_space<smem>>
    %623 = vector.broadcast %622 : f32 to vector<8x128xf32>
    %624 = arith.mulf %611, %623 : vector<8x128xf32>
    %625 = arith.addf %609, %624 : vector<8x128xf32>
    %c1_222 = arith.constant 1 : index
    %c0_223 = arith.constant 0 : index
    %c5_224 = arith.constant 5 : index
    %626 = vector.load %arg5[%c1_222, %c0_223, %c5_224] : memref<2x8x256xf32, #tpu.memory_space<vmem>>, vector<1x8x128xf32>
    %627 = vector.shape_cast %626 : vector<1x8x128xf32> to vector<8x128xf32>
    %c0_i32_225 = arith.constant 0 : i32
    %628 = arith.addi %542, %c0_i32_225 : i32
    %c5_i32_226 = arith.constant 5 : i32
    %629 = arith.addi %628, %c5_i32_226 : i32
    %630 = arith.index_cast %629 : i32 to index
    %631 = memref.load %arg2[%630] : memref<264xf32, #tpu.memory_space<smem>>
    %632 = vector.broadcast %631 : f32 to vector<8x128xf32>
    %633 = arith.mulf %627, %632 : vector<8x128xf32>
    %634 = arith.addf %618, %633 : vector<8x128xf32>
    %c33_i32_227 = arith.constant 33 : i32
    %635 = arith.addi %542, %c33_i32_227 : i32
    %c5_i32_228 = arith.constant 5 : i32
    %636 = arith.addi %635, %c5_i32_228 : i32
    %637 = arith.index_cast %636 : i32 to index
    %638 = memref.load %arg2[%637] : memref<264xf32, #tpu.memory_space<smem>>
    %639 = vector.broadcast %638 : f32 to vector<8x128xf32>
    %640 = arith.mulf %627, %639 : vector<8x128xf32>
    %641 = arith.addf %625, %640 : vector<8x128xf32>
    %c1_229 = arith.constant 1 : index
    %c0_230 = arith.constant 0 : index
    %c6_231 = arith.constant 6 : index
    %642 = vector.load %arg5[%c1_229, %c0_230, %c6_231] : memref<2x8x256xf32, #tpu.memory_space<vmem>>, vector<1x8x128xf32>
    %643 = vector.shape_cast %642 : vector<1x8x128xf32> to vector<8x128xf32>
    %c0_i32_232 = arith.constant 0 : i32
    %644 = arith.addi %542, %c0_i32_232 : i32
    %c6_i32_233 = arith.constant 6 : i32
    %645 = arith.addi %644, %c6_i32_233 : i32
    %646 = arith.index_cast %645 : i32 to index
    %647 = memref.load %arg2[%646] : memref<264xf32, #tpu.memory_space<smem>>
    %648 = vector.broadcast %647 : f32 to vector<8x128xf32>
    %649 = arith.mulf %643, %648 : vector<8x128xf32>
    %650 = arith.addf %634, %649 : vector<8x128xf32>
    %c33_i32_234 = arith.constant 33 : i32
    %651 = arith.addi %542, %c33_i32_234 : i32
    %c6_i32_235 = arith.constant 6 : i32
    %652 = arith.addi %651, %c6_i32_235 : i32
    %653 = arith.index_cast %652 : i32 to index
    %654 = memref.load %arg2[%653] : memref<264xf32, #tpu.memory_space<smem>>
    %655 = vector.broadcast %654 : f32 to vector<8x128xf32>
    %656 = arith.mulf %643, %655 : vector<8x128xf32>
    %657 = arith.addf %641, %656 : vector<8x128xf32>
    %c1_236 = arith.constant 1 : index
    %c0_237 = arith.constant 0 : index
    %c7_238 = arith.constant 7 : index
    %658 = vector.load %arg5[%c1_236, %c0_237, %c7_238] : memref<2x8x256xf32, #tpu.memory_space<vmem>>, vector<1x8x128xf32>
    %659 = vector.shape_cast %658 : vector<1x8x128xf32> to vector<8x128xf32>
    %c0_i32_239 = arith.constant 0 : i32
    %660 = arith.addi %542, %c0_i32_239 : i32
    %c7_i32_240 = arith.constant 7 : i32
    %661 = arith.addi %660, %c7_i32_240 : i32
    %662 = arith.index_cast %661 : i32 to index
    %663 = memref.load %arg2[%662] : memref<264xf32, #tpu.memory_space<smem>>
    %664 = vector.broadcast %663 : f32 to vector<8x128xf32>
    %665 = arith.mulf %659, %664 : vector<8x128xf32>
    %666 = arith.addf %650, %665 : vector<8x128xf32>
    %c33_i32_241 = arith.constant 33 : i32
    %667 = arith.addi %542, %c33_i32_241 : i32
    %c7_i32_242 = arith.constant 7 : i32
    %668 = arith.addi %667, %c7_i32_242 : i32
    %669 = arith.index_cast %668 : i32 to index
    %670 = memref.load %arg2[%669] : memref<264xf32, #tpu.memory_space<smem>>
    %671 = vector.broadcast %670 : f32 to vector<8x128xf32>
    %672 = arith.mulf %659, %671 : vector<8x128xf32>
    %673 = arith.addf %657, %672 : vector<8x128xf32>
    %c1_243 = arith.constant 1 : index
    %c0_244 = arith.constant 0 : index
    %c8_245 = arith.constant 8 : index
    %674 = vector.load %arg5[%c1_243, %c0_244, %c8_245] : memref<2x8x256xf32, #tpu.memory_space<vmem>>, vector<1x8x128xf32>
    %675 = vector.shape_cast %674 : vector<1x8x128xf32> to vector<8x128xf32>
    %c0_i32_246 = arith.constant 0 : i32
    %676 = arith.addi %542, %c0_i32_246 : i32
    %c8_i32_247 = arith.constant 8 : i32
    %677 = arith.addi %676, %c8_i32_247 : i32
    %678 = arith.index_cast %677 : i32 to index
    %679 = memref.load %arg2[%678] : memref<264xf32, #tpu.memory_space<smem>>
    %680 = vector.broadcast %679 : f32 to vector<8x128xf32>
    %681 = arith.mulf %675, %680 : vector<8x128xf32>
    %682 = arith.addf %666, %681 : vector<8x128xf32>
    %c33_i32_248 = arith.constant 33 : i32
    %683 = arith.addi %542, %c33_i32_248 : i32
    %c8_i32_249 = arith.constant 8 : i32
    %684 = arith.addi %683, %c8_i32_249 : i32
    %685 = arith.index_cast %684 : i32 to index
    %686 = memref.load %arg2[%685] : memref<264xf32, #tpu.memory_space<smem>>
    %687 = vector.broadcast %686 : f32 to vector<8x128xf32>
    %688 = arith.mulf %675, %687 : vector<8x128xf32>
    %689 = arith.addf %673, %688 : vector<8x128xf32>
    %c1_250 = arith.constant 1 : index
    %c0_251 = arith.constant 0 : index
    %c9_252 = arith.constant 9 : index
    %690 = vector.load %arg5[%c1_250, %c0_251, %c9_252] : memref<2x8x256xf32, #tpu.memory_space<vmem>>, vector<1x8x128xf32>
    %691 = vector.shape_cast %690 : vector<1x8x128xf32> to vector<8x128xf32>
    %c0_i32_253 = arith.constant 0 : i32
    %692 = arith.addi %542, %c0_i32_253 : i32
    %c9_i32_254 = arith.constant 9 : i32
    %693 = arith.addi %692, %c9_i32_254 : i32
    %694 = arith.index_cast %693 : i32 to index
    %695 = memref.load %arg2[%694] : memref<264xf32, #tpu.memory_space<smem>>
    %696 = vector.broadcast %695 : f32 to vector<8x128xf32>
    %697 = arith.mulf %691, %696 : vector<8x128xf32>
    %698 = arith.addf %682, %697 : vector<8x128xf32>
    %c33_i32_255 = arith.constant 33 : i32
    %699 = arith.addi %542, %c33_i32_255 : i32
    %c9_i32_256 = arith.constant 9 : i32
    %700 = arith.addi %699, %c9_i32_256 : i32
    %701 = arith.index_cast %700 : i32 to index
    %702 = memref.load %arg2[%701] : memref<264xf32, #tpu.memory_space<smem>>
    %703 = vector.broadcast %702 : f32 to vector<8x128xf32>
    %704 = arith.mulf %691, %703 : vector<8x128xf32>
    %705 = arith.addf %689, %704 : vector<8x128xf32>
    %c1_257 = arith.constant 1 : index
    %c0_258 = arith.constant 0 : index
    %c10_259 = arith.constant 10 : index
    %706 = vector.load %arg5[%c1_257, %c0_258, %c10_259] : memref<2x8x256xf32, #tpu.memory_space<vmem>>, vector<1x8x128xf32>
    %707 = vector.shape_cast %706 : vector<1x8x128xf32> to vector<8x128xf32>
    %c0_i32_260 = arith.constant 0 : i32
    %708 = arith.addi %542, %c0_i32_260 : i32
    %c10_i32_261 = arith.constant 10 : i32
    %709 = arith.addi %708, %c10_i32_261 : i32
    %710 = arith.index_cast %709 : i32 to index
    %711 = memref.load %arg2[%710] : memref<264xf32, #tpu.memory_space<smem>>
    %712 = vector.broadcast %711 : f32 to vector<8x128xf32>
    %713 = arith.mulf %707, %712 : vector<8x128xf32>
    %714 = arith.addf %698, %713 : vector<8x128xf32>
    %c33_i32_262 = arith.constant 33 : i32
    %715 = arith.addi %542, %c33_i32_262 : i32
    %c10_i32_263 = arith.constant 10 : i32
    %716 = arith.addi %715, %c10_i32_263 : i32
    %717 = arith.index_cast %716 : i32 to index
    %718 = memref.load %arg2[%717] : memref<264xf32, #tpu.memory_space<smem>>
    %719 = vector.broadcast %718 : f32 to vector<8x128xf32>
    %720 = arith.mulf %707, %719 : vector<8x128xf32>
    %721 = arith.addf %705, %720 : vector<8x128xf32>
    %c1_264 = arith.constant 1 : index
    %c0_265 = arith.constant 0 : index
    %c11_266 = arith.constant 11 : index
    %722 = vector.load %arg5[%c1_264, %c0_265, %c11_266] : memref<2x8x256xf32, #tpu.memory_space<vmem>>, vector<1x8x128xf32>
    %723 = vector.shape_cast %722 : vector<1x8x128xf32> to vector<8x128xf32>
    %c0_i32_267 = arith.constant 0 : i32
    %724 = arith.addi %542, %c0_i32_267 : i32
    %c11_i32_268 = arith.constant 11 : i32
    %725 = arith.addi %724, %c11_i32_268 : i32
    %726 = arith.index_cast %725 : i32 to index
    %727 = memref.load %arg2[%726] : memref<264xf32, #tpu.memory_space<smem>>
    %728 = vector.broadcast %727 : f32 to vector<8x128xf32>
    %729 = arith.mulf %723, %728 : vector<8x128xf32>
    %730 = arith.addf %714, %729 : vector<8x128xf32>
    %c33_i32_269 = arith.constant 33 : i32
    %731 = arith.addi %542, %c33_i32_269 : i32
    %c11_i32_270 = arith.constant 11 : i32
    %732 = arith.addi %731, %c11_i32_270 : i32
    %733 = arith.index_cast %732 : i32 to index
    %734 = memref.load %arg2[%733] : memref<264xf32, #tpu.memory_space<smem>>
    %735 = vector.broadcast %734 : f32 to vector<8x128xf32>
    %736 = arith.mulf %723, %735 : vector<8x128xf32>
    %737 = arith.addf %721, %736 : vector<8x128xf32>
    %c1_271 = arith.constant 1 : index
    %c0_272 = arith.constant 0 : index
    %c12_273 = arith.constant 12 : index
    %738 = vector.load %arg5[%c1_271, %c0_272, %c12_273] : memref<2x8x256xf32, #tpu.memory_space<vmem>>, vector<1x8x128xf32>
    %739 = vector.shape_cast %738 : vector<1x8x128xf32> to vector<8x128xf32>
    %c0_i32_274 = arith.constant 0 : i32
    %740 = arith.addi %542, %c0_i32_274 : i32
    %c12_i32_275 = arith.constant 12 : i32
    %741 = arith.addi %740, %c12_i32_275 : i32
    %742 = arith.index_cast %741 : i32 to index
    %743 = memref.load %arg2[%742] : memref<264xf32, #tpu.memory_space<smem>>
    %744 = vector.broadcast %743 : f32 to vector<8x128xf32>
    %745 = arith.mulf %739, %744 : vector<8x128xf32>
    %746 = arith.addf %730, %745 : vector<8x128xf32>
    %c33_i32_276 = arith.constant 33 : i32
    %747 = arith.addi %542, %c33_i32_276 : i32
    %c12_i32_277 = arith.constant 12 : i32
    %748 = arith.addi %747, %c12_i32_277 : i32
    %749 = arith.index_cast %748 : i32 to index
    %750 = memref.load %arg2[%749] : memref<264xf32, #tpu.memory_space<smem>>
    %751 = vector.broadcast %750 : f32 to vector<8x128xf32>
    %752 = arith.mulf %739, %751 : vector<8x128xf32>
    %753 = arith.addf %737, %752 : vector<8x128xf32>
    %c1_278 = arith.constant 1 : index
    %c0_279 = arith.constant 0 : index
    %c13_280 = arith.constant 13 : index
    %754 = vector.load %arg5[%c1_278, %c0_279, %c13_280] : memref<2x8x256xf32, #tpu.memory_space<vmem>>, vector<1x8x128xf32>
    %755 = vector.shape_cast %754 : vector<1x8x128xf32> to vector<8x128xf32>
    %c0_i32_281 = arith.constant 0 : i32
    %756 = arith.addi %542, %c0_i32_281 : i32
    %c13_i32_282 = arith.constant 13 : i32
    %757 = arith.addi %756, %c13_i32_282 : i32
    %758 = arith.index_cast %757 : i32 to index
    %759 = memref.load %arg2[%758] : memref<264xf32, #tpu.memory_space<smem>>
    %760 = vector.broadcast %759 : f32 to vector<8x128xf32>
    %761 = arith.mulf %755, %760 : vector<8x128xf32>
    %762 = arith.addf %746, %761 : vector<8x128xf32>
    %c33_i32_283 = arith.constant 33 : i32
    %763 = arith.addi %542, %c33_i32_283 : i32
    %c13_i32_284 = arith.constant 13 : i32
    %764 = arith.addi %763, %c13_i32_284 : i32
    %765 = arith.index_cast %764 : i32 to index
    %766 = memref.load %arg2[%765] : memref<264xf32, #tpu.memory_space<smem>>
    %767 = vector.broadcast %766 : f32 to vector<8x128xf32>
    %768 = arith.mulf %755, %767 : vector<8x128xf32>
    %769 = arith.addf %753, %768 : vector<8x128xf32>
    %c1_285 = arith.constant 1 : index
    %c0_286 = arith.constant 0 : index
    %c14_287 = arith.constant 14 : index
    %770 = vector.load %arg5[%c1_285, %c0_286, %c14_287] : memref<2x8x256xf32, #tpu.memory_space<vmem>>, vector<1x8x128xf32>
    %771 = vector.shape_cast %770 : vector<1x8x128xf32> to vector<8x128xf32>
    %c0_i32_288 = arith.constant 0 : i32
    %772 = arith.addi %542, %c0_i32_288 : i32
    %c14_i32_289 = arith.constant 14 : i32
    %773 = arith.addi %772, %c14_i32_289 : i32
    %774 = arith.index_cast %773 : i32 to index
    %775 = memref.load %arg2[%774] : memref<264xf32, #tpu.memory_space<smem>>
    %776 = vector.broadcast %775 : f32 to vector<8x128xf32>
    %777 = arith.mulf %771, %776 : vector<8x128xf32>
    %778 = arith.addf %762, %777 : vector<8x128xf32>
    %c33_i32_290 = arith.constant 33 : i32
    %779 = arith.addi %542, %c33_i32_290 : i32
    %c14_i32_291 = arith.constant 14 : i32
    %780 = arith.addi %779, %c14_i32_291 : i32
    %781 = arith.index_cast %780 : i32 to index
    %782 = memref.load %arg2[%781] : memref<264xf32, #tpu.memory_space<smem>>
    %783 = vector.broadcast %782 : f32 to vector<8x128xf32>
    %784 = arith.mulf %771, %783 : vector<8x128xf32>
    %785 = arith.addf %769, %784 : vector<8x128xf32>
    %c1_292 = arith.constant 1 : index
    %c0_293 = arith.constant 0 : index
    %c15_294 = arith.constant 15 : index
    %786 = vector.load %arg5[%c1_292, %c0_293, %c15_294] : memref<2x8x256xf32, #tpu.memory_space<vmem>>, vector<1x8x128xf32>
    %787 = vector.shape_cast %786 : vector<1x8x128xf32> to vector<8x128xf32>
    %c0_i32_295 = arith.constant 0 : i32
    %788 = arith.addi %542, %c0_i32_295 : i32
    %c15_i32_296 = arith.constant 15 : i32
    %789 = arith.addi %788, %c15_i32_296 : i32
    %790 = arith.index_cast %789 : i32 to index
    %791 = memref.load %arg2[%790] : memref<264xf32, #tpu.memory_space<smem>>
    %792 = vector.broadcast %791 : f32 to vector<8x128xf32>
    %793 = arith.mulf %787, %792 : vector<8x128xf32>
    %794 = arith.addf %778, %793 : vector<8x128xf32>
    %c33_i32_297 = arith.constant 33 : i32
    %795 = arith.addi %542, %c33_i32_297 : i32
    %c15_i32_298 = arith.constant 15 : i32
    %796 = arith.addi %795, %c15_i32_298 : i32
    %797 = arith.index_cast %796 : i32 to index
    %798 = memref.load %arg2[%797] : memref<264xf32, #tpu.memory_space<smem>>
    %799 = vector.broadcast %798 : f32 to vector<8x128xf32>
    %800 = arith.mulf %787, %799 : vector<8x128xf32>
    %801 = arith.addf %785, %800 : vector<8x128xf32>
    %c1_299 = arith.constant 1 : index
    %c0_300 = arith.constant 0 : index
    %c16_301 = arith.constant 16 : index
    %802 = vector.load %arg5[%c1_299, %c0_300, %c16_301] : memref<2x8x256xf32, #tpu.memory_space<vmem>>, vector<1x8x128xf32>
    %803 = vector.shape_cast %802 : vector<1x8x128xf32> to vector<8x128xf32>
    %c0_i32_302 = arith.constant 0 : i32
    %804 = arith.addi %542, %c0_i32_302 : i32
    %c16_i32_303 = arith.constant 16 : i32
    %805 = arith.addi %804, %c16_i32_303 : i32
    %806 = arith.index_cast %805 : i32 to index
    %807 = memref.load %arg2[%806] : memref<264xf32, #tpu.memory_space<smem>>
    %808 = vector.broadcast %807 : f32 to vector<8x128xf32>
    %809 = arith.mulf %803, %808 : vector<8x128xf32>
    %810 = arith.addf %794, %809 : vector<8x128xf32>
    %c33_i32_304 = arith.constant 33 : i32
    %811 = arith.addi %542, %c33_i32_304 : i32
    %c16_i32_305 = arith.constant 16 : i32
    %812 = arith.addi %811, %c16_i32_305 : i32
    %813 = arith.index_cast %812 : i32 to index
    %814 = memref.load %arg2[%813] : memref<264xf32, #tpu.memory_space<smem>>
    %815 = vector.broadcast %814 : f32 to vector<8x128xf32>
    %816 = arith.mulf %803, %815 : vector<8x128xf32>
    %817 = arith.addf %801, %816 : vector<8x128xf32>
    %c1_306 = arith.constant 1 : index
    %c0_307 = arith.constant 0 : index
    %c17_308 = arith.constant 17 : index
    %818 = vector.load %arg5[%c1_306, %c0_307, %c17_308] : memref<2x8x256xf32, #tpu.memory_space<vmem>>, vector<1x8x128xf32>
    %819 = vector.shape_cast %818 : vector<1x8x128xf32> to vector<8x128xf32>
    %c0_i32_309 = arith.constant 0 : i32
    %820 = arith.addi %542, %c0_i32_309 : i32
    %c17_i32_310 = arith.constant 17 : i32
    %821 = arith.addi %820, %c17_i32_310 : i32
    %822 = arith.index_cast %821 : i32 to index
    %823 = memref.load %arg2[%822] : memref<264xf32, #tpu.memory_space<smem>>
    %824 = vector.broadcast %823 : f32 to vector<8x128xf32>
    %825 = arith.mulf %819, %824 : vector<8x128xf32>
    %826 = arith.addf %810, %825 : vector<8x128xf32>
    %c33_i32_311 = arith.constant 33 : i32
    %827 = arith.addi %542, %c33_i32_311 : i32
    %c17_i32_312 = arith.constant 17 : i32
    %828 = arith.addi %827, %c17_i32_312 : i32
    %829 = arith.index_cast %828 : i32 to index
    %830 = memref.load %arg2[%829] : memref<264xf32, #tpu.memory_space<smem>>
    %831 = vector.broadcast %830 : f32 to vector<8x128xf32>
    %832 = arith.mulf %819, %831 : vector<8x128xf32>
    %833 = arith.addf %817, %832 : vector<8x128xf32>
    %c1_313 = arith.constant 1 : index
    %c0_314 = arith.constant 0 : index
    %c18_315 = arith.constant 18 : index
    %834 = vector.load %arg5[%c1_313, %c0_314, %c18_315] : memref<2x8x256xf32, #tpu.memory_space<vmem>>, vector<1x8x128xf32>
    %835 = vector.shape_cast %834 : vector<1x8x128xf32> to vector<8x128xf32>
    %c0_i32_316 = arith.constant 0 : i32
    %836 = arith.addi %542, %c0_i32_316 : i32
    %c18_i32_317 = arith.constant 18 : i32
    %837 = arith.addi %836, %c18_i32_317 : i32
    %838 = arith.index_cast %837 : i32 to index
    %839 = memref.load %arg2[%838] : memref<264xf32, #tpu.memory_space<smem>>
    %840 = vector.broadcast %839 : f32 to vector<8x128xf32>
    %841 = arith.mulf %835, %840 : vector<8x128xf32>
    %842 = arith.addf %826, %841 : vector<8x128xf32>
    %c33_i32_318 = arith.constant 33 : i32
    %843 = arith.addi %542, %c33_i32_318 : i32
    %c18_i32_319 = arith.constant 18 : i32
    %844 = arith.addi %843, %c18_i32_319 : i32
    %845 = arith.index_cast %844 : i32 to index
    %846 = memref.load %arg2[%845] : memref<264xf32, #tpu.memory_space<smem>>
    %847 = vector.broadcast %846 : f32 to vector<8x128xf32>
    %848 = arith.mulf %835, %847 : vector<8x128xf32>
    %849 = arith.addf %833, %848 : vector<8x128xf32>
    %c1_320 = arith.constant 1 : index
    %c0_321 = arith.constant 0 : index
    %c19_322 = arith.constant 19 : index
    %850 = vector.load %arg5[%c1_320, %c0_321, %c19_322] : memref<2x8x256xf32, #tpu.memory_space<vmem>>, vector<1x8x128xf32>
    %851 = vector.shape_cast %850 : vector<1x8x128xf32> to vector<8x128xf32>
    %c0_i32_323 = arith.constant 0 : i32
    %852 = arith.addi %542, %c0_i32_323 : i32
    %c19_i32_324 = arith.constant 19 : i32
    %853 = arith.addi %852, %c19_i32_324 : i32
    %854 = arith.index_cast %853 : i32 to index
    %855 = memref.load %arg2[%854] : memref<264xf32, #tpu.memory_space<smem>>
    %856 = vector.broadcast %855 : f32 to vector<8x128xf32>
    %857 = arith.mulf %851, %856 : vector<8x128xf32>
    %858 = arith.addf %842, %857 : vector<8x128xf32>
    %c33_i32_325 = arith.constant 33 : i32
    %859 = arith.addi %542, %c33_i32_325 : i32
    %c19_i32_326 = arith.constant 19 : i32
    %860 = arith.addi %859, %c19_i32_326 : i32
    %861 = arith.index_cast %860 : i32 to index
    %862 = memref.load %arg2[%861] : memref<264xf32, #tpu.memory_space<smem>>
    %863 = vector.broadcast %862 : f32 to vector<8x128xf32>
    %864 = arith.mulf %851, %863 : vector<8x128xf32>
    %865 = arith.addf %849, %864 : vector<8x128xf32>
    %c1_327 = arith.constant 1 : index
    %c0_328 = arith.constant 0 : index
    %c20_329 = arith.constant 20 : index
    %866 = vector.load %arg5[%c1_327, %c0_328, %c20_329] : memref<2x8x256xf32, #tpu.memory_space<vmem>>, vector<1x8x128xf32>
    %867 = vector.shape_cast %866 : vector<1x8x128xf32> to vector<8x128xf32>
    %c0_i32_330 = arith.constant 0 : i32
    %868 = arith.addi %542, %c0_i32_330 : i32
    %c20_i32_331 = arith.constant 20 : i32
    %869 = arith.addi %868, %c20_i32_331 : i32
    %870 = arith.index_cast %869 : i32 to index
    %871 = memref.load %arg2[%870] : memref<264xf32, #tpu.memory_space<smem>>
    %872 = vector.broadcast %871 : f32 to vector<8x128xf32>
    %873 = arith.mulf %867, %872 : vector<8x128xf32>
    %874 = arith.addf %858, %873 : vector<8x128xf32>
    %c33_i32_332 = arith.constant 33 : i32
    %875 = arith.addi %542, %c33_i32_332 : i32
    %c20_i32_333 = arith.constant 20 : i32
    %876 = arith.addi %875, %c20_i32_333 : i32
    %877 = arith.index_cast %876 : i32 to index
    %878 = memref.load %arg2[%877] : memref<264xf32, #tpu.memory_space<smem>>
    %879 = vector.broadcast %878 : f32 to vector<8x128xf32>
    %880 = arith.mulf %867, %879 : vector<8x128xf32>
    %881 = arith.addf %865, %880 : vector<8x128xf32>
    %c1_334 = arith.constant 1 : index
    %c0_335 = arith.constant 0 : index
    %c21_336 = arith.constant 21 : index
    %882 = vector.load %arg5[%c1_334, %c0_335, %c21_336] : memref<2x8x256xf32, #tpu.memory_space<vmem>>, vector<1x8x128xf32>
    %883 = vector.shape_cast %882 : vector<1x8x128xf32> to vector<8x128xf32>
    %c0_i32_337 = arith.constant 0 : i32
    %884 = arith.addi %542, %c0_i32_337 : i32
    %c21_i32_338 = arith.constant 21 : i32
    %885 = arith.addi %884, %c21_i32_338 : i32
    %886 = arith.index_cast %885 : i32 to index
    %887 = memref.load %arg2[%886] : memref<264xf32, #tpu.memory_space<smem>>
    %888 = vector.broadcast %887 : f32 to vector<8x128xf32>
    %889 = arith.mulf %883, %888 : vector<8x128xf32>
    %890 = arith.addf %874, %889 : vector<8x128xf32>
    %c33_i32_339 = arith.constant 33 : i32
    %891 = arith.addi %542, %c33_i32_339 : i32
    %c21_i32_340 = arith.constant 21 : i32
    %892 = arith.addi %891, %c21_i32_340 : i32
    %893 = arith.index_cast %892 : i32 to index
    %894 = memref.load %arg2[%893] : memref<264xf32, #tpu.memory_space<smem>>
    %895 = vector.broadcast %894 : f32 to vector<8x128xf32>
    %896 = arith.mulf %883, %895 : vector<8x128xf32>
    %897 = arith.addf %881, %896 : vector<8x128xf32>
    %c1_341 = arith.constant 1 : index
    %c0_342 = arith.constant 0 : index
    %c22_343 = arith.constant 22 : index
    %898 = vector.load %arg5[%c1_341, %c0_342, %c22_343] : memref<2x8x256xf32, #tpu.memory_space<vmem>>, vector<1x8x128xf32>
    %899 = vector.shape_cast %898 : vector<1x8x128xf32> to vector<8x128xf32>
    %c0_i32_344 = arith.constant 0 : i32
    %900 = arith.addi %542, %c0_i32_344 : i32
    %c22_i32_345 = arith.constant 22 : i32
    %901 = arith.addi %900, %c22_i32_345 : i32
    %902 = arith.index_cast %901 : i32 to index
    %903 = memref.load %arg2[%902] : memref<264xf32, #tpu.memory_space<smem>>
    %904 = vector.broadcast %903 : f32 to vector<8x128xf32>
    %905 = arith.mulf %899, %904 : vector<8x128xf32>
    %906 = arith.addf %890, %905 : vector<8x128xf32>
    %c33_i32_346 = arith.constant 33 : i32
    %907 = arith.addi %542, %c33_i32_346 : i32
    %c22_i32_347 = arith.constant 22 : i32
    %908 = arith.addi %907, %c22_i32_347 : i32
    %909 = arith.index_cast %908 : i32 to index
    %910 = memref.load %arg2[%909] : memref<264xf32, #tpu.memory_space<smem>>
    %911 = vector.broadcast %910 : f32 to vector<8x128xf32>
    %912 = arith.mulf %899, %911 : vector<8x128xf32>
    %913 = arith.addf %897, %912 : vector<8x128xf32>
    %c1_348 = arith.constant 1 : index
    %c0_349 = arith.constant 0 : index
    %c23_350 = arith.constant 23 : index
    %914 = vector.load %arg5[%c1_348, %c0_349, %c23_350] : memref<2x8x256xf32, #tpu.memory_space<vmem>>, vector<1x8x128xf32>
    %915 = vector.shape_cast %914 : vector<1x8x128xf32> to vector<8x128xf32>
    %c0_i32_351 = arith.constant 0 : i32
    %916 = arith.addi %542, %c0_i32_351 : i32
    %c23_i32_352 = arith.constant 23 : i32
    %917 = arith.addi %916, %c23_i32_352 : i32
    %918 = arith.index_cast %917 : i32 to index
    %919 = memref.load %arg2[%918] : memref<264xf32, #tpu.memory_space<smem>>
    %920 = vector.broadcast %919 : f32 to vector<8x128xf32>
    %921 = arith.mulf %915, %920 : vector<8x128xf32>
    %922 = arith.addf %906, %921 : vector<8x128xf32>
    %c33_i32_353 = arith.constant 33 : i32
    %923 = arith.addi %542, %c33_i32_353 : i32
    %c23_i32_354 = arith.constant 23 : i32
    %924 = arith.addi %923, %c23_i32_354 : i32
    %925 = arith.index_cast %924 : i32 to index
    %926 = memref.load %arg2[%925] : memref<264xf32, #tpu.memory_space<smem>>
    %927 = vector.broadcast %926 : f32 to vector<8x128xf32>
    %928 = arith.mulf %915, %927 : vector<8x128xf32>
    %929 = arith.addf %913, %928 : vector<8x128xf32>
    %c1_355 = arith.constant 1 : index
    %c0_356 = arith.constant 0 : index
    %c24_357 = arith.constant 24 : index
    %930 = vector.load %arg5[%c1_355, %c0_356, %c24_357] : memref<2x8x256xf32, #tpu.memory_space<vmem>>, vector<1x8x128xf32>
    %931 = vector.shape_cast %930 : vector<1x8x128xf32> to vector<8x128xf32>
    %c0_i32_358 = arith.constant 0 : i32
    %932 = arith.addi %542, %c0_i32_358 : i32
    %c24_i32_359 = arith.constant 24 : i32
    %933 = arith.addi %932, %c24_i32_359 : i32
    %934 = arith.index_cast %933 : i32 to index
    %935 = memref.load %arg2[%934] : memref<264xf32, #tpu.memory_space<smem>>
    %936 = vector.broadcast %935 : f32 to vector<8x128xf32>
    %937 = arith.mulf %931, %936 : vector<8x128xf32>
    %938 = arith.addf %922, %937 : vector<8x128xf32>
    %c33_i32_360 = arith.constant 33 : i32
    %939 = arith.addi %542, %c33_i32_360 : i32
    %c24_i32_361 = arith.constant 24 : i32
    %940 = arith.addi %939, %c24_i32_361 : i32
    %941 = arith.index_cast %940 : i32 to index
    %942 = memref.load %arg2[%941] : memref<264xf32, #tpu.memory_space<smem>>
    %943 = vector.broadcast %942 : f32 to vector<8x128xf32>
    %944 = arith.mulf %931, %943 : vector<8x128xf32>
    %945 = arith.addf %929, %944 : vector<8x128xf32>
    %c1_362 = arith.constant 1 : index
    %c0_363 = arith.constant 0 : index
    %c25_364 = arith.constant 25 : index
    %946 = vector.load %arg5[%c1_362, %c0_363, %c25_364] : memref<2x8x256xf32, #tpu.memory_space<vmem>>, vector<1x8x128xf32>
    %947 = vector.shape_cast %946 : vector<1x8x128xf32> to vector<8x128xf32>
    %c0_i32_365 = arith.constant 0 : i32
    %948 = arith.addi %542, %c0_i32_365 : i32
    %c25_i32_366 = arith.constant 25 : i32
    %949 = arith.addi %948, %c25_i32_366 : i32
    %950 = arith.index_cast %949 : i32 to index
    %951 = memref.load %arg2[%950] : memref<264xf32, #tpu.memory_space<smem>>
    %952 = vector.broadcast %951 : f32 to vector<8x128xf32>
    %953 = arith.mulf %947, %952 : vector<8x128xf32>
    %954 = arith.addf %938, %953 : vector<8x128xf32>
    %c33_i32_367 = arith.constant 33 : i32
    %955 = arith.addi %542, %c33_i32_367 : i32
    %c25_i32_368 = arith.constant 25 : i32
    %956 = arith.addi %955, %c25_i32_368 : i32
    %957 = arith.index_cast %956 : i32 to index
    %958 = memref.load %arg2[%957] : memref<264xf32, #tpu.memory_space<smem>>
    %959 = vector.broadcast %958 : f32 to vector<8x128xf32>
    %960 = arith.mulf %947, %959 : vector<8x128xf32>
    %961 = arith.addf %945, %960 : vector<8x128xf32>
    %c1_369 = arith.constant 1 : index
    %c0_370 = arith.constant 0 : index
    %c26_371 = arith.constant 26 : index
    %962 = vector.load %arg5[%c1_369, %c0_370, %c26_371] : memref<2x8x256xf32, #tpu.memory_space<vmem>>, vector<1x8x128xf32>
    %963 = vector.shape_cast %962 : vector<1x8x128xf32> to vector<8x128xf32>
    %c0_i32_372 = arith.constant 0 : i32
    %964 = arith.addi %542, %c0_i32_372 : i32
    %c26_i32_373 = arith.constant 26 : i32
    %965 = arith.addi %964, %c26_i32_373 : i32
    %966 = arith.index_cast %965 : i32 to index
    %967 = memref.load %arg2[%966] : memref<264xf32, #tpu.memory_space<smem>>
    %968 = vector.broadcast %967 : f32 to vector<8x128xf32>
    %969 = arith.mulf %963, %968 : vector<8x128xf32>
    %970 = arith.addf %954, %969 : vector<8x128xf32>
    %c33_i32_374 = arith.constant 33 : i32
    %971 = arith.addi %542, %c33_i32_374 : i32
    %c26_i32_375 = arith.constant 26 : i32
    %972 = arith.addi %971, %c26_i32_375 : i32
    %973 = arith.index_cast %972 : i32 to index
    %974 = memref.load %arg2[%973] : memref<264xf32, #tpu.memory_space<smem>>
    %975 = vector.broadcast %974 : f32 to vector<8x128xf32>
    %976 = arith.mulf %963, %975 : vector<8x128xf32>
    %977 = arith.addf %961, %976 : vector<8x128xf32>
    %c1_376 = arith.constant 1 : index
    %c0_377 = arith.constant 0 : index
    %c27_378 = arith.constant 27 : index
    %978 = vector.load %arg5[%c1_376, %c0_377, %c27_378] : memref<2x8x256xf32, #tpu.memory_space<vmem>>, vector<1x8x128xf32>
    %979 = vector.shape_cast %978 : vector<1x8x128xf32> to vector<8x128xf32>
    %c0_i32_379 = arith.constant 0 : i32
    %980 = arith.addi %542, %c0_i32_379 : i32
    %c27_i32_380 = arith.constant 27 : i32
    %981 = arith.addi %980, %c27_i32_380 : i32
    %982 = arith.index_cast %981 : i32 to index
    %983 = memref.load %arg2[%982] : memref<264xf32, #tpu.memory_space<smem>>
    %984 = vector.broadcast %983 : f32 to vector<8x128xf32>
    %985 = arith.mulf %979, %984 : vector<8x128xf32>
    %986 = arith.addf %970, %985 : vector<8x128xf32>
    %c33_i32_381 = arith.constant 33 : i32
    %987 = arith.addi %542, %c33_i32_381 : i32
    %c27_i32_382 = arith.constant 27 : i32
    %988 = arith.addi %987, %c27_i32_382 : i32
    %989 = arith.index_cast %988 : i32 to index
    %990 = memref.load %arg2[%989] : memref<264xf32, #tpu.memory_space<smem>>
    %991 = vector.broadcast %990 : f32 to vector<8x128xf32>
    %992 = arith.mulf %979, %991 : vector<8x128xf32>
    %993 = arith.addf %977, %992 : vector<8x128xf32>
    %c1_383 = arith.constant 1 : index
    %c0_384 = arith.constant 0 : index
    %c28_385 = arith.constant 28 : index
    %994 = vector.load %arg5[%c1_383, %c0_384, %c28_385] : memref<2x8x256xf32, #tpu.memory_space<vmem>>, vector<1x8x128xf32>
    %995 = vector.shape_cast %994 : vector<1x8x128xf32> to vector<8x128xf32>
    %c0_i32_386 = arith.constant 0 : i32
    %996 = arith.addi %542, %c0_i32_386 : i32
    %c28_i32_387 = arith.constant 28 : i32
    %997 = arith.addi %996, %c28_i32_387 : i32
    %998 = arith.index_cast %997 : i32 to index
    %999 = memref.load %arg2[%998] : memref<264xf32, #tpu.memory_space<smem>>
    %1000 = vector.broadcast %999 : f32 to vector<8x128xf32>
    %1001 = arith.mulf %995, %1000 : vector<8x128xf32>
    %1002 = arith.addf %986, %1001 : vector<8x128xf32>
    %c33_i32_388 = arith.constant 33 : i32
    %1003 = arith.addi %542, %c33_i32_388 : i32
    %c28_i32_389 = arith.constant 28 : i32
    %1004 = arith.addi %1003, %c28_i32_389 : i32
    %1005 = arith.index_cast %1004 : i32 to index
    %1006 = memref.load %arg2[%1005] : memref<264xf32, #tpu.memory_space<smem>>
    %1007 = vector.broadcast %1006 : f32 to vector<8x128xf32>
    %1008 = arith.mulf %995, %1007 : vector<8x128xf32>
    %1009 = arith.addf %993, %1008 : vector<8x128xf32>
    %c1_390 = arith.constant 1 : index
    %c0_391 = arith.constant 0 : index
    %c29_392 = arith.constant 29 : index
    %1010 = vector.load %arg5[%c1_390, %c0_391, %c29_392] : memref<2x8x256xf32, #tpu.memory_space<vmem>>, vector<1x8x128xf32>
    %1011 = vector.shape_cast %1010 : vector<1x8x128xf32> to vector<8x128xf32>
    %c0_i32_393 = arith.constant 0 : i32
    %1012 = arith.addi %542, %c0_i32_393 : i32
    %c29_i32_394 = arith.constant 29 : i32
    %1013 = arith.addi %1012, %c29_i32_394 : i32
    %1014 = arith.index_cast %1013 : i32 to index
    %1015 = memref.load %arg2[%1014] : memref<264xf32, #tpu.memory_space<smem>>
    %1016 = vector.broadcast %1015 : f32 to vector<8x128xf32>
    %1017 = arith.mulf %1011, %1016 : vector<8x128xf32>
    %1018 = arith.addf %1002, %1017 : vector<8x128xf32>
    %c33_i32_395 = arith.constant 33 : i32
    %1019 = arith.addi %542, %c33_i32_395 : i32
    %c29_i32_396 = arith.constant 29 : i32
    %1020 = arith.addi %1019, %c29_i32_396 : i32
    %1021 = arith.index_cast %1020 : i32 to index
    %1022 = memref.load %arg2[%1021] : memref<264xf32, #tpu.memory_space<smem>>
    %1023 = vector.broadcast %1022 : f32 to vector<8x128xf32>
    %1024 = arith.mulf %1011, %1023 : vector<8x128xf32>
    %1025 = arith.addf %1009, %1024 : vector<8x128xf32>
    %c1_397 = arith.constant 1 : index
    %c0_398 = arith.constant 0 : index
    %c30_399 = arith.constant 30 : index
    %1026 = vector.load %arg5[%c1_397, %c0_398, %c30_399] : memref<2x8x256xf32, #tpu.memory_space<vmem>>, vector<1x8x128xf32>
    %1027 = vector.shape_cast %1026 : vector<1x8x128xf32> to vector<8x128xf32>
    %c0_i32_400 = arith.constant 0 : i32
    %1028 = arith.addi %542, %c0_i32_400 : i32
    %c30_i32_401 = arith.constant 30 : i32
    %1029 = arith.addi %1028, %c30_i32_401 : i32
    %1030 = arith.index_cast %1029 : i32 to index
    %1031 = memref.load %arg2[%1030] : memref<264xf32, #tpu.memory_space<smem>>
    %1032 = vector.broadcast %1031 : f32 to vector<8x128xf32>
    %1033 = arith.mulf %1027, %1032 : vector<8x128xf32>
    %1034 = arith.addf %1018, %1033 : vector<8x128xf32>
    %c33_i32_402 = arith.constant 33 : i32
    %1035 = arith.addi %542, %c33_i32_402 : i32
    %c30_i32_403 = arith.constant 30 : i32
    %1036 = arith.addi %1035, %c30_i32_403 : i32
    %1037 = arith.index_cast %1036 : i32 to index
    %1038 = memref.load %arg2[%1037] : memref<264xf32, #tpu.memory_space<smem>>
    %1039 = vector.broadcast %1038 : f32 to vector<8x128xf32>
    %1040 = arith.mulf %1027, %1039 : vector<8x128xf32>
    %1041 = arith.addf %1025, %1040 : vector<8x128xf32>
    %c1_404 = arith.constant 1 : index
    %c0_405 = arith.constant 0 : index
    %c31_406 = arith.constant 31 : index
    %1042 = vector.load %arg5[%c1_404, %c0_405, %c31_406] : memref<2x8x256xf32, #tpu.memory_space<vmem>>, vector<1x8x128xf32>
    %1043 = vector.shape_cast %1042 : vector<1x8x128xf32> to vector<8x128xf32>
    %c0_i32_407 = arith.constant 0 : i32
    %1044 = arith.addi %542, %c0_i32_407 : i32
    %c31_i32_408 = arith.constant 31 : i32
    %1045 = arith.addi %1044, %c31_i32_408 : i32
    %1046 = arith.index_cast %1045 : i32 to index
    %1047 = memref.load %arg2[%1046] : memref<264xf32, #tpu.memory_space<smem>>
    %1048 = vector.broadcast %1047 : f32 to vector<8x128xf32>
    %1049 = arith.mulf %1043, %1048 : vector<8x128xf32>
    %1050 = arith.addf %1034, %1049 : vector<8x128xf32>
    %c33_i32_409 = arith.constant 33 : i32
    %1051 = arith.addi %542, %c33_i32_409 : i32
    %c31_i32_410 = arith.constant 31 : i32
    %1052 = arith.addi %1051, %c31_i32_410 : i32
    %1053 = arith.index_cast %1052 : i32 to index
    %1054 = memref.load %arg2[%1053] : memref<264xf32, #tpu.memory_space<smem>>
    %1055 = vector.broadcast %1054 : f32 to vector<8x128xf32>
    %1056 = arith.mulf %1043, %1055 : vector<8x128xf32>
    %1057 = arith.addf %1041, %1056 : vector<8x128xf32>
    %c1_411 = arith.constant 1 : index
    %c0_412 = arith.constant 0 : index
    %c32_413 = arith.constant 32 : index
    %1058 = vector.load %arg5[%c1_411, %c0_412, %c32_413] : memref<2x8x256xf32, #tpu.memory_space<vmem>>, vector<1x8x128xf32>
    %1059 = vector.shape_cast %1058 : vector<1x8x128xf32> to vector<8x128xf32>
    %c0_i32_414 = arith.constant 0 : i32
    %1060 = arith.addi %542, %c0_i32_414 : i32
    %c32_i32_415 = arith.constant 32 : i32
    %1061 = arith.addi %1060, %c32_i32_415 : i32
    %1062 = arith.index_cast %1061 : i32 to index
    %1063 = memref.load %arg2[%1062] : memref<264xf32, #tpu.memory_space<smem>>
    %1064 = vector.broadcast %1063 : f32 to vector<8x128xf32>
    %1065 = arith.mulf %1059, %1064 : vector<8x128xf32>
    %1066 = arith.addf %1050, %1065 : vector<8x128xf32>
    %c33_i32_416 = arith.constant 33 : i32
    %1067 = arith.addi %542, %c33_i32_416 : i32
    %c32_i32_417 = arith.constant 32 : i32
    %1068 = arith.addi %1067, %c32_i32_417 : i32
    %1069 = arith.index_cast %1068 : i32 to index
    %1070 = memref.load %arg2[%1069] : memref<264xf32, #tpu.memory_space<smem>>
    %1071 = vector.broadcast %1070 : f32 to vector<8x128xf32>
    %1072 = arith.mulf %1059, %1071 : vector<8x128xf32>
    %1073 = arith.addf %1057, %1072 : vector<8x128xf32>
    %c2_418 = arith.constant 2 : index
    %c0_419 = arith.constant 0 : index
    %c0_420 = arith.constant 0 : index
    %1074 = vector.load %arg4[%c2_418, %c0_419, %c0_420] : memref<4x8x128xf32, #tpu.memory_space<vmem>>, vector<1x8x128xf32>
    %1075 = vector.shape_cast %1074 : vector<1x8x128xf32> to vector<8x128xf32>
    %1076 = vector.shape_cast %1066 : vector<8x128xf32> to vector<1x8x128xf32>
    tpu.vector_store %arg4[%c2_418, %c0_419, %c0_420], %1076 {strides = array<i32>} : memref<4x8x128xf32, #tpu.memory_space<vmem>>, vector<1x8x128xf32>,
    %c3_421 = arith.constant 3 : index
    %c0_422 = arith.constant 0 : index
    %c0_423 = arith.constant 0 : index
    %1077 = vector.load %arg4[%c3_421, %c0_422, %c0_423] : memref<4x8x128xf32, #tpu.memory_space<vmem>>, vector<1x8x128xf32>
    %1078 = vector.shape_cast %1077 : vector<1x8x128xf32> to vector<8x128xf32>
    %1079 = vector.shape_cast %1073 : vector<8x128xf32> to vector<1x8x128xf32>
    tpu.vector_store %arg4[%c3_421, %c0_422, %c0_423], %1079 {strides = array<i32>} : memref<4x8x128xf32, #tpu.memory_space<vmem>>, vector<1x8x128xf32>,
    return
  }
  func.func @transform_0(%arg0: i32, %arg1: i32) -> i32 {
    %c0_i32 = arith.constant 0 : i32
    %c0_i32_0 = arith.constant 0 : i32
    return %c0_i32 : i32
  }
  func.func @transform_1(%arg0: i32, %arg1: i32) -> (i32, i32, i32) {
    %c0_i32 = arith.constant 0 : i32
    %c0_i32_0 = arith.constant 0 : i32
    return %arg0, %arg1, %c0_i32 : i32, i32, i32
  }
  func.func @transform_2(%arg0: i32, %arg1: i32) -> (i32, i32, i32) {
    %c0_i32 = arith.constant 0 : i32
    %c0_i32_0 = arith.constant 0 : i32
    return %arg0, %arg1, %c0_i32 : i32, i32, i32
  }
}

</mosaic_0001>

<llo_original>
// kernel: tpu_custom_call.1
$region0: #{tpu_custom_call.1}
  #allocation0 [shape = 'u32[]', space=smem, size = 0x4, offset = 0x4, fixed_abs, tag = 'smem constant byte address 0x4 - core index']
  #allocation1 [shape = 'u32[144,128]{1,0:T(1,128)}', space=vmem, size = 0x12000, scoped, tag = 'internal scratch']
  %s0 = inlined_call_operand.hbm [shape: f32[8,128], index: 0, kind: input, shape index: {}]
  %s1 = inlined_call_operand.hbm [shape: f32[8,128], index: 1, kind: output, shape index: {}]
  %s2 = sld [smem:[#allocation0]]
  $region18: #{tpu_custom_call.1} parent=0
    _
  %s4 = ssub.s32 1, %s2
  %s5 = scalar_select 0, %s4, %s2
  $region1: #{tpu_custom_call.1} parent=0
    #allocation2 [shape = 'u8[4096]{0}', space=vmem, size = 0x1000, scoped, tag = 'input window, operand 0, single buffered']
    #allocation3 [shape = 's32[1]{0}', space=sflag, size = 0x4, scoped, tag = 'scoped memory for tpu_custom_call.1']
    #allocation4 [shape = 's32[1]{0}', space=sflag, size = 0x4, scoped, tag = 'scoped memory for tpu_custom_call.1']
    #allocation5 [shape = 'u8[4096]{0}', space=vmem, size = 0x1000, scoped, tag = 'output window, operand 0, single buffered']
    %6 = vsyncpa [#allocation3], 0
    %7 = vsyncpa [#allocation4], 0
    // Predicated region
    $region2: #{tpu_custom_call.1} parent=1 // pred_check
      _
    $region3: #{tpu_custom_call.1} parent=1 // pred_check_branch
      %9 = sbr.rel (0) target = $region5
    $region4: #{tpu_custom_call.1} parent=1 // pred_region
      %s11 = ssub.s32 128, 128
      %12 = vsyncadd [#allocation3], %s11
      %s14 = sshll.u32 [#allocation2], 4
      %s15 = int_to_ptr.vmem [resolvable:$true] %s14
      %17 = dma.hbm_to_vmem [thread:$0]  %s0, 128, %s15, [#allocation3]
    $region5: #{tpu_custom_call.1} parent=1 // pred_fallthru
      _
    // Predicated region
    $region6: #{tpu_custom_call.1} parent=1 // pred_check
      _
    $region7: #{tpu_custom_call.1} parent=1 // pred_check_branch
      %19 = sbr.rel (0) target = $region9
    $region8: #{tpu_custom_call.1} parent=1 // pred_region
      %20 = dma.done [#allocation3], 128
    $region9: #{tpu_custom_call.1} parent=1 // pred_fallthru
      _
    %v21 = vld [vmem:[#allocation2] sm:$0xff]
    %22 = vrot.lane.b32.xlu0 %v21, 1
    %v23 = vpop.permute.xlu0 %22
    %24 = vst [vmem:[#allocation5] sm:$0xff] %v23
    // Predicated region
    $region10: #{tpu_custom_call.1} parent=1 // pred_check
      _
    $region11: #{tpu_custom_call.1} parent=1 // pred_check_branch
      %26 = sbr.rel (0) target = $region13
    $region12: #{tpu_custom_call.1} parent=1 // pred_region
      %s28 = ssub.s32 128, 128
      %29 = vsyncadd [#allocation4], %s28
      %s31 = sshll.u32 [#allocation5], 4
      %s32 = int_to_ptr.vmem [resolvable:$true] %s31
      %34 = dma.vmem_to_hbm [thread:$0]  %s32, 128, %s1, [#allocation4]
    $region13: #{tpu_custom_call.1} parent=1 // pred_fallthru
      _
    // Predicated region
    $region14: #{tpu_custom_call.1} parent=1 // pred_check
      _
    $region15: #{tpu_custom_call.1} parent=1 // pred_check_branch
      %36 = sbr.rel (0) target = $region17
    $region16: #{tpu_custom_call.1} parent=1 // pred_region
      %37 = dma.done [#allocation4], 128
    $region17: #{tpu_custom_call.1} parent=1 // pred_fallthru
      _
    %38 = vsyncpa [#allocation3], 1
    %39 = vsyncpa [#allocation4], 1

// kernel: tpu_custom_call.1
$region0: #{tpu_custom_call.1}
  #allocation0 [shape = 'u32[]', space=smem, size = 0x4, offset = 0x4, fixed_abs, tag = 'smem constant byte address 0x4 - core index']
  #allocation1 [shape = 'u32[144,128]{1,0:T(1,128)}', space=vmem, size = 0x12000, scoped, tag = 'internal scratch']
  #allocation2 [shape = 'f32[2,8,256]{2,1,0:T(8,128)}', space=vmem, size = 0x4000, scoped, tag = 'scratch operand']
  %s0 = inlined_call_operand.hbm [shape: f32[264], index: 0, kind: input, shape index: {}]
  %s1 = inlined_call_operand.hbm [shape: f32[4,8,160], index: 1, kind: input, shape index: {}]
  %s2 = inlined_call_operand.hbm [shape: f32[8,8,128], index: 2, kind: output, shape index: {}]
  %s3 = sld [smem:[#allocation0]]
  $region49: #{tpu_custom_call.1} parent=0
    _
  %s5 = ssub.s32 1, %s3
  %s6 = scalar_select 0, %s5, %s3
  $region1: #{tpu_custom_call.1} parent=0
    #allocation3 [shape = 'u8[1536]{0}', space=smem, size = 0x600, scoped, tag = 'input window, operand 0, single buffered']
    #allocation4 [shape = 's32[2]{0}', space=sflag, size = 0x8, scoped, tag = 'scoped memory for tpu_custom_call.1']
    #allocation5 [shape = 's32[2]{0}', space=sflag, size = 0x8, scoped, tag = 'scoped memory for tpu_custom_call.1']
    #allocation6 [shape = 's32[2]{0}', space=sflag, size = 0x8, scoped, tag = 'scoped memory for tpu_custom_call.1']
    #allocation7 [shape = 'u8[32768]{0}', space=vmem, size = 0x8000, scoped, tag = 'input window, operand 1']
    #allocation8 [shape = 'u8[32768]{0}', space=vmem, size = 0x8000, scoped, tag = 'output window, operand 0']
    %7 = vsyncpa [#allocation6], 0
    %8 = vsyncpa [#allocation4], 0
    %s9 = scalar_lea.sflag [#allocation4], 1
    %10 = vsyncpa %s9, 0
    %11 = vsyncpa [#allocation5], 0
    %s12 = scalar_lea.sflag [#allocation5], 1
    %13 = vsyncpa %s12, 0
    loop: start=0, step=1, limit=4
    $region2: #{tpu_custom_call.1} parent=1 // loop_pre_header
      _
    $region3: #{tpu_custom_call.1} parent=1 // loop_header
      %s15 = sphi 0, %s19
      %p16 = scmp.ge.s32.totalorder %s15, 4
      %s22 = sphi 0, %s34
      %s23 = sphi 0, %s30
      %s24 = sphi 0, %s22
      %s25 = sphi 0, %s23
      %s26 = sphi 0, %s24
      %s27 = sphi 0, %s25
      %s35 = sphi 0, %s35
      %s37 = sphi 0, %s35
      %s38 = sphi 0, %s37
      %s52 = sphi 0, %s38
      %s60 = sphi 0, %s62
      %s63 = sphi 0, %s60
      %s64 = sphi 0, %s63
      %s80 = sphi 0, %s64
      %s88 = sphi 0, %s90
      %s91 = sphi 0, %s88
      %s92 = sphi 0, %s91
      %s108 = sphi 0, %s92
    $region4: #{tpu_custom_call.1} parent=1 // loop_header_branch
      %18 = sbr.rel (%p16) target = $region8
    $region5: #{tpu_custom_call.1} parent=1 // loop_body
      %s20 = ssub.s32 %s15, 1
      %s21 = ssub.s32 %s15, 2
      %s28 = sadd.s32 1, %s23
      %p29 = scmp.ge.s32.totalorder %s28, 1
      %s30 = scalar_select %p29, 0, %s28
      %s31 = sadd.s32 1, %s22
      %s32 = scalar_select %p29, %s31, %s22
      %p33 = scmp.ge.s32.totalorder %s32, 2
      %s34 = scalar_select %p33, 0, %s32
      %s36 = sadd.s32 %s35, 1
      %p39 = scmp.eq.s32.totalorder %s15, 1
      %p40 = scmp.ne.s32.totalorder %s35, %s37
      %p41 = scmp.eq.s32.totalorder %s15, 0
      %p42 = por %p40, %p41
      %p43 = scmp.ne.s32.totalorder %s35, %s37
      %p44 = scmp.eq.s32.totalorder %s20, 1
      %p45 = por %p43, %p44
      %p46 = scmp.ne.s32.totalorder %s37, %s38
      %p47 = scmp.eq.s32.totalorder %s20, 0
      %p48 = por %p46, %p47
      %p49 = scmp.ne.s32.totalorder %s37, %s38
      %p50 = scmp.eq.s32.totalorder %s21, 1
      %p51 = por %p49, %p50
      %p53 = scmp.ne.s32.totalorder %s38, %s52
      %p54 = scmp.eq.s32.totalorder %s21, 0
      %p55 = por %p53, %p54
      %s56 = ssub.s32 %s22, %s34
      %s57 = ssub.s32 %s23, %s30
      %s58 = sor.u32 %s56, %s57
      %p59 = scmp.eq.s32.totalorder %s58, 0
      %s61 = sadd.s32 %s60, 1
      %s62 = scalar_select %p59, %s60, %s61
      %p65 = pneg %p59
      %p66 = scmp.eq.s32.totalorder %s15, 1
      %p67 = por %p65, %p66
      %p68 = scmp.ne.s32.totalorder %s60, %s63
      %p69 = scmp.eq.s32.totalorder %s15, 0
      %p70 = por %p68, %p69
      %p71 = scmp.ne.s32.totalorder %s60, %s63
      %p72 = scmp.eq.s32.totalorder %s20, 1
      %p73 = por %p71, %p72
      %p74 = scmp.ne.s32.totalorder %s63, %s64
      %p75 = scmp.eq.s32.totalorder %s20, 0
      %p76 = por %p74, %p75
      %p77 = scmp.ne.s32.totalorder %s63, %s64
      %p78 = scmp.eq.s32.totalorder %s21, 1
      %p79 = por %p77, %p78
      %p81 = scmp.ne.s32.totalorder %s64, %s80
      %p82 = scmp.eq.s32.totalorder %s21, 0
      %p83 = por %p81, %p82
      %s84 = ssub.s32 %s22, %s34
      %s85 = ssub.s32 %s23, %s30
      %s86 = sor.u32 %s84, %s85
      %p87 = scmp.eq.s32.totalorder %s86, 0
      %s89 = sadd.s32 %s88, 1
      %s90 = scalar_select %p87, %s88, %s89
      %p93 = pneg %p87
      %p94 = scmp.eq.s32.totalorder %s15, 1
      %p95 = por %p93, %p94
      %p96 = scmp.ne.s32.totalorder %s88, %s91
      %p97 = scmp.eq.s32.totalorder %s15, 0
      %p98 = por %p96, %p97
      %p99 = scmp.ne.s32.totalorder %s88, %s91
      %p100 = scmp.eq.s32.totalorder %s20, 1
      %p101 = por %p99, %p100
      %p102 = scmp.ne.s32.totalorder %s91, %s92
      %p103 = scmp.eq.s32.totalorder %s20, 0
      %p104 = por %p102, %p103
      %p105 = scmp.ne.s32.totalorder %s91, %s92
      %p106 = scmp.eq.s32.totalorder %s21, 1
      %p107 = por %p105, %p106
      %p109 = scmp.ne.s32.totalorder %s92, %s108
      %p110 = scmp.eq.s32.totalorder %s21, 0
      %p111 = por %p109, %p110
      %p112 = scmp.le.s32.totalorder 1, %s15
      %p113 = scmp.lt.s32.totalorder %s15, 3
      %p114 = pnand %p112, %p113
      %p115 = pneg %p114
      // Predicated region
      $region9: #{tpu_custom_call.1} parent=5 // pred_check
        _
      $region10: #{tpu_custom_call.1} parent=5 // pred_check_branch
        %117 = sbr.rel (%p114) target = $region12
      $region11: #{tpu_custom_call.1} parent=5 // pred_region
        %s118 = ssub.s32 %s15, 1
        // Predicated region
        $region13: #{tpu_custom_call.1} parent=11 // pred_check
          %p119 = pneg %p48
        $region14: #{tpu_custom_call.1} parent=11 // pred_check_branch
          %121 = sbr.rel (%p119) target = $region16
        $region15: #{tpu_custom_call.1} parent=11 // pred_region
          %s123 = ssub.s32 48, 48
          %124 = vsyncadd [#allocation6], %s123
          %127 = dma.hbm_to_smem %s0, 48, [#allocation3], [#allocation6]
        $region16: #{tpu_custom_call.1} parent=11 // pred_fallthru
          _
      $region12: #{tpu_custom_call.1} parent=5 // pred_fallthru
        _
      %p128 = scmp.lt.s32.totalorder %s15, 2
      // Predicated region
      $region17: #{tpu_custom_call.1} parent=5 // pred_check
        %p129 = pneg %p128
      $region18: #{tpu_custom_call.1} parent=5 // pred_check_branch
        %131 = sbr.rel (%p129) target = $region20
      $region19: #{tpu_custom_call.1} parent=5 // pred_region
        // Predicated region
        $region21: #{tpu_custom_call.1} parent=19 // pred_check
          %p132 = pneg %p70
        $region22: #{tpu_custom_call.1} parent=19 // pred_check_branch
          %134 = sbr.rel (%p132) target = $region24
        $region23: #{tpu_custom_call.1} parent=19 // pred_region
          %s135 = sand.u32 %s60, 1
          %s136 = scalar_lea.sflag [#allocation4], %s135
          %s137 = sand.u32 %s60, 1
          %s138 = smul.addr %s137, 32
          %s139 = scalar_lea.vmem [#allocation7], %s138
          %s140 = smul.u32 2, %s22
          %s142 = ssub.s32 512, 512
          %143 = vsyncadd %s136, %s142
          %s144 = smul.addr %s23, 2
          %s145 = smul.addr %s140, 2
          %s146 = sadd.s32 %s144, %s145
          %s147 = smul.addr %s146, 128
          %s148 = scalar_lea.hbm %s1, %s147
          %s149 = sshll.u32 %s139, 4
          %s150 = int_to_ptr.vmem [resolvable:$true] %s149
          %155 = dma.hbm_to_vmem [thread:$0]  %s148, 512, %s150, %s136, 256, 256, 16
        $region24: #{tpu_custom_call.1} parent=19 // pred_fallthru
          _
      $region20: #{tpu_custom_call.1} parent=5 // pred_fallthru
        _
      %p156 = scmp.le.s32.totalorder 1, %s15
      %p157 = scmp.lt.s32.totalorder %s15, 3
      %p158 = pnand %p156, %p157
      %p159 = pneg %p158
      // Predicated region
      $region25: #{tpu_custom_call.1} parent=5 // pred_check
        _
      $region26: #{tpu_custom_call.1} parent=5 // pred_check_branch
        %161 = sbr.rel (%p158) target = $region28
      $region27: #{tpu_custom_call.1} parent=5 // pred_region
        %s162 = ssub.s32 %s15, 1
        // Predicated region
        $region29: #{tpu_custom_call.1} parent=27 // pred_check
          %p163 = pneg %p48
        $region30: #{tpu_custom_call.1} parent=27 // pred_check_branch
          %165 = sbr.rel (%p163) target = $region32
        $region31: #{tpu_custom_call.1} parent=27 // pred_region
          %166 = dma.done [#allocation6], 48
        $region32: #{tpu_custom_call.1} parent=27 // pred_fallthru
          _
        %s167 = sand.u32 %s63, 1
        %s168 = scalar_lea.sflag [#allocation4], %s167
        %s169 = sand.u32 %s63, 1
        %s170 = smul.addr %s169, 32
        %s171 = scalar_lea.vmem [#allocation7], %s170
        // Predicated region
        $region33: #{tpu_custom_call.1} parent=27 // pred_check
          %p172 = pneg %p76
        $region34: #{tpu_custom_call.1} parent=27 // pred_check_branch
          %174 = sbr.rel (%p172) target = $region36
        $region35: #{tpu_custom_call.1} parent=27 // pred_region
          %175 = dma.done %s168, 512
        $region36: #{tpu_custom_call.1} parent=27 // pred_fallthru
          _
        %176 = sfence
        %p177 = pneg %p48
        %p178 = pneg %p45
        %s179 = sand.u32 %s63, 1
        %s180 = scalar_lea.sflag [#allocation4], %s179
        %s181 = sand.u32 %s63, 1
        %s182 = smul.addr %s181, 32
        %s183 = scalar_lea.vmem [#allocation7], %s182
        %p184 = pneg %p76
        %p185 = pneg %p73
        %p186 = pneg %p104
        %p187 = pneg %p101
        %s188 = sand.u32 %s91, 1
        %s189 = scalar_lea.sflag [#allocation5], %s188
        %s190 = sand.u32 %s91, 1
        %s191 = smul.addr %s190, 32
        %s192 = scalar_lea.vmem [#allocation8], %s191
        %s193 = smul.u32 2, %s24
        %s194 = smul.u32 4, %s24
        %s195 = smul.u32 %s24, 132
        %v196 = vld [vmem:[%s171] sm:$0xff]
        %v197 = vld [vmem:[%s171 + $0x8] sm:$0xff]
        %198 = vst [vmem:[#allocation2] sm:$0xff] %v196
        %vm199 = vcmask 261120
        %200 = vst.msk [vmem:[#allocation2 + $0x8] sm:$0xff] %vm199, %v197
        %v201 = vld [vmem:[#allocation2] sm:$0xff]
        %s202 = sld [smem:[#allocation3 + %s195]]
        %v203 = vstv %s202
        %v204 = vmul.f32 %v201, %v203
        %s205 = sadd.s32 %s195, 33
        %s206 = sld [smem:[#allocation3 + %s205]]
        %v207 = vstv %s206
        %v208 = vmul.f32 %v201, %v207
        %v209 = vld [vmem:[#allocation2] sm:$0xff]
        %v210 = vld [vmem:[#allocation2 + $0x8] sm:$0xff]
        %s211 = sadd.s32 %s195, 1
        %s212 = sld [smem:[#allocation3 + %s211]]
        %v213 = vstv %s212
        %v214 = vmul.f32 %v209, %v213
        %v215 = vmul.f32 %v210, %v213
        %218 = vrot.lane.b32.xlu0 %v214, 127
        %v219 = vpop.permute.xlu0 %218
        %220 = vrot.lane.b32.xlu0 %v215, 127
        %v221 = vpop.permute.xlu0 %220
        %vm222 = vcmask 1039360
        %v223 = vsel %vm222, %v219, %v221
        %v225 = vadd.f32 %v204, %v223
        %s226 = sadd.s32 %s195, 34
        %s227 = sld [smem:[#allocation3 + %s226]]
        %v228 = vstv %s227
        %v229 = vmul.f32 %v209, %v228
        %v230 = vmul.f32 %v210, %v228
        %233 = vrot.lane.b32.xlu0 %v229, 127
        %v234 = vpop.permute.xlu0 %233
        %235 = vrot.lane.b32.xlu0 %v230, 127
        %v236 = vpop.permute.xlu0 %235
        %v237 = vsel %vm222, %v234, %v236
        %v239 = vadd.f32 %v208, %v237
        %s240 = sadd.s32 %s195, 2
        %s241 = sld [smem:[#allocation3 + %s240]]
        %v242 = vstv %s241
        %v243 = vmul.f32 %v209, %v242
        %v244 = vmul.f32 %v210, %v242
        %247 = vrot.lane.b32.xlu0 %v243, 126
        %v248 = vpop.permute.xlu0 %247
        %249 = vrot.lane.b32.xlu0 %v244, 126
        %v250 = vpop.permute.xlu0 %249
        %vm251 = vcmask 1031168
        %v252 = vsel %vm251, %v248, %v250
        %v254 = vadd.f32 %v225, %v252
        %s255 = sadd.s32 %s195, 35
        %s256 = sld [smem:[#allocation3 + %s255]]
        %v257 = vstv %s256
        %v258 = vmul.f32 %v209, %v257
        %v259 = vmul.f32 %v210, %v257
        %262 = vrot.lane.b32.xlu0 %v258, 126
        %v263 = vpop.permute.xlu0 %262
        %264 = vrot.lane.b32.xlu0 %v259, 126
        %v265 = vpop.permute.xlu0 %264
        %v266 = vsel %vm251, %v263, %v265
        %v268 = vadd.f32 %v239, %v266
        %s269 = sadd.s32 %s195, 3
        %s270 = sld [smem:[#allocation3 + %s269]]
        %v271 = vstv %s270
        %v272 = vmul.f32 %v209, %v271
        %v273 = vmul.f32 %v210, %v271
        %276 = vrot.lane.b32.xlu0 %v272, 125
        %v277 = vpop.permute.xlu0 %276
        %278 = vrot.lane.b32.xlu0 %v273, 125
        %v279 = vpop.permute.xlu0 %278
        %vm280 = vcmask 1022976
        %v281 = vsel %vm280, %v277, %v279
        %v283 = vadd.f32 %v254, %v281
        %s284 = sadd.s32 %s195, 36
        %s285 = sld [smem:[#allocation3 + %s284]]
        %v286 = vstv %s285
        %v287 = vmul.f32 %v209, %v286
        %v288 = vmul.f32 %v210, %v286
        %291 = vrot.lane.b32.xlu0 %v287, 125
        %v292 = vpop.permute.xlu0 %291
        %293 = vrot.lane.b32.xlu0 %v288, 125
        %v294 = vpop.permute.xlu0 %293
        %v295 = vsel %vm280, %v292, %v294
        %v297 = vadd.f32 %v268, %v295
        %s298 = sadd.s32 %s195, 4
        %s299 = sld [smem:[#allocation3 + %s298]]
        %v300 = vstv %s299
        %v301 = vmul.f32 %v209, %v300
        %v302 = vmul.f32 %v210, %v300
        %305 = vrot.lane.b32.xlu0 %v301, 124
        %v306 = vpop.permute.xlu0 %305
        %307 = vrot.lane.b32.xlu0 %v302, 124
        %v308 = vpop.permute.xlu0 %307
        %vm309 = vcmask 1014784
        %v310 = vsel %vm309, %v306, %v308
        %v312 = vadd.f32 %v283, %v310
        %s313 = sadd.s32 %s195, 37
        %s314 = sld [smem:[#allocation3 + %s313]]
        %v315 = vstv %s314
        %v316 = vmul.f32 %v209, %v315
        %v317 = vmul.f32 %v210, %v315
        %320 = vrot.lane.b32.xlu0 %v316, 124
        %v321 = vpop.permute.xlu0 %320
        %322 = vrot.lane.b32.xlu0 %v317, 124
        %v323 = vpop.permute.xlu0 %322
        %v324 = vsel %vm309, %v321, %v323
        %v326 = vadd.f32 %v297, %v324
        %s327 = sadd.s32 %s195, 5
        %s328 = sld [smem:[#allocation3 + %s327]]
        %v329 = vstv %s328
        %v330 = vmul.f32 %v209, %v329
        %v331 = vmul.f32 %v210, %v329
        %334 = vrot.lane.b32.xlu0 %v330, 123
        %v335 = vpop.permute.xlu0 %334
        %336 = vrot.lane.b32.xlu0 %v331, 123
        %v337 = vpop.permute.xlu0 %336
        %vm338 = vcmask 1006592
        %v339 = vsel %vm338, %v335, %v337
        %v341 = vadd.f32 %v312, %v339
        %s342 = sadd.s32 %s195, 38
        %s343 = sld [smem:[#allocation3 + %s342]]
        %v344 = vstv %s343
        %v345 = vmul.f32 %v209, %v344
        %v346 = vmul.f32 %v210, %v344
        %349 = vrot.lane.b32.xlu0 %v345, 123
        %v350 = vpop.permute.xlu0 %349
        %351 = vrot.lane.b32.xlu0 %v346, 123
        %v352 = vpop.permute.xlu0 %351
        %v353 = vsel %vm338, %v350, %v352
        %v355 = vadd.f32 %v326, %v353
        %s356 = sadd.s32 %s195, 6
        %s357 = sld [smem:[#allocation3 + %s356]]
        %v358 = vstv %s357
        %v359 = vmul.f32 %v209, %v358
        %v360 = vmul.f32 %v210, %v358
        %363 = vrot.lane.b32.xlu0 %v359, 122
        %v364 = vpop.permute.xlu0 %363
        %365 = vrot.lane.b32.xlu0 %v360, 122
        %v366 = vpop.permute.xlu0 %365
        %vm367 = vcmask 998400
        %v368 = vsel %vm367, %v364, %v366
        %v370 = vadd.f32 %v341, %v368
        %s371 = sadd.s32 %s195, 39
        %s372 = sld [smem:[#allocation3 + %s371]]
        %v373 = vstv %s372
        %v374 = vmul.f32 %v209, %v373
        %v375 = vmul.f32 %v210, %v373
        %378 = vrot.lane.b32.xlu0 %v374, 122
        %v379 = vpop.permute.xlu0 %378
        %380 = vrot.lane.b32.xlu0 %v375, 122
        %v381 = vpop.permute.xlu0 %380
        %v382 = vsel %vm367, %v379, %v381
        %v384 = vadd.f32 %v355, %v382
        %s385 = sadd.s32 %s195, 7
        %s386 = sld [smem:[#allocation3 + %s385]]
        %v387 = vstv %s386
        %v388 = vmul.f32 %v209, %v387
        %v389 = vmul.f32 %v210, %v387
        %392 = vrot.lane.b32.xlu0 %v388, 121
        %v393 = vpop.permute.xlu0 %392
        %394 = vrot.lane.b32.xlu0 %v389, 121
        %v395 = vpop.permute.xlu0 %394
        %vm396 = vcmask 990208
        %v397 = vsel %vm396, %v393, %v395
        %v399 = vadd.f32 %v370, %v397
        %s400 = sadd.s32 %s195, 40
        %s401 = sld [smem:[#allocation3 + %s400]]
        %v402 = vstv %s401
        %v403 = vmul.f32 %v209, %v402
        %v404 = vmul.f32 %v210, %v402
        %407 = vrot.lane.b32.xlu0 %v403, 121
        %v408 = vpop.permute.xlu0 %407
        %409 = vrot.lane.b32.xlu0 %v404, 121
        %v410 = vpop.permute.xlu0 %409
        %v411 = vsel %vm396, %v408, %v410
        %v413 = vadd.f32 %v384, %v411
        %s414 = sadd.s32 %s195, 8
        %s415 = sld [smem:[#allocation3 + %s414]]
        %v416 = vstv %s415
        %v417 = vmul.f32 %v209, %v416
        %v418 = vmul.f32 %v210, %v416
        %421 = vrot.lane.b32.xlu0 %v417, 120
        %v422 = vpop.permute.xlu0 %421
        %423 = vrot.lane.b32.xlu0 %v418, 120
        %v424 = vpop.permute.xlu0 %423
        %vm425 = vcmask 982016
        %v426 = vsel %vm425, %v422, %v424
        %v428 = vadd.f32 %v399, %v426
        %s429 = sadd.s32 %s195, 41
        %s430 = sld [smem:[#allocation3 + %s429]]
        %v431 = vstv %s430
        %v432 = vmul.f32 %v209, %v431
        %v433 = vmul.f32 %v210, %v431
        %436 = vrot.lane.b32.xlu0 %v432, 120
        %v437 = vpop.permute.xlu0 %436
        %438 = vrot.lane.b32.xlu0 %v433, 120
        %v439 = vpop.permute.xlu0 %438
        %v440 = vsel %vm425, %v437, %v439
        %v442 = vadd.f32 %v413, %v440
        %s443 = sadd.s32 %s195, 9
        %s444 = sld [smem:[#allocation3 + %s443]]
        %v445 = vstv %s444
        %v446 = vmul.f32 %v209, %v445
        %v447 = vmul.f32 %v210, %v445
        %450 = vrot.lane.b32.xlu0 %v446, 119
        %v451 = vpop.permute.xlu0 %450
        %452 = vrot.lane.b32.xlu0 %v447, 119
        %v453 = vpop.permute.xlu0 %452
        %vm454 = vcmask 973824
        %v455 = vsel %vm454, %v451, %v453
        %v457 = vadd.f32 %v428, %v455
        %s458 = sadd.s32 %s195, 42
        %s459 = sld [smem:[#allocation3 + %s458]]
        %v460 = vstv %s459
        %v461 = vmul.f32 %v209, %v460
        %v462 = vmul.f32 %v210, %v460
        %465 = vrot.lane.b32.xlu0 %v461, 119
        %v466 = vpop.permute.xlu0 %465
        %467 = vrot.lane.b32.xlu0 %v462, 119
        %v468 = vpop.permute.xlu0 %467
        %v469 = vsel %vm454, %v466, %v468
        %v471 = vadd.f32 %v442, %v469
        %s472 = sadd.s32 %s195, 10
        %s473 = sld [smem:[#allocation3 + %s472]]
        %v474 = vstv %s473
        %v475 = vmul.f32 %v209, %v474
        %v476 = vmul.f32 %v210, %v474
        %479 = vrot.lane.b32.xlu0 %v475, 118
        %v480 = vpop.permute.xlu0 %479
        %481 = vrot.lane.b32.xlu0 %v476, 118
        %v482 = vpop.permute.xlu0 %481
        %vm483 = vcmask 965632
        %v484 = vsel %vm483, %v480, %v482
        %v486 = vadd.f32 %v457, %v484
        %s487 = sadd.s32 %s195, 43
        %s488 = sld [smem:[#allocation3 + %s487]]
        %v489 = vstv %s488
        %v490 = vmul.f32 %v209, %v489
        %v491 = vmul.f32 %v210, %v489
        %494 = vrot.lane.b32.xlu0 %v490, 118
        %v495 = vpop.permute.xlu0 %494
        %496 = vrot.lane.b32.xlu0 %v491, 118
        %v497 = vpop.permute.xlu0 %496
        %v498 = vsel %vm483, %v495, %v497
        %v500 = vadd.f32 %v471, %v498
        %s501 = sadd.s32 %s195, 11
        %s502 = sld [smem:[#allocation3 + %s501]]
        %v503 = vstv %s502
        %v504 = vmul.f32 %v209, %v503
        %v505 = vmul.f32 %v210, %v503
        %508 = vrot.lane.b32.xlu0 %v504, 117
        %v509 = vpop.permute.xlu0 %508
        %510 = vrot.lane.b32.xlu0 %v505, 117
        %v511 = vpop.permute.xlu0 %510
        %vm512 = vcmask 957440
        %v513 = vsel %vm512, %v509, %v511
        %v515 = vadd.f32 %v486, %v513
        %s516 = sadd.s32 %s195, 44
        %s517 = sld [smem:[#allocation3 + %s516]]
        %v518 = vstv %s517
        %v519 = vmul.f32 %v209, %v518
        %v520 = vmul.f32 %v210, %v518
        %523 = vrot.lane.b32.xlu0 %v519, 117
        %v524 = vpop.permute.xlu0 %523
        %525 = vrot.lane.b32.xlu0 %v520, 117
        %v526 = vpop.permute.xlu0 %525
        %v527 = vsel %vm512, %v524, %v526
        %v529 = vadd.f32 %v500, %v527
        %s530 = sadd.s32 %s195, 12
        %s531 = sld [smem:[#allocation3 + %s530]]
        %v532 = vstv %s531
        %v533 = vmul.f32 %v209, %v532
        %v534 = vmul.f32 %v210, %v532
        %537 = vrot.lane.b32.xlu0 %v533, 116
        %v538 = vpop.permute.xlu0 %537
        %539 = vrot.lane.b32.xlu0 %v534, 116
        %v540 = vpop.permute.xlu0 %539
        %vm541 = vcmask 949248
        %v542 = vsel %vm541, %v538, %v540
        %v544 = vadd.f32 %v515, %v542
        %s545 = sadd.s32 %s195, 45
        %s546 = sld [smem:[#allocation3 + %s545]]
        %v547 = vstv %s546
        %v548 = vmul.f32 %v209, %v547
        %v549 = vmul.f32 %v210, %v547
        %552 = vrot.lane.b32.xlu0 %v548, 116
        %v553 = vpop.permute.xlu0 %552
        %554 = vrot.lane.b32.xlu0 %v549, 116
        %v555 = vpop.permute.xlu0 %554
        %v556 = vsel %vm541, %v553, %v555
        %v558 = vadd.f32 %v529, %v556
        %s559 = sadd.s32 %s195, 13
        %s560 = sld [smem:[#allocation3 + %s559]]
        %v561 = vstv %s560
        %v562 = vmul.f32 %v209, %v561
        %v563 = vmul.f32 %v210, %v561
        %566 = vrot.lane.b32.xlu0 %v562, 115
        %v567 = vpop.permute.xlu0 %566
        %568 = vrot.lane.b32.xlu0 %v563, 115
        %v569 = vpop.permute.xlu0 %568
        %vm570 = vcmask 941056
        %v571 = vsel %vm570, %v567, %v569
        %v573 = vadd.f32 %v544, %v571
        %s574 = sadd.s32 %s195, 46
        %s575 = sld [smem:[#allocation3 + %s574]]
        %v576 = vstv %s575
        %v577 = vmul.f32 %v209, %v576
        %v578 = vmul.f32 %v210, %v576
        %581 = vrot.lane.b32.xlu0 %v577, 115
        %v582 = vpop.permute.xlu0 %581
        %583 = vrot.lane.b32.xlu0 %v578, 115
        %v584 = vpop.permute.xlu0 %583
        %v585 = vsel %vm570, %v582, %v584
        %v587 = vadd.f32 %v558, %v585
        %s588 = sadd.s32 %s195, 14
        %s589 = sld [smem:[#allocation3 + %s588]]
        %v590 = vstv %s589
        %v591 = vmul.f32 %v209, %v590
        %v592 = vmul.f32 %v210, %v590
        %595 = vrot.lane.b32.xlu0 %v591, 114
        %v596 = vpop.permute.xlu0 %595
        %597 = vrot.lane.b32.xlu0 %v592, 114
        %v598 = vpop.permute.xlu0 %597
        %vm599 = vcmask 932864
        %v600 = vsel %vm599, %v596, %v598
        %v602 = vadd.f32 %v573, %v600
        %s603 = sadd.s32 %s195, 47
        %s604 = sld [smem:[#allocation3 + %s603]]
        %v605 = vstv %s604
        %v606 = vmul.f32 %v209, %v605
        %v607 = vmul.f32 %v210, %v605
        %610 = vrot.lane.b32.xlu0 %v606, 114
        %v611 = vpop.permute.xlu0 %610
        %612 = vrot.lane.b32.xlu0 %v607, 114
        %v613 = vpop.permute.xlu0 %612
        %v614 = vsel %vm599, %v611, %v613
        %v616 = vadd.f32 %v587, %v614
        %s617 = sadd.s32 %s195, 15
        %s618 = sld [smem:[#allocation3 + %s617]]
        %v619 = vstv %s618
        %v620 = vmul.f32 %v209, %v619
        %v621 = vmul.f32 %v210, %v619
        %624 = vrot.lane.b32.xlu0 %v620, 113
        %v625 = vpop.permute.xlu0 %624
        %626 = vrot.lane.b32.xlu0 %v621, 113
        %v627 = vpop.permute.xlu0 %626
        %vm628 = vcmask 924672
        %v629 = vsel %vm628, %v625, %v627
        %v631 = vadd.f32 %v602, %v629
        %s632 = sadd.s32 %s195, 48
        %s633 = sld [smem:[#allocation3 + %s632]]
        %v634 = vstv %s633
        %v635 = vmul.f32 %v209, %v634
        %v636 = vmul.f32 %v210, %v634
        %639 = vrot.lane.b32.xlu0 %v635, 113
        %v640 = vpop.permute.xlu0 %639
        %641 = vrot.lane.b32.xlu0 %v636, 113
        %v642 = vpop.permute.xlu0 %641
        %v643 = vsel %vm628, %v640, %v642
        %v645 = vadd.f32 %v616, %v643
        %s646 = sadd.s32 %s195, 16
        %s647 = sld [smem:[#allocation3 + %s646]]
        %v648 = vstv %s647
        %v649 = vmul.f32 %v209, %v648
        %v650 = vmul.f32 %v210, %v648
        %653 = vrot.lane.b32.xlu0 %v649, 112
        %v654 = vpop.permute.xlu0 %653
        %655 = vrot.lane.b32.xlu0 %v650, 112
        %v656 = vpop.permute.xlu0 %655
        %vm657 = vcmask 916480
        %v658 = vsel %vm657, %v654, %v656
        %v660 = vadd.f32 %v631, %v658
        %s661 = sadd.s32 %s195, 49
        %s662 = sld [smem:[#allocation3 + %s661]]
        %v663 = vstv %s662
        %v664 = vmul.f32 %v209, %v663
        %v665 = vmul.f32 %v210, %v663
        %668 = vrot.lane.b32.xlu0 %v664, 112
        %v669 = vpop.permute.xlu0 %668
        %670 = vrot.lane.b32.xlu0 %v665, 112
        %v671 = vpop.permute.xlu0 %670
        %v672 = vsel %vm657, %v669, %v671
        %v674 = vadd.f32 %v645, %v672
        %s675 = sadd.s32 %s195, 17
        %s676 = sld [smem:[#allocation3 + %s675]]
        %v677 = vstv %s676
        %v678 = vmul.f32 %v209, %v677
        %v679 = vmul.f32 %v210, %v677
        %682 = vrot.lane.b32.xlu0 %v678, 111
        %v683 = vpop.permute.xlu0 %682
        %684 = vrot.lane.b32.xlu0 %v679, 111
        %v685 = vpop.permute.xlu0 %684
        %vm686 = vcmask 908288
        %v687 = vsel %vm686, %v683, %v685
        %v689 = vadd.f32 %v660, %v687
        %s690 = sadd.s32 %s195, 50
        %s691 = sld [smem:[#allocation3 + %s690]]
        %v692 = vstv %s691
        %v693 = vmul.f32 %v209, %v692
        %v694 = vmul.f32 %v210, %v692
        %697 = vrot.lane.b32.xlu0 %v693, 111
        %v698 = vpop.permute.xlu0 %697
        %699 = vrot.lane.b32.xlu0 %v694, 111
        %v700 = vpop.permute.xlu0 %699
        %v701 = vsel %vm686, %v698, %v700
        %v703 = vadd.f32 %v674, %v701
        %s704 = sadd.s32 %s195, 18
        %s705 = sld [smem:[#allocation3 + %s704]]
        %v706 = vstv %s705
        %v707 = vmul.f32 %v209, %v706
        %v708 = vmul.f32 %v210, %v706
        %711 = vrot.lane.b32.xlu0 %v707, 110
        %v712 = vpop.permute.xlu0 %711
        %713 = vrot.lane.b32.xlu0 %v708, 110
        %v714 = vpop.permute.xlu0 %713
        %vm715 = vcmask 900096
        %v716 = vsel %vm715, %v712, %v714
        %v718 = vadd.f32 %v689, %v716
        %s719 = sadd.s32 %s195, 51
        %s720 = sld [smem:[#allocation3 + %s719]]
        %v721 = vstv %s720
        %v722 = vmul.f32 %v209, %v721
        %v723 = vmul.f32 %v210, %v721
        %726 = vrot.lane.b32.xlu0 %v722, 110
        %v727 = vpop.permute.xlu0 %726
        %728 = vrot.lane.b32.xlu0 %v723, 110
        %v729 = vpop.permute.xlu0 %728
        %v730 = vsel %vm715, %v727, %v729
        %v732 = vadd.f32 %v703, %v730
        %s733 = sadd.s32 %s195, 19
        %s734 = sld [smem:[#allocation3 + %s733]]
        %v735 = vstv %s734
        %v736 = vmul.f32 %v209, %v735
        %v737 = vmul.f32 %v210, %v735
        %740 = vrot.lane.b32.xlu0 %v736, 109
        %v741 = vpop.permute.xlu0 %740
        %742 = vrot.lane.b32.xlu0 %v737, 109
        %v743 = vpop.permute.xlu0 %742
        %vm744 = vcmask 891904
        %v745 = vsel %vm744, %v741, %v743
        %v747 = vadd.f32 %v718, %v745
        %s748 = sadd.s32 %s195, 52
        %s749 = sld [smem:[#allocation3 + %s748]]
        %v750 = vstv %s749
        %v751 = vmul.f32 %v209, %v750
        %v752 = vmul.f32 %v210, %v750
        %755 = vrot.lane.b32.xlu0 %v751, 109
        %v756 = vpop.permute.xlu0 %755
        %757 = vrot.lane.b32.xlu0 %v752, 109
        %v758 = vpop.permute.xlu0 %757
        %v759 = vsel %vm744, %v756, %v758
        %v761 = vadd.f32 %v732, %v759
        %s762 = sadd.s32 %s195, 20
        %s763 = sld [smem:[#allocation3 + %s762]]
        %v764 = vstv %s763
        %v765 = vmul.f32 %v209, %v764
        %v766 = vmul.f32 %v210, %v764
        %769 = vrot.lane.b32.xlu0 %v765, 108
        %v770 = vpop.permute.xlu0 %769
        %771 = vrot.lane.b32.xlu0 %v766, 108
        %v772 = vpop.permute.xlu0 %771
        %vm773 = vcmask 883712
        %v774 = vsel %vm773, %v770, %v772
        %v776 = vadd.f32 %v747, %v774
        %s777 = sadd.s32 %s195, 53
        %s778 = sld [smem:[#allocation3 + %s777]]
        %v779 = vstv %s778
        %v780 = vmul.f32 %v209, %v779
        %v781 = vmul.f32 %v210, %v779
        %784 = vrot.lane.b32.xlu0 %v780, 108
        %v785 = vpop.permute.xlu0 %784
        %786 = vrot.lane.b32.xlu0 %v781, 108
        %v787 = vpop.permute.xlu0 %786
        %v788 = vsel %vm773, %v785, %v787
        %v790 = vadd.f32 %v761, %v788
        %s791 = sadd.s32 %s195, 21
        %s792 = sld [smem:[#allocation3 + %s791]]
        %v793 = vstv %s792
        %v794 = vmul.f32 %v209, %v793
        %v795 = vmul.f32 %v210, %v793
        %798 = vrot.lane.b32.xlu0 %v794, 107
        %v799 = vpop.permute.xlu0 %798
        %800 = vrot.lane.b32.xlu0 %v795, 107
        %v801 = vpop.permute.xlu0 %800
        %vm802 = vcmask 875520
        %v803 = vsel %vm802, %v799, %v801
        %v805 = vadd.f32 %v776, %v803
        %s806 = sadd.s32 %s195, 54
        %s807 = sld [smem:[#allocation3 + %s806]]
        %v808 = vstv %s807
        %v809 = vmul.f32 %v209, %v808
        %v810 = vmul.f32 %v210, %v808
        %813 = vrot.lane.b32.xlu0 %v809, 107
        %v814 = vpop.permute.xlu0 %813
        %815 = vrot.lane.b32.xlu0 %v810, 107
        %v816 = vpop.permute.xlu0 %815
        %v817 = vsel %vm802, %v814, %v816
        %v819 = vadd.f32 %v790, %v817
        %s820 = sadd.s32 %s195, 22
        %s821 = sld [smem:[#allocation3 + %s820]]
        %v822 = vstv %s821
        %v823 = vmul.f32 %v209, %v822
        %v824 = vmul.f32 %v210, %v822
        %827 = vrot.lane.b32.xlu0 %v823, 106
        %v828 = vpop.permute.xlu0 %827
        %829 = vrot.lane.b32.xlu0 %v824, 106
        %v830 = vpop.permute.xlu0 %829
        %vm831 = vcmask 867328
        %v832 = vsel %vm831, %v828, %v830
        %v834 = vadd.f32 %v805, %v832
        %s835 = sadd.s32 %s195, 55
        %s836 = sld [smem:[#allocation3 + %s835]]
        %v837 = vstv %s836
        %v838 = vmul.f32 %v209, %v837
        %v839 = vmul.f32 %v210, %v837
        %842 = vrot.lane.b32.xlu0 %v838, 106
        %v843 = vpop.permute.xlu0 %842
        %844 = vrot.lane.b32.xlu0 %v839, 106
        %v845 = vpop.permute.xlu0 %844
        %v846 = vsel %vm831, %v843, %v845
        %v848 = vadd.f32 %v819, %v846
        %s849 = sadd.s32 %s195, 23
        %s850 = sld [smem:[#allocation3 + %s849]]
        %v851 = vstv %s850
        %v852 = vmul.f32 %v209, %v851
        %v853 = vmul.f32 %v210, %v851
        %856 = vrot.lane.b32.xlu0 %v852, 105
        %v857 = vpop.permute.xlu0 %856
        %858 = vrot.lane.b32.xlu0 %v853, 105
        %v859 = vpop.permute.xlu0 %858
        %vm860 = vcmask 859136
        %v861 = vsel %vm860, %v857, %v859
        %v863 = vadd.f32 %v834, %v861
        %s864 = sadd.s32 %s195, 56
        %s865 = sld [smem:[#allocation3 + %s864]]
        %v866 = vstv %s865
        %v867 = vmul.f32 %v209, %v866
        %v868 = vmul.f32 %v210, %v866
        %871 = vrot.lane.b32.xlu0 %v867, 105
        %v872 = vpop.permute.xlu0 %871
        %873 = vrot.lane.b32.xlu0 %v868, 105
        %v874 = vpop.permute.xlu0 %873
        %v875 = vsel %vm860, %v872, %v874
        %v877 = vadd.f32 %v848, %v875
        %s878 = sadd.s32 %s195, 24
        %s879 = sld [smem:[#allocation3 + %s878]]
        %v880 = vstv %s879
        %v881 = vmul.f32 %v209, %v880
        %v882 = vmul.f32 %v210, %v880
        %885 = vrot.lane.b32.xlu0 %v881, 104
        %v886 = vpop.permute.xlu0 %885
        %887 = vrot.lane.b32.xlu0 %v882, 104
        %v888 = vpop.permute.xlu0 %887
        %vm889 = vcmask 850944
        %v890 = vsel %vm889, %v886, %v888
        %v892 = vadd.f32 %v863, %v890
        %s893 = sadd.s32 %s195, 57
        %s894 = sld [smem:[#allocation3 + %s893]]
        %v895 = vstv %s894
        %v896 = vmul.f32 %v209, %v895
        %v897 = vmul.f32 %v210, %v895
        %900 = vrot.lane.b32.xlu0 %v896, 104
        %v901 = vpop.permute.xlu0 %900
        %902 = vrot.lane.b32.xlu0 %v897, 104
        %v903 = vpop.permute.xlu0 %902
        %v904 = vsel %vm889, %v901, %v903
        %v906 = vadd.f32 %v877, %v904
        %s907 = sadd.s32 %s195, 25
        %s908 = sld [smem:[#allocation3 + %s907]]
        %v909 = vstv %s908
        %v910 = vmul.f32 %v209, %v909
        %v911 = vmul.f32 %v210, %v909
        %914 = vrot.lane.b32.xlu0 %v910, 103
        %v915 = vpop.permute.xlu0 %914
        %916 = vrot.lane.b32.xlu0 %v911, 103
        %v917 = vpop.permute.xlu0 %916
        %vm918 = vcmask 842752
        %v919 = vsel %vm918, %v915, %v917
        %v921 = vadd.f32 %v892, %v919
        %s922 = sadd.s32 %s195, 58
        %s923 = sld [smem:[#allocation3 + %s922]]
        %v924 = vstv %s923
        %v925 = vmul.f32 %v209, %v924
        %v926 = vmul.f32 %v210, %v924
        %929 = vrot.lane.b32.xlu0 %v925, 103
        %v930 = vpop.permute.xlu0 %929
        %931 = vrot.lane.b32.xlu0 %v926, 103
        %v932 = vpop.permute.xlu0 %931
        %v933 = vsel %vm918, %v930, %v932
        %v935 = vadd.f32 %v906, %v933
        %s936 = sadd.s32 %s195, 26
        %s937 = sld [smem:[#allocation3 + %s936]]
        %v938 = vstv %s937
        %v939 = vmul.f32 %v209, %v938
        %v940 = vmul.f32 %v210, %v938
        %943 = vrot.lane.b32.xlu0 %v939, 102
        %v944 = vpop.permute.xlu0 %943
        %945 = vrot.lane.b32.xlu0 %v940, 102
        %v946 = vpop.permute.xlu0 %945
        %vm947 = vcmask 834560
        %v948 = vsel %vm947, %v944, %v946
        %v950 = vadd.f32 %v921, %v948
        %s951 = sadd.s32 %s195, 59
        %s952 = sld [smem:[#allocation3 + %s951]]
        %v953 = vstv %s952
        %v954 = vmul.f32 %v209, %v953
        %v955 = vmul.f32 %v210, %v953
        %958 = vrot.lane.b32.xlu0 %v954, 102
        %v959 = vpop.permute.xlu0 %958
        %960 = vrot.lane.b32.xlu0 %v955, 102
        %v961 = vpop.permute.xlu0 %960
        %v962 = vsel %vm947, %v959, %v961
        %v964 = vadd.f32 %v935, %v962
        %s965 = sadd.s32 %s195, 27
        %s966 = sld [smem:[#allocation3 + %s965]]
        %v967 = vstv %s966
        %v968 = vmul.f32 %v209, %v967
        %v969 = vmul.f32 %v210, %v967
        %972 = vrot.lane.b32.xlu0 %v968, 101
        %v973 = vpop.permute.xlu0 %972
        %974 = vrot.lane.b32.xlu0 %v969, 101
        %v975 = vpop.permute.xlu0 %974
        %vm976 = vcmask 826368
        %v977 = vsel %vm976, %v973, %v975
        %v979 = vadd.f32 %v950, %v977
        %s980 = sadd.s32 %s195, 60
        %s981 = sld [smem:[#allocation3 + %s980]]
        %v982 = vstv %s981
        %v983 = vmul.f32 %v209, %v982
        %v984 = vmul.f32 %v210, %v982
        %987 = vrot.lane.b32.xlu0 %v983, 101
        %v988 = vpop.permute.xlu0 %987
        %989 = vrot.lane.b32.xlu0 %v984, 101
        %v990 = vpop.permute.xlu0 %989
        %v991 = vsel %vm976, %v988, %v990
        %v993 = vadd.f32 %v964, %v991
        %s994 = sadd.s32 %s195, 28
        %s995 = sld [smem:[#allocation3 + %s994]]
        %v996 = vstv %s995
        %v997 = vmul.f32 %v209, %v996
        %v998 = vmul.f32 %v210, %v996
        %1001 = vrot.lane.b32.xlu0 %v997, 100
        %v1002 = vpop.permute.xlu0 %1001
        %1003 = vrot.lane.b32.xlu0 %v998, 100
        %v1004 = vpop.permute.xlu0 %1003
        %vm1005 = vcmask 818176
        %v1006 = vsel %vm1005, %v1002, %v1004
        %v1008 = vadd.f32 %v979, %v1006
        %s1009 = sadd.s32 %s195, 61
        %s1010 = sld [smem:[#allocation3 + %s1009]]
        %v1011 = vstv %s1010
        %v1012 = vmul.f32 %v209, %v1011
        %v1013 = vmul.f32 %v210, %v1011
        %1016 = vrot.lane.b32.xlu0 %v1012, 100
        %v1017 = vpop.permute.xlu0 %1016
        %1018 = vrot.lane.b32.xlu0 %v1013, 100
        %v1019 = vpop.permute.xlu0 %1018
        %v1020 = vsel %vm1005, %v1017, %v1019
        %v1022 = vadd.f32 %v993, %v1020
        %s1023 = sadd.s32 %s195, 29
        %s1024 = sld [smem:[#allocation3 + %s1023]]
        %v1025 = vstv %s1024
        %v1026 = vmul.f32 %v209, %v1025
        %v1027 = vmul.f32 %v210, %v1025
        %1030 = vrot.lane.b32.xlu0 %v1026, 99
        %v1031 = vpop.permute.xlu0 %1030
        %1032 = vrot.lane.b32.xlu0 %v1027, 99
        %v1033 = vpop.permute.xlu0 %1032
        %vm1034 = vcmask 809984
        %v1035 = vsel %vm1034, %v1031, %v1033
        %v1037 = vadd.f32 %v1008, %v1035
        %s1038 = sadd.s32 %s195, 62
        %s1039 = sld [smem:[#allocation3 + %s1038]]
        %v1040 = vstv %s1039
        %v1041 = vmul.f32 %v209, %v1040
        %v1042 = vmul.f32 %v210, %v1040
        %1045 = vrot.lane.b32.xlu0 %v1041, 99
        %v1046 = vpop.permute.xlu0 %1045
        %1047 = vrot.lane.b32.xlu0 %v1042, 99
        %v1048 = vpop.permute.xlu0 %1047
        %v1049 = vsel %vm1034, %v1046, %v1048
        %v1051 = vadd.f32 %v1022, %v1049
        %s1052 = sadd.s32 %s195, 30
        %s1053 = sld [smem:[#allocation3 + %s1052]]
        %v1054 = vstv %s1053
        %v1055 = vmul.f32 %v209, %v1054
        %v1056 = vmul.f32 %v210, %v1054
        %1059 = vrot.lane.b32.xlu0 %v1055, 98
        %v1060 = vpop.permute.xlu0 %1059
        %1061 = vrot.lane.b32.xlu0 %v1056, 98
        %v1062 = vpop.permute.xlu0 %1061
        %vm1063 = vcmask 801792
        %v1064 = vsel %vm1063, %v1060, %v1062
        %v1066 = vadd.f32 %v1037, %v1064
        %s1067 = sadd.s32 %s195, 63
        %s1068 = sld [smem:[#allocation3 + %s1067]]
        %v1069 = vstv %s1068
        %v1070 = vmul.f32 %v209, %v1069
        %v1071 = vmul.f32 %v210, %v1069
        %1074 = vrot.lane.b32.xlu0 %v1070, 98
        %v1075 = vpop.permute.xlu0 %1074
        %1076 = vrot.lane.b32.xlu0 %v1071, 98
        %v1077 = vpop.permute.xlu0 %1076
        %v1078 = vsel %vm1063, %v1075, %v1077
        %v1080 = vadd.f32 %v1051, %v1078
        %s1081 = sadd.s32 %s195, 31
        %s1082 = sld [smem:[#allocation3 + %s1081]]
        %v1083 = vstv %s1082
        %v1084 = vmul.f32 %v209, %v1083
        %v1085 = vmul.f32 %v210, %v1083
        %1088 = vrot.lane.b32.xlu0 %v1084, 97
        %v1089 = vpop.permute.xlu0 %1088
        %1090 = vrot.lane.b32.xlu0 %v1085, 97
        %v1091 = vpop.permute.xlu0 %1090
        %vm1092 = vcmask 793600
        %v1093 = vsel %vm1092, %v1089, %v1091
        %v1095 = vadd.f32 %v1066, %v1093
        %s1096 = sadd.s32 %s195, 64
        %s1097 = sld [smem:[#allocation3 + %s1096]]
        %v1098 = vstv %s1097
        %v1099 = vmul.f32 %v209, %v1098
        %v1100 = vmul.f32 %v210, %v1098
        %1103 = vrot.lane.b32.xlu0 %v1099, 97
        %v1104 = vpop.permute.xlu0 %1103
        %1105 = vrot.lane.b32.xlu0 %v1100, 97
        %v1106 = vpop.permute.xlu0 %1105
        %v1107 = vsel %vm1092, %v1104, %v1106
        %v1109 = vadd.f32 %v1080, %v1107
        %s1110 = sadd.s32 %s195, 32
        %s1111 = sld [smem:[#allocation3 + %s1110]]
        %v1112 = vstv %s1111
        %v1113 = vmul.f32 %v209, %v1112
        %v1114 = vmul.f32 %v210, %v1112
        %1117 = vrot.lane.b32.xlu0 %v1113, 96
        %v1118 = vpop.permute.xlu0 %1117
        %1119 = vrot.lane.b32.xlu0 %v1114, 96
        %v1120 = vpop.permute.xlu0 %1119
        %vm1121 = vcmask 785408
        %v1122 = vsel %vm1121, %v1118, %v1120
        %v1124 = vadd.f32 %v1095, %v1122
        %s1125 = sadd.s32 %s195, 65
        %s1126 = sld [smem:[#allocation3 + %s1125]]
        %v1127 = vstv %s1126
        %v1128 = vmul.f32 %v209, %v1127
        %v1129 = vmul.f32 %v210, %v1127
        %1132 = vrot.lane.b32.xlu0 %v1128, 96
        %v1133 = vpop.permute.xlu0 %1132
        %1134 = vrot.lane.b32.xlu0 %v1129, 96
        %v1135 = vpop.permute.xlu0 %1134
        %v1136 = vsel %vm1121, %v1133, %v1135
        %v1138 = vadd.f32 %v1109, %v1136
        %1139 = vst [vmem:[%s192] sm:$0xff] %v1124
        %s1140 = scalar_lea.vmem %s192, 8 [#allocation8]
        %1141 = vst [vmem:[%s1140] sm:$0xff] %v1138
        %s1142 = smul.u32 %s24, 2
        %s1143 = sadd.s32 %s1142, 1
        %s1144 = smul.u32 %s1143, 66
        %s1145 = scalar_lea.vmem %s171, 16 [#allocation7]
        %v1146 = vld [vmem:[%s1145] sm:$0xff]
        %v1147 = vld [vmem:[%s1145 + $0x8] sm:$0xff]
        %s1148 = scalar_lea.vmem [#allocation2], 16
        %1149 = vst [vmem:[%s1148] sm:$0xff] %v1146
        %1150 = vst.msk [vmem:[%s1148 + $0x8] sm:$0xff] %vm199, %v1147
        %v1151 = vld [vmem:[%s1148] sm:$0xff]
        %s1152 = sld [smem:[#allocation3 + %s1144]]
        %v1153 = vstv %s1152
        %v1154 = vmul.f32 %v1151, %v1153
        %s1155 = sadd.s32 %s1144, 33
        %s1156 = sld [smem:[#allocation3 + %s1155]]
        %v1157 = vstv %s1156
        %v1158 = vmul.f32 %v1151, %v1157
        %v1159 = vld [vmem:[%s1148] sm:$0xff]
        %v1160 = vld [vmem:[%s1148 + $0x8] sm:$0xff]
        %s1161 = sadd.s32 %s1144, 1
        %s1162 = sld [smem:[#allocation3 + %s1161]]
        %v1163 = vstv %s1162
        %v1164 = vmul.f32 %v1159, %v1163
        %v1165 = vmul.f32 %v1160, %v1163
        %1168 = vrot.lane.b32.xlu0 %v1164, 127
        %v1169 = vpop.permute.xlu0 %1168
        %1170 = vrot.lane.b32.xlu0 %v1165, 127
        %v1171 = vpop.permute.xlu0 %1170
        %v1172 = vsel %vm222, %v1169, %v1171
        %v1174 = vadd.f32 %v1154, %v1172
        %s1175 = sadd.s32 %s1144, 34
        %s1176 = sld [smem:[#allocation3 + %s1175]]
        %v1177 = vstv %s1176
        %v1178 = vmul.f32 %v1159, %v1177
        %v1179 = vmul.f32 %v1160, %v1177
        %1182 = vrot.lane.b32.xlu0 %v1178, 127
        %v1183 = vpop.permute.xlu0 %1182
        %1184 = vrot.lane.b32.xlu0 %v1179, 127
        %v1185 = vpop.permute.xlu0 %1184
        %v1186 = vsel %vm222, %v1183, %v1185
        %v1188 = vadd.f32 %v1158, %v1186
        %s1189 = sadd.s32 %s1144, 2
        %s1190 = sld [smem:[#allocation3 + %s1189]]
        %v1191 = vstv %s1190
        %v1192 = vmul.f32 %v1159, %v1191
        %v1193 = vmul.f32 %v1160, %v1191
        %1196 = vrot.lane.b32.xlu0 %v1192, 126
        %v1197 = vpop.permute.xlu0 %1196
        %1198 = vrot.lane.b32.xlu0 %v1193, 126
        %v1199 = vpop.permute.xlu0 %1198
        %v1200 = vsel %vm251, %v1197, %v1199
        %v1202 = vadd.f32 %v1174, %v1200
        %s1203 = sadd.s32 %s1144, 35
        %s1204 = sld [smem:[#allocation3 + %s1203]]
        %v1205 = vstv %s1204
        %v1206 = vmul.f32 %v1159, %v1205
        %v1207 = vmul.f32 %v1160, %v1205
        %1210 = vrot.lane.b32.xlu0 %v1206, 126
        %v1211 = vpop.permute.xlu0 %1210
        %1212 = vrot.lane.b32.xlu0 %v1207, 126
        %v1213 = vpop.permute.xlu0 %1212
        %v1214 = vsel %vm251, %v1211, %v1213
        %v1216 = vadd.f32 %v1188, %v1214
        %s1217 = sadd.s32 %s1144, 3
        %s1218 = sld [smem:[#allocation3 + %s1217]]
        %v1219 = vstv %s1218
        %v1220 = vmul.f32 %v1159, %v1219
        %v1221 = vmul.f32 %v1160, %v1219
        %1224 = vrot.lane.b32.xlu0 %v1220, 125
        %v1225 = vpop.permute.xlu0 %1224
        %1226 = vrot.lane.b32.xlu0 %v1221, 125
        %v1227 = vpop.permute.xlu0 %1226
        %v1228 = vsel %vm280, %v1225, %v1227
        %v1230 = vadd.f32 %v1202, %v1228
        %s1231 = sadd.s32 %s1144, 36
        %s1232 = sld [smem:[#allocation3 + %s1231]]
        %v1233 = vstv %s1232
        %v1234 = vmul.f32 %v1159, %v1233
        %v1235 = vmul.f32 %v1160, %v1233
        %1238 = vrot.lane.b32.xlu0 %v1234, 125
        %v1239 = vpop.permute.xlu0 %1238
        %1240 = vrot.lane.b32.xlu0 %v1235, 125
        %v1241 = vpop.permute.xlu0 %1240
        %v1242 = vsel %vm280, %v1239, %v1241
        %v1244 = vadd.f32 %v1216, %v1242
        %s1245 = sadd.s32 %s1144, 4
        %s1246 = sld [smem:[#allocation3 + %s1245]]
        %v1247 = vstv %s1246
        %v1248 = vmul.f32 %v1159, %v1247
        %v1249 = vmul.f32 %v1160, %v1247
        %1252 = vrot.lane.b32.xlu0 %v1248, 124
        %v1253 = vpop.permute.xlu0 %1252
        %1254 = vrot.lane.b32.xlu0 %v1249, 124
        %v1255 = vpop.permute.xlu0 %1254
        %v1256 = vsel %vm309, %v1253, %v1255
        %v1258 = vadd.f32 %v1230, %v1256
        %s1259 = sadd.s32 %s1144, 37
        %s1260 = sld [smem:[#allocation3 + %s1259]]
        %v1261 = vstv %s1260
        %v1262 = vmul.f32 %v1159, %v1261
        %v1263 = vmul.f32 %v1160, %v1261
        %1266 = vrot.lane.b32.xlu0 %v1262, 124
        %v1267 = vpop.permute.xlu0 %1266
        %1268 = vrot.lane.b32.xlu0 %v1263, 124
        %v1269 = vpop.permute.xlu0 %1268
        %v1270 = vsel %vm309, %v1267, %v1269
        %v1272 = vadd.f32 %v1244, %v1270
        %s1273 = sadd.s32 %s1144, 5
        %s1274 = sld [smem:[#allocation3 + %s1273]]
        %v1275 = vstv %s1274
        %v1276 = vmul.f32 %v1159, %v1275
        %v1277 = vmul.f32 %v1160, %v1275
        %1280 = vrot.lane.b32.xlu0 %v1276, 123
        %v1281 = vpop.permute.xlu0 %1280
        %1282 = vrot.lane.b32.xlu0 %v1277, 123
        %v1283 = vpop.permute.xlu0 %1282
        %v1284 = vsel %vm338, %v1281, %v1283
        %v1286 = vadd.f32 %v1258, %v1284
        %s1287 = sadd.s32 %s1144, 38
        %s1288 = sld [smem:[#allocation3 + %s1287]]
        %v1289 = vstv %s1288
        %v1290 = vmul.f32 %v1159, %v1289
        %v1291 = vmul.f32 %v1160, %v1289
        %1294 = vrot.lane.b32.xlu0 %v1290, 123
        %v1295 = vpop.permute.xlu0 %1294
        %1296 = vrot.lane.b32.xlu0 %v1291, 123
        %v1297 = vpop.permute.xlu0 %1296
        %v1298 = vsel %vm338, %v1295, %v1297
        %v1300 = vadd.f32 %v1272, %v1298
        %s1301 = sadd.s32 %s1144, 6
        %s1302 = sld [smem:[#allocation3 + %s1301]]
        %v1303 = vstv %s1302
        %v1304 = vmul.f32 %v1159, %v1303
        %v1305 = vmul.f32 %v1160, %v1303
        %1308 = vrot.lane.b32.xlu0 %v1304, 122
        %v1309 = vpop.permute.xlu0 %1308
        %1310 = vrot.lane.b32.xlu0 %v1305, 122
        %v1311 = vpop.permute.xlu0 %1310
        %v1312 = vsel %vm367, %v1309, %v1311
        %v1314 = vadd.f32 %v1286, %v1312
        %s1315 = sadd.s32 %s1144, 39
        %s1316 = sld [smem:[#allocation3 + %s1315]]
        %v1317 = vstv %s1316
        %v1318 = vmul.f32 %v1159, %v1317
        %v1319 = vmul.f32 %v1160, %v1317
        %1322 = vrot.lane.b32.xlu0 %v1318, 122
        %v1323 = vpop.permute.xlu0 %1322
        %1324 = vrot.lane.b32.xlu0 %v1319, 122
        %v1325 = vpop.permute.xlu0 %1324
        %v1326 = vsel %vm367, %v1323, %v1325
        %v1328 = vadd.f32 %v1300, %v1326
        %s1329 = sadd.s32 %s1144, 7
        %s1330 = sld [smem:[#allocation3 + %s1329]]
        %v1331 = vstv %s1330
        %v1332 = vmul.f32 %v1159, %v1331
        %v1333 = vmul.f32 %v1160, %v1331
        %1336 = vrot.lane.b32.xlu0 %v1332, 121
        %v1337 = vpop.permute.xlu0 %1336
        %1338 = vrot.lane.b32.xlu0 %v1333, 121
        %v1339 = vpop.permute.xlu0 %1338
        %v1340 = vsel %vm396, %v1337, %v1339
        %v1342 = vadd.f32 %v1314, %v1340
        %s1343 = sadd.s32 %s1144, 40
        %s1344 = sld [smem:[#allocation3 + %s1343]]
        %v1345 = vstv %s1344
        %v1346 = vmul.f32 %v1159, %v1345
        %v1347 = vmul.f32 %v1160, %v1345
        %1350 = vrot.lane.b32.xlu0 %v1346, 121
        %v1351 = vpop.permute.xlu0 %1350
        %1352 = vrot.lane.b32.xlu0 %v1347, 121
        %v1353 = vpop.permute.xlu0 %1352
        %v1354 = vsel %vm396, %v1351, %v1353
        %v1356 = vadd.f32 %v1328, %v1354
        %s1357 = sadd.s32 %s1144, 8
        %s1358 = sld [smem:[#allocation3 + %s1357]]
        %v1359 = vstv %s1358
        %v1360 = vmul.f32 %v1159, %v1359
        %v1361 = vmul.f32 %v1160, %v1359
        %1364 = vrot.lane.b32.xlu0 %v1360, 120
        %v1365 = vpop.permute.xlu0 %1364
        %1366 = vrot.lane.b32.xlu0 %v1361, 120
        %v1367 = vpop.permute.xlu0 %1366
        %v1368 = vsel %vm425, %v1365, %v1367
        %v1370 = vadd.f32 %v1342, %v1368
        %s1371 = sadd.s32 %s1144, 41
        %s1372 = sld [smem:[#allocation3 + %s1371]]
        %v1373 = vstv %s1372
        %v1374 = vmul.f32 %v1159, %v1373
        %v1375 = vmul.f32 %v1160, %v1373
        %1378 = vrot.lane.b32.xlu0 %v1374, 120
        %v1379 = vpop.permute.xlu0 %1378
        %1380 = vrot.lane.b32.xlu0 %v1375, 120
        %v1381 = vpop.permute.xlu0 %1380
        %v1382 = vsel %vm425, %v1379, %v1381
        %v1384 = vadd.f32 %v1356, %v1382
        %s1385 = sadd.s32 %s1144, 9
        %s1386 = sld [smem:[#allocation3 + %s1385]]
        %v1387 = vstv %s1386
        %v1388 = vmul.f32 %v1159, %v1387
        %v1389 = vmul.f32 %v1160, %v1387
        %1392 = vrot.lane.b32.xlu0 %v1388, 119
        %v1393 = vpop.permute.xlu0 %1392
        %1394 = vrot.lane.b32.xlu0 %v1389, 119
        %v1395 = vpop.permute.xlu0 %1394
        %v1396 = vsel %vm454, %v1393, %v1395
        %v1398 = vadd.f32 %v1370, %v1396
        %s1399 = sadd.s32 %s1144, 42
        %s1400 = sld [smem:[#allocation3 + %s1399]]
        %v1401 = vstv %s1400
        %v1402 = vmul.f32 %v1159, %v1401
        %v1403 = vmul.f32 %v1160, %v1401
        %1406 = vrot.lane.b32.xlu0 %v1402, 119
        %v1407 = vpop.permute.xlu0 %1406
        %1408 = vrot.lane.b32.xlu0 %v1403, 119
        %v1409 = vpop.permute.xlu0 %1408
        %v1410 = vsel %vm454, %v1407, %v1409
        %v1412 = vadd.f32 %v1384, %v1410
        %s1413 = sadd.s32 %s1144, 10
        %s1414 = sld [smem:[#allocation3 + %s1413]]
        %v1415 = vstv %s1414
        %v1416 = vmul.f32 %v1159, %v1415
        %v1417 = vmul.f32 %v1160, %v1415
        %1420 = vrot.lane.b32.xlu0 %v1416, 118
        %v1421 = vpop.permute.xlu0 %1420
        %1422 = vrot.lane.b32.xlu0 %v1417, 118
        %v1423 = vpop.permute.xlu0 %1422
        %v1424 = vsel %vm483, %v1421, %v1423
        %v1426 = vadd.f32 %v1398, %v1424
        %s1427 = sadd.s32 %s1144, 43
        %s1428 = sld [smem:[#allocation3 + %s1427]]
        %v1429 = vstv %s1428
        %v1430 = vmul.f32 %v1159, %v1429
        %v1431 = vmul.f32 %v1160, %v1429
        %1434 = vrot.lane.b32.xlu0 %v1430, 118
        %v1435 = vpop.permute.xlu0 %1434
        %1436 = vrot.lane.b32.xlu0 %v1431, 118
        %v1437 = vpop.permute.xlu0 %1436
        %v1438 = vsel %vm483, %v1435, %v1437
        %v1440 = vadd.f32 %v1412, %v1438
        %s1441 = sadd.s32 %s1144, 11
        %s1442 = sld [smem:[#allocation3 + %s1441]]
        %v1443 = vstv %s1442
        %v1444 = vmul.f32 %v1159, %v1443
        %v1445 = vmul.f32 %v1160, %v1443
        %1448 = vrot.lane.b32.xlu0 %v1444, 117
        %v1449 = vpop.permute.xlu0 %1448
        %1450 = vrot.lane.b32.xlu0 %v1445, 117
        %v1451 = vpop.permute.xlu0 %1450
        %v1452 = vsel %vm512, %v1449, %v1451
        %v1454 = vadd.f32 %v1426, %v1452
        %s1455 = sadd.s32 %s1144, 44
        %s1456 = sld [smem:[#allocation3 + %s1455]]
        %v1457 = vstv %s1456
        %v1458 = vmul.f32 %v1159, %v1457
        %v1459 = vmul.f32 %v1160, %v1457
        %1462 = vrot.lane.b32.xlu0 %v1458, 117
        %v1463 = vpop.permute.xlu0 %1462
        %1464 = vrot.lane.b32.xlu0 %v1459, 117
        %v1465 = vpop.permute.xlu0 %1464
        %v1466 = vsel %vm512, %v1463, %v1465
        %v1468 = vadd.f32 %v1440, %v1466
        %s1469 = sadd.s32 %s1144, 12
        %s1470 = sld [smem:[#allocation3 + %s1469]]
        %v1471 = vstv %s1470
        %v1472 = vmul.f32 %v1159, %v1471
        %v1473 = vmul.f32 %v1160, %v1471
        %1476 = vrot.lane.b32.xlu0 %v1472, 116
        %v1477 = vpop.permute.xlu0 %1476
        %1478 = vrot.lane.b32.xlu0 %v1473, 116
        %v1479 = vpop.permute.xlu0 %1478
        %v1480 = vsel %vm541, %v1477, %v1479
        %v1482 = vadd.f32 %v1454, %v1480
        %s1483 = sadd.s32 %s1144, 45
        %s1484 = sld [smem:[#allocation3 + %s1483]]
        %v1485 = vstv %s1484
        %v1486 = vmul.f32 %v1159, %v1485
        %v1487 = vmul.f32 %v1160, %v1485
        %1490 = vrot.lane.b32.xlu0 %v1486, 116
        %v1491 = vpop.permute.xlu0 %1490
        %1492 = vrot.lane.b32.xlu0 %v1487, 116
        %v1493 = vpop.permute.xlu0 %1492
        %v1494 = vsel %vm541, %v1491, %v1493
        %v1496 = vadd.f32 %v1468, %v1494
        %s1497 = sadd.s32 %s1144, 13
        %s1498 = sld [smem:[#allocation3 + %s1497]]
        %v1499 = vstv %s1498
        %v1500 = vmul.f32 %v1159, %v1499
        %v1501 = vmul.f32 %v1160, %v1499
        %1504 = vrot.lane.b32.xlu0 %v1500, 115
        %v1505 = vpop.permute.xlu0 %1504
        %1506 = vrot.lane.b32.xlu0 %v1501, 115
        %v1507 = vpop.permute.xlu0 %1506
        %v1508 = vsel %vm570, %v1505, %v1507
        %v1510 = vadd.f32 %v1482, %v1508
        %s1511 = sadd.s32 %s1144, 46
        %s1512 = sld [smem:[#allocation3 + %s1511]]
        %v1513 = vstv %s1512
        %v1514 = vmul.f32 %v1159, %v1513
        %v1515 = vmul.f32 %v1160, %v1513
        %1518 = vrot.lane.b32.xlu0 %v1514, 115
        %v1519 = vpop.permute.xlu0 %1518
        %1520 = vrot.lane.b32.xlu0 %v1515, 115
        %v1521 = vpop.permute.xlu0 %1520
        %v1522 = vsel %vm570, %v1519, %v1521
        %v1524 = vadd.f32 %v1496, %v1522
        %s1525 = sadd.s32 %s1144, 14
        %s1526 = sld [smem:[#allocation3 + %s1525]]
        %v1527 = vstv %s1526
        %v1528 = vmul.f32 %v1159, %v1527
        %v1529 = vmul.f32 %v1160, %v1527
        %1532 = vrot.lane.b32.xlu0 %v1528, 114
        %v1533 = vpop.permute.xlu0 %1532
        %1534 = vrot.lane.b32.xlu0 %v1529, 114
        %v1535 = vpop.permute.xlu0 %1534
        %v1536 = vsel %vm599, %v1533, %v1535
        %v1538 = vadd.f32 %v1510, %v1536
        %s1539 = sadd.s32 %s1144, 47
        %s1540 = sld [smem:[#allocation3 + %s1539]]
        %v1541 = vstv %s1540
        %v1542 = vmul.f32 %v1159, %v1541
        %v1543 = vmul.f32 %v1160, %v1541
        %1546 = vrot.lane.b32.xlu0 %v1542, 114
        %v1547 = vpop.permute.xlu0 %1546
        %1548 = vrot.lane.b32.xlu0 %v1543, 114
        %v1549 = vpop.permute.xlu0 %1548
        %v1550 = vsel %vm599, %v1547, %v1549
        %v1552 = vadd.f32 %v1524, %v1550
        %s1553 = sadd.s32 %s1144, 15
        %s1554 = sld [smem:[#allocation3 + %s1553]]
        %v1555 = vstv %s1554
        %v1556 = vmul.f32 %v1159, %v1555
        %v1557 = vmul.f32 %v1160, %v1555
        %1560 = vrot.lane.b32.xlu0 %v1556, 113
        %v1561 = vpop.permute.xlu0 %1560
        %1562 = vrot.lane.b32.xlu0 %v1557, 113
        %v1563 = vpop.permute.xlu0 %1562
        %v1564 = vsel %vm628, %v1561, %v1563
        %v1566 = vadd.f32 %v1538, %v1564
        %s1567 = sadd.s32 %s1144, 48
        %s1568 = sld [smem:[#allocation3 + %s1567]]
        %v1569 = vstv %s1568
        %v1570 = vmul.f32 %v1159, %v1569
        %v1571 = vmul.f32 %v1160, %v1569
        %1574 = vrot.lane.b32.xlu0 %v1570, 113
        %v1575 = vpop.permute.xlu0 %1574
        %1576 = vrot.lane.b32.xlu0 %v1571, 113
        %v1577 = vpop.permute.xlu0 %1576
        %v1578 = vsel %vm628, %v1575, %v1577
        %v1580 = vadd.f32 %v1552, %v1578
        %s1581 = sadd.s32 %s1144, 16
        %s1582 = sld [smem:[#allocation3 + %s1581]]
        %v1583 = vstv %s1582
        %v1584 = vmul.f32 %v1159, %v1583
        %v1585 = vmul.f32 %v1160, %v1583
        %1588 = vrot.lane.b32.xlu0 %v1584, 112
        %v1589 = vpop.permute.xlu0 %1588
        %1590 = vrot.lane.b32.xlu0 %v1585, 112
        %v1591 = vpop.permute.xlu0 %1590
        %v1592 = vsel %vm657, %v1589, %v1591
        %v1594 = vadd.f32 %v1566, %v1592
        %s1595 = sadd.s32 %s1144, 49
        %s1596 = sld [smem:[#allocation3 + %s1595]]
        %v1597 = vstv %s1596
        %v1598 = vmul.f32 %v1159, %v1597
        %v1599 = vmul.f32 %v1160, %v1597
        %1602 = vrot.lane.b32.xlu0 %v1598, 112
        %v1603 = vpop.permute.xlu0 %1602
        %1604 = vrot.lane.b32.xlu0 %v1599, 112
        %v1605 = vpop.permute.xlu0 %1604
        %v1606 = vsel %vm657, %v1603, %v1605
        %v1608 = vadd.f32 %v1580, %v1606
        %s1609 = sadd.s32 %s1144, 17
        %s1610 = sld [smem:[#allocation3 + %s1609]]
        %v1611 = vstv %s1610
        %v1612 = vmul.f32 %v1159, %v1611
        %v1613 = vmul.f32 %v1160, %v1611
        %1616 = vrot.lane.b32.xlu0 %v1612, 111
        %v1617 = vpop.permute.xlu0 %1616
        %1618 = vrot.lane.b32.xlu0 %v1613, 111
        %v1619 = vpop.permute.xlu0 %1618
        %v1620 = vsel %vm686, %v1617, %v1619
        %v1622 = vadd.f32 %v1594, %v1620
        %s1623 = sadd.s32 %s1144, 50
        %s1624 = sld [smem:[#allocation3 + %s1623]]
        %v1625 = vstv %s1624
        %v1626 = vmul.f32 %v1159, %v1625
        %v1627 = vmul.f32 %v1160, %v1625
        %1630 = vrot.lane.b32.xlu0 %v1626, 111
        %v1631 = vpop.permute.xlu0 %1630
        %1632 = vrot.lane.b32.xlu0 %v1627, 111
        %v1633 = vpop.permute.xlu0 %1632
        %v1634 = vsel %vm686, %v1631, %v1633
        %v1636 = vadd.f32 %v1608, %v1634
        %s1637 = sadd.s32 %s1144, 18
        %s1638 = sld [smem:[#allocation3 + %s1637]]
        %v1639 = vstv %s1638
        %v1640 = vmul.f32 %v1159, %v1639
        %v1641 = vmul.f32 %v1160, %v1639
        %1644 = vrot.lane.b32.xlu0 %v1640, 110
        %v1645 = vpop.permute.xlu0 %1644
        %1646 = vrot.lane.b32.xlu0 %v1641, 110
        %v1647 = vpop.permute.xlu0 %1646
        %v1648 = vsel %vm715, %v1645, %v1647
        %v1650 = vadd.f32 %v1622, %v1648
        %s1651 = sadd.s32 %s1144, 51
        %s1652 = sld [smem:[#allocation3 + %s1651]]
        %v1653 = vstv %s1652
        %v1654 = vmul.f32 %v1159, %v1653
        %v1655 = vmul.f32 %v1160, %v1653
        %1658 = vrot.lane.b32.xlu0 %v1654, 110
        %v1659 = vpop.permute.xlu0 %1658
        %1660 = vrot.lane.b32.xlu0 %v1655, 110
        %v1661 = vpop.permute.xlu0 %1660
        %v1662 = vsel %vm715, %v1659, %v1661
        %v1664 = vadd.f32 %v1636, %v1662
        %s1665 = sadd.s32 %s1144, 19
        %s1666 = sld [smem:[#allocation3 + %s1665]]
        %v1667 = vstv %s1666
        %v1668 = vmul.f32 %v1159, %v1667
        %v1669 = vmul.f32 %v1160, %v1667
        %1672 = vrot.lane.b32.xlu0 %v1668, 109
        %v1673 = vpop.permute.xlu0 %1672
        %1674 = vrot.lane.b32.xlu0 %v1669, 109
        %v1675 = vpop.permute.xlu0 %1674
        %v1676 = vsel %vm744, %v1673, %v1675
        %v1678 = vadd.f32 %v1650, %v1676
        %s1679 = sadd.s32 %s1144, 52
        %s1680 = sld [smem:[#allocation3 + %s1679]]
        %v1681 = vstv %s1680
        %v1682 = vmul.f32 %v1159, %v1681
        %v1683 = vmul.f32 %v1160, %v1681
        %1686 = vrot.lane.b32.xlu0 %v1682, 109
        %v1687 = vpop.permute.xlu0 %1686
        %1688 = vrot.lane.b32.xlu0 %v1683, 109
        %v1689 = vpop.permute.xlu0 %1688
        %v1690 = vsel %vm744, %v1687, %v1689
        %v1692 = vadd.f32 %v1664, %v1690
        %s1693 = sadd.s32 %s1144, 20
        %s1694 = sld [smem:[#allocation3 + %s1693]]
        %v1695 = vstv %s1694
        %v1696 = vmul.f32 %v1159, %v1695
        %v1697 = vmul.f32 %v1160, %v1695
        %1700 = vrot.lane.b32.xlu0 %v1696, 108
        %v1701 = vpop.permute.xlu0 %1700
        %1702 = vrot.lane.b32.xlu0 %v1697, 108
        %v1703 = vpop.permute.xlu0 %1702
        %v1704 = vsel %vm773, %v1701, %v1703
        %v1706 = vadd.f32 %v1678, %v1704
        %s1707 = sadd.s32 %s1144, 53
        %s1708 = sld [smem:[#allocation3 + %s1707]]
        %v1709 = vstv %s1708
        %v1710 = vmul.f32 %v1159, %v1709
        %v1711 = vmul.f32 %v1160, %v1709
        %1714 = vrot.lane.b32.xlu0 %v1710, 108
        %v1715 = vpop.permute.xlu0 %1714
        %1716 = vrot.lane.b32.xlu0 %v1711, 108
        %v1717 = vpop.permute.xlu0 %1716
        %v1718 = vsel %vm773, %v1715, %v1717
        %v1720 = vadd.f32 %v1692, %v1718
        %s1721 = sadd.s32 %s1144, 21
        %s1722 = sld [smem:[#allocation3 + %s1721]]
        %v1723 = vstv %s1722
        %v1724 = vmul.f32 %v1159, %v1723
        %v1725 = vmul.f32 %v1160, %v1723
        %1728 = vrot.lane.b32.xlu0 %v1724, 107
        %v1729 = vpop.permute.xlu0 %1728
        %1730 = vrot.lane.b32.xlu0 %v1725, 107
        %v1731 = vpop.permute.xlu0 %1730
        %v1732 = vsel %vm802, %v1729, %v1731
        %v1734 = vadd.f32 %v1706, %v1732
        %s1735 = sadd.s32 %s1144, 54
        %s1736 = sld [smem:[#allocation3 + %s1735]]
        %v1737 = vstv %s1736
        %v1738 = vmul.f32 %v1159, %v1737
        %v1739 = vmul.f32 %v1160, %v1737
        %1742 = vrot.lane.b32.xlu0 %v1738, 107
        %v1743 = vpop.permute.xlu0 %1742
        %1744 = vrot.lane.b32.xlu0 %v1739, 107
        %v1745 = vpop.permute.xlu0 %1744
        %v1746 = vsel %vm802, %v1743, %v1745
        %v1748 = vadd.f32 %v1720, %v1746
        %s1749 = sadd.s32 %s1144, 22
        %s1750 = sld [smem:[#allocation3 + %s1749]]
        %v1751 = vstv %s1750
        %v1752 = vmul.f32 %v1159, %v1751
        %v1753 = vmul.f32 %v1160, %v1751
        %1756 = vrot.lane.b32.xlu0 %v1752, 106
        %v1757 = vpop.permute.xlu0 %1756
        %1758 = vrot.lane.b32.xlu0 %v1753, 106
        %v1759 = vpop.permute.xlu0 %1758
        %v1760 = vsel %vm831, %v1757, %v1759
        %v1762 = vadd.f32 %v1734, %v1760
        %s1763 = sadd.s32 %s1144, 55
        %s1764 = sld [smem:[#allocation3 + %s1763]]
        %v1765 = vstv %s1764
        %v1766 = vmul.f32 %v1159, %v1765
        %v1767 = vmul.f32 %v1160, %v1765
        %1770 = vrot.lane.b32.xlu0 %v1766, 106
        %v1771 = vpop.permute.xlu0 %1770
        %1772 = vrot.lane.b32.xlu0 %v1767, 106
        %v1773 = vpop.permute.xlu0 %1772
        %v1774 = vsel %vm831, %v1771, %v1773
        %v1776 = vadd.f32 %v1748, %v1774
        %s1777 = sadd.s32 %s1144, 23
        %s1778 = sld [smem:[#allocation3 + %s1777]]
        %v1779 = vstv %s1778
        %v1780 = vmul.f32 %v1159, %v1779
        %v1781 = vmul.f32 %v1160, %v1779
        %1784 = vrot.lane.b32.xlu0 %v1780, 105
        %v1785 = vpop.permute.xlu0 %1784
        %1786 = vrot.lane.b32.xlu0 %v1781, 105
        %v1787 = vpop.permute.xlu0 %1786
        %v1788 = vsel %vm860, %v1785, %v1787
        %v1790 = vadd.f32 %v1762, %v1788
        %s1791 = sadd.s32 %s1144, 56
        %s1792 = sld [smem:[#allocation3 + %s1791]]
        %v1793 = vstv %s1792
        %v1794 = vmul.f32 %v1159, %v1793
        %v1795 = vmul.f32 %v1160, %v1793
        %1798 = vrot.lane.b32.xlu0 %v1794, 105
        %v1799 = vpop.permute.xlu0 %1798
        %1800 = vrot.lane.b32.xlu0 %v1795, 105
        %v1801 = vpop.permute.xlu0 %1800
        %v1802 = vsel %vm860, %v1799, %v1801
        %v1804 = vadd.f32 %v1776, %v1802
        %s1805 = sadd.s32 %s1144, 24
        %s1806 = sld [smem:[#allocation3 + %s1805]]
        %v1807 = vstv %s1806
        %v1808 = vmul.f32 %v1159, %v1807
        %v1809 = vmul.f32 %v1160, %v1807
        %1812 = vrot.lane.b32.xlu0 %v1808, 104
        %v1813 = vpop.permute.xlu0 %1812
        %1814 = vrot.lane.b32.xlu0 %v1809, 104
        %v1815 = vpop.permute.xlu0 %1814
        %v1816 = vsel %vm889, %v1813, %v1815
        %v1818 = vadd.f32 %v1790, %v1816
        %s1819 = sadd.s32 %s1144, 57
        %s1820 = sld [smem:[#allocation3 + %s1819]]
        %v1821 = vstv %s1820
        %v1822 = vmul.f32 %v1159, %v1821
        %v1823 = vmul.f32 %v1160, %v1821
        %1826 = vrot.lane.b32.xlu0 %v1822, 104
        %v1827 = vpop.permute.xlu0 %1826
        %1828 = vrot.lane.b32.xlu0 %v1823, 104
        %v1829 = vpop.permute.xlu0 %1828
        %v1830 = vsel %vm889, %v1827, %v1829
        %v1832 = vadd.f32 %v1804, %v1830
        %s1833 = sadd.s32 %s1144, 25
        %s1834 = sld [smem:[#allocation3 + %s1833]]
        %v1835 = vstv %s1834
        %v1836 = vmul.f32 %v1159, %v1835
        %v1837 = vmul.f32 %v1160, %v1835
        %1840 = vrot.lane.b32.xlu0 %v1836, 103
        %v1841 = vpop.permute.xlu0 %1840
        %1842 = vrot.lane.b32.xlu0 %v1837, 103
        %v1843 = vpop.permute.xlu0 %1842
        %v1844 = vsel %vm918, %v1841, %v1843
        %v1846 = vadd.f32 %v1818, %v1844
        %s1847 = sadd.s32 %s1144, 58
        %s1848 = sld [smem:[#allocation3 + %s1847]]
        %v1849 = vstv %s1848
        %v1850 = vmul.f32 %v1159, %v1849
        %v1851 = vmul.f32 %v1160, %v1849
        %1854 = vrot.lane.b32.xlu0 %v1850, 103
        %v1855 = vpop.permute.xlu0 %1854
        %1856 = vrot.lane.b32.xlu0 %v1851, 103
        %v1857 = vpop.permute.xlu0 %1856
        %v1858 = vsel %vm918, %v1855, %v1857
        %v1860 = vadd.f32 %v1832, %v1858
        %s1861 = sadd.s32 %s1144, 26
        %s1862 = sld [smem:[#allocation3 + %s1861]]
        %v1863 = vstv %s1862
        %v1864 = vmul.f32 %v1159, %v1863
        %v1865 = vmul.f32 %v1160, %v1863
        %1868 = vrot.lane.b32.xlu0 %v1864, 102
        %v1869 = vpop.permute.xlu0 %1868
        %1870 = vrot.lane.b32.xlu0 %v1865, 102
        %v1871 = vpop.permute.xlu0 %1870
        %v1872 = vsel %vm947, %v1869, %v1871
        %v1874 = vadd.f32 %v1846, %v1872
        %s1875 = sadd.s32 %s1144, 59
        %s1876 = sld [smem:[#allocation3 + %s1875]]
        %v1877 = vstv %s1876
        %v1878 = vmul.f32 %v1159, %v1877
        %v1879 = vmul.f32 %v1160, %v1877
        %1882 = vrot.lane.b32.xlu0 %v1878, 102
        %v1883 = vpop.permute.xlu0 %1882
        %1884 = vrot.lane.b32.xlu0 %v1879, 102
        %v1885 = vpop.permute.xlu0 %1884
        %v1886 = vsel %vm947, %v1883, %v1885
        %v1888 = vadd.f32 %v1860, %v1886
        %s1889 = sadd.s32 %s1144, 27
        %s1890 = sld [smem:[#allocation3 + %s1889]]
        %v1891 = vstv %s1890
        %v1892 = vmul.f32 %v1159, %v1891
        %v1893 = vmul.f32 %v1160, %v1891
        %1896 = vrot.lane.b32.xlu0 %v1892, 101
        %v1897 = vpop.permute.xlu0 %1896
        %1898 = vrot.lane.b32.xlu0 %v1893, 101
        %v1899 = vpop.permute.xlu0 %1898
        %v1900 = vsel %vm976, %v1897, %v1899
        %v1902 = vadd.f32 %v1874, %v1900
        %s1903 = sadd.s32 %s1144, 60
        %s1904 = sld [smem:[#allocation3 + %s1903]]
        %v1905 = vstv %s1904
        %v1906 = vmul.f32 %v1159, %v1905
        %v1907 = vmul.f32 %v1160, %v1905
        %1910 = vrot.lane.b32.xlu0 %v1906, 101
        %v1911 = vpop.permute.xlu0 %1910
        %1912 = vrot.lane.b32.xlu0 %v1907, 101
        %v1913 = vpop.permute.xlu0 %1912
        %v1914 = vsel %vm976, %v1911, %v1913
        %v1916 = vadd.f32 %v1888, %v1914
        %s1917 = sadd.s32 %s1144, 28
        %s1918 = sld [smem:[#allocation3 + %s1917]]
        %v1919 = vstv %s1918
        %v1920 = vmul.f32 %v1159, %v1919
        %v1921 = vmul.f32 %v1160, %v1919
        %1924 = vrot.lane.b32.xlu0 %v1920, 100
        %v1925 = vpop.permute.xlu0 %1924
        %1926 = vrot.lane.b32.xlu0 %v1921, 100
        %v1927 = vpop.permute.xlu0 %1926
        %v1928 = vsel %vm1005, %v1925, %v1927
        %v1930 = vadd.f32 %v1902, %v1928
        %s1931 = sadd.s32 %s1144, 61
        %s1932 = sld [smem:[#allocation3 + %s1931]]
        %v1933 = vstv %s1932
        %v1934 = vmul.f32 %v1159, %v1933
        %v1935 = vmul.f32 %v1160, %v1933
        %1938 = vrot.lane.b32.xlu0 %v1934, 100
        %v1939 = vpop.permute.xlu0 %1938
        %1940 = vrot.lane.b32.xlu0 %v1935, 100
        %v1941 = vpop.permute.xlu0 %1940
        %v1942 = vsel %vm1005, %v1939, %v1941
        %v1944 = vadd.f32 %v1916, %v1942
        %s1945 = sadd.s32 %s1144, 29
        %s1946 = sld [smem:[#allocation3 + %s1945]]
        %v1947 = vstv %s1946
        %v1948 = vmul.f32 %v1159, %v1947
        %v1949 = vmul.f32 %v1160, %v1947
        %1952 = vrot.lane.b32.xlu0 %v1948, 99
        %v1953 = vpop.permute.xlu0 %1952
        %1954 = vrot.lane.b32.xlu0 %v1949, 99
        %v1955 = vpop.permute.xlu0 %1954
        %v1956 = vsel %vm1034, %v1953, %v1955
        %v1958 = vadd.f32 %v1930, %v1956
        %s1959 = sadd.s32 %s1144, 62
        %s1960 = sld [smem:[#allocation3 + %s1959]]
        %v1961 = vstv %s1960
        %v1962 = vmul.f32 %v1159, %v1961
        %v1963 = vmul.f32 %v1160, %v1961
        %1966 = vrot.lane.b32.xlu0 %v1962, 99
        %v1967 = vpop.permute.xlu0 %1966
        %1968 = vrot.lane.b32.xlu0 %v1963, 99
        %v1969 = vpop.permute.xlu0 %1968
        %v1970 = vsel %vm1034, %v1967, %v1969
        %v1972 = vadd.f32 %v1944, %v1970
        %s1973 = sadd.s32 %s1144, 30
        %s1974 = sld [smem:[#allocation3 + %s1973]]
        %v1975 = vstv %s1974
        %v1976 = vmul.f32 %v1159, %v1975
        %v1977 = vmul.f32 %v1160, %v1975
        %1980 = vrot.lane.b32.xlu0 %v1976, 98
        %v1981 = vpop.permute.xlu0 %1980
        %1982 = vrot.lane.b32.xlu0 %v1977, 98
        %v1983 = vpop.permute.xlu0 %1982
        %v1984 = vsel %vm1063, %v1981, %v1983
        %v1986 = vadd.f32 %v1958, %v1984
        %s1987 = sadd.s32 %s1144, 63
        %s1988 = sld [smem:[#allocation3 + %s1987]]
        %v1989 = vstv %s1988
        %v1990 = vmul.f32 %v1159, %v1989
        %v1991 = vmul.f32 %v1160, %v1989
        %1994 = vrot.lane.b32.xlu0 %v1990, 98
        %v1995 = vpop.permute.xlu0 %1994
        %1996 = vrot.lane.b32.xlu0 %v1991, 98
        %v1997 = vpop.permute.xlu0 %1996
        %v1998 = vsel %vm1063, %v1995, %v1997
        %v2000 = vadd.f32 %v1972, %v1998
        %s2001 = sadd.s32 %s1144, 31
        %s2002 = sld [smem:[#allocation3 + %s2001]]
        %v2003 = vstv %s2002
        %v2004 = vmul.f32 %v1159, %v2003
        %v2005 = vmul.f32 %v1160, %v2003
        %2008 = vrot.lane.b32.xlu0 %v2004, 97
        %v2009 = vpop.permute.xlu0 %2008
        %2010 = vrot.lane.b32.xlu0 %v2005, 97
        %v2011 = vpop.permute.xlu0 %2010
        %v2012 = vsel %vm1092, %v2009, %v2011
        %v2014 = vadd.f32 %v1986, %v2012
        %s2015 = sadd.s32 %s1144, 64
        %s2016 = sld [smem:[#allocation3 + %s2015]]
        %v2017 = vstv %s2016
        %v2018 = vmul.f32 %v1159, %v2017
        %v2019 = vmul.f32 %v1160, %v2017
        %2022 = vrot.lane.b32.xlu0 %v2018, 97
        %v2023 = vpop.permute.xlu0 %2022
        %2024 = vrot.lane.b32.xlu0 %v2019, 97
        %v2025 = vpop.permute.xlu0 %2024
        %v2026 = vsel %vm1092, %v2023, %v2025
        %v2028 = vadd.f32 %v2000, %v2026
        %s2029 = sadd.s32 %s1144, 32
        %s2030 = sld [smem:[#allocation3 + %s2029]]
        %v2031 = vstv %s2030
        %v2032 = vmul.f32 %v1159, %v2031
        %v2033 = vmul.f32 %v1160, %v2031
        %2036 = vrot.lane.b32.xlu0 %v2032, 96
        %v2037 = vpop.permute.xlu0 %2036
        %2038 = vrot.lane.b32.xlu0 %v2033, 96
        %v2039 = vpop.permute.xlu0 %2038
        %v2040 = vsel %vm1121, %v2037, %v2039
        %v2042 = vadd.f32 %v2014, %v2040
        %s2043 = sadd.s32 %s1144, 65
        %s2044 = sld [smem:[#allocation3 + %s2043]]
        %v2045 = vstv %s2044
        %v2046 = vmul.f32 %v1159, %v2045
        %v2047 = vmul.f32 %v1160, %v2045
        %2050 = vrot.lane.b32.xlu0 %v2046, 96
        %v2051 = vpop.permute.xlu0 %2050
        %2052 = vrot.lane.b32.xlu0 %v2047, 96
        %v2053 = vpop.permute.xlu0 %2052
        %v2054 = vsel %vm1121, %v2051, %v2053
        %v2056 = vadd.f32 %v2028, %v2054
        %s2057 = scalar_lea.vmem %s192, 16 [#allocation8]
        %2058 = vst [vmem:[%s2057] sm:$0xff] %v2042
        %s2059 = scalar_lea.vmem %s192, 24 [#allocation8]
        %2060 = vst [vmem:[%s2059] sm:$0xff] %v2056
        %s2061 = sand.u32 %s91, 1
        %s2062 = scalar_lea.sflag [#allocation5], %s2061
        %s2063 = sand.u32 %s91, 1
        %s2064 = smul.addr %s2063, 32
        %s2065 = scalar_lea.vmem [#allocation8], %s2064
        // Predicated region
        $region37: #{tpu_custom_call.1} parent=27 // pred_check
          %p2066 = pneg %p101
        $region38: #{tpu_custom_call.1} parent=27 // pred_check_branch
          %2068 = sbr.rel (%p2066) target = $region40
        $region39: #{tpu_custom_call.1} parent=27 // pred_region
          %s2069 = smul.u32 4, %s24
          %s2071 = ssub.s32 512, 512
          %2072 = vsyncadd %s2062, %s2071
          %s2073 = sadd.s32 %s25, %s2069
          %s2074 = smul.addr %s2073, 128
          %s2075 = scalar_lea.hbm %s2, %s2074
          %s2076 = sshll.u32 %s2065, 4
          %s2077 = int_to_ptr.vmem [resolvable:$true] %s2076
          %2082 = dma.vmem_to_hbm [thread:$0]  %s2077, 512, %s2075, %s2062, 128, 128, 8
        $region40: #{tpu_custom_call.1} parent=27 // pred_fallthru
          _
      $region28: #{tpu_custom_call.1} parent=5 // pred_fallthru
        _
      %p2083 = scmp.le.s32.totalorder 2, %s15
      // Predicated region
      $region41: #{tpu_custom_call.1} parent=5 // pred_check
        %p2084 = pneg %p2083
      $region42: #{tpu_custom_call.1} parent=5 // pred_check_branch
        %2086 = sbr.rel (%p2084) target = $region44
      $region43: #{tpu_custom_call.1} parent=5 // pred_region
        %s2087 = ssub.s32 %s15, 2
        // Predicated region
        $region45: #{tpu_custom_call.1} parent=43 // pred_check
          %p2088 = pneg %p107
        $region46: #{tpu_custom_call.1} parent=43 // pred_check_branch
          %2090 = sbr.rel (%p2088) target = $region48
        $region47: #{tpu_custom_call.1} parent=43 // pred_region
          %s2091 = sand.u32 %s92, 1
          %s2092 = scalar_lea.sflag [#allocation5], %s2091
          %s2093 = sand.u32 %s92, 1
          %s2094 = smul.addr %s2093, 32
          %s2095 = scalar_lea.vmem [#allocation8], %s2094
          %2096 = dma.done %s2092, 512
        $region48: #{tpu_custom_call.1} parent=43 // pred_fallthru
          _
      $region44: #{tpu_custom_call.1} parent=5 // pred_fallthru
        _
    $region6: #{tpu_custom_call.1} parent=1 // loop_footer
      %s19 = sadd.s32 1, %s15
    $region7: #{tpu_custom_call.1} parent=1 // loop_footer_branch
      %14 = sbr.rel target = $region3
    $region8: #{tpu_custom_call.1} parent=1 // loop_exit
      _
    %2097 = vsyncpa [#allocation4], 1
    %s2098 = scalar_lea.sflag [#allocation4], 1
    %2099 = vsyncpa %s2098, 1
    %2100 = vsyncpa [#allocation5], 1
    %s2101 = scalar_lea.sflag [#allocation5], 1
    %2102 = vsyncpa %s2101, 1
    %2103 = vsyncpa [#allocation6], 1
    %s2104 = scalar_lea.sflag [#allocation6], 1
    %2105 = vsyncpa %s2104, 1

</llo_original>
